<compile_context>
chip_gen: v7x
topology: tpu7x:2x2x1
jax: 0.10.0
libtpu: 0.0.40
codegen_flags: <defaults>
</compile_context>

<pallas_src>
import math

import jax
import jax.numpy as jnp
from jax.experimental import pallas as pl
from jax.experimental.pallas import tpu as pltpu

EPS_OT = 0.05              # self.eps in the module
SINKHORN_MAX_ITERS = 100   # max_iter in Sinkhorn_log_exp_sum
SINKHORN_CHUNK = 10        # convergence checked every CHUNK iterations
SINKHORN_THRESH = 1e-6     # PyTorch's `thresh`


def attention_ot_kernel(xq_ref, xk_ref, xv_ref,
                        wqt_ref, wkt_ref, wvt_ref, wpt_ref, bp_ref, seg_ref,
                        x_out_ref, attn_out_ref):
    # Per grid-step views (one step = Bg batches x K query groups):
    #   xq_ref : (Gk, Nq, C)  with Gk = Bg*K, groups ordered batch-major
    #   xk_ref / xv_ref : (Bg, M, C)
    #   w*t_ref: (C, C) pre-transposed weights, bp_ref: (1, C)
    #   seg_ref: (L, L) block-diagonal ones (MxM blocks), L = Gk*M
    #   x_out_ref: (Gk*Nq, C), attn_out_ref: (1, L)
    Gk, Nq, C = xq_ref.shape
    Bg, M, _ = xk_ref.shape
    K = Gk // Bg
    L = Gk * M
    f32 = jnp.float32

    # ---- projections (nn.Linear y = x @ W^T, no bias for q/k/v) -------------
    q = jnp.dot(xq_ref[...].reshape(Gk * Nq, C), wqt_ref[...],
                preferred_element_type=f32)                               # (Gk*Nq, C)
    k = jnp.dot(xk_ref[...].reshape(Bg * M, C), wkt_ref[...],
                preferred_element_type=f32)                               # (Bg*M, C)
    v = jnp.dot(xv_ref[...].reshape(Bg * M, C), wvt_ref[...],
                preferred_element_type=f32)                               # (Bg*M, C)

    # ---- F.normalize(p=2, dim=-1) via rsqrt (EUP) ----------------------------
    qn = q * jax.lax.rsqrt(jnp.maximum(jnp.sum(q * q, -1, keepdims=True), 1e-24))
    kn = k * jax.lax.rsqrt(jnp.maximum(jnp.sum(k * k, -1, keepdims=True), 1e-24))

    # ---- similarity, lane-packed: sim_p[n, g*M + m] = <q_{g,n}, k_{b(g),m}> --
    cols = []
    for b in range(Bg):
        kb = kn[b * M:(b + 1) * M, :]                                     # (M, C)
        for kk in range(K):
            g = b * K + kk
            qg = qn[g * Nq:(g + 1) * Nq, :]                               # (Nq, C)
            cols.append(jax.lax.dot_general(qg, kb, (((1,), (1,)), ((), ())),
                                            preferred_element_type=f32))  # (Nq, M)
    sim_p = jnp.concatenate(cols, axis=1)                                 # (Nq, L)

    # ---- Sinkhorn (log domain), all groups in one lane-packed carry ----------
    # E == (-wdist + u + v)/eps ; each half-update is a broadcast add of
    # (log marginal - LSE(E)).  No max-shift: sim in [-1, 1] keeps E <= 0
    # (no exp overflow) and far above f32 exp-underflow at eps = 0.05.
    log_mu = math.log(1.0 / M + 1e-8)
    log_nu = math.log(1.0 / Nq + 1e-8)
    seg = seg_ref[...]                                                    # (L, L)

    def one_iter(E):
        p = jnp.exp(E)
        cu = log_mu - jnp.log(jnp.sum(p, axis=0, keepdims=True))          # (1, L)  u-update
        E = E + cu
        p = jnp.exp(E)
        rs = jnp.dot(p, seg, preferred_element_type=f32)                  # segmented sum over M (MXU)
        E = E + (log_nu - jnp.log(rs))                                    # v-update
        return E, cu

    def cond(carry):
        it, err, _ = carry
        return jnp.logical_and(it < SINKHORN_MAX_ITERS // SINKHORN_CHUNK,
                               err >= SINKHORN_THRESH)

    def body(carry):
        it, _, E = carry
        cu = None
        for _ in range(SINKHORN_CHUNK):                                   # unrolled chunk
            E, cu = one_iter(E)
        # PyTorch: err = mean|u - u0| = eps * mean|log_mu - LSE_n(E)|
        err = EPS_OT * jnp.mean(jnp.abs(cu))
        return it + 1, err, E
    # TODO(synk): when the work is split across TensorCores (G > 1) the
    # convergence check is per-split, not PyTorch's global batch mean.

    E0 = (sim_p - 1.0) * (1.0 / EPS_OT)
    _, _, E = jax.lax.while_loop(cond, body,
                                 (jnp.int32(0), jnp.float32(jnp.inf), E0))
    t_p = jnp.exp(E)                                                      # (Nq, L) == T^T per group

    # ---- attn_save[g, m] = M*Nq * sum_n sim * T -------------------------------
    score = (float(M) * float(Nq)) * sim_p * t_p
    attn_out_ref[...] = jnp.sum(score, axis=0, keepdims=True).astype(attn_out_ref.dtype)

    # ---- x = (T^T @ v) @ Wp^T + bp --------------------------------------------
    rows = []
    for b in range(Bg):
        vb = v[b * M:(b + 1) * M, :]                                      # (M, C)
        for kk in range(K):
            g = b * K + kk
            tg = t_p[:, g * M:(g + 1) * M]                                # (Nq, M)
            rows.append(jnp.dot(tg, vb, preferred_element_type=f32))      # (Nq, C)
    xo = jnp.concatenate(rows, axis=0)                                    # (Gk*Nq, C)
    xo = jnp.dot(xo, wpt_ref[...], preferred_element_type=f32) + bp_ref[...]
    x_out_ref[...] = xo.astype(x_out_ref.dtype)


def _default_num_splits(B):
    """2-way split of the independent OT problems on 2-TensorCore chips (v7x);
    everything folded into a single grid step on single-core chips (v5e/v6e)."""
    try:
        kind = jax.devices()[0].device_kind.lower()
    except Exception:
        return 1
    if any(t in kind for t in ("v7", "7x")) and B % 2 == 0:
        return 2
    return 1


def attention_ot(xq, xk, xv, wq, wk, wv, wp, bp, *, num_splits=None):
    """xq: (Nq, K, B, C); xk/xv: (B, M, C); wq..wp: (C, C) nn.Linear (out, in);
    bp: (C,).  Returns (x: (K, Nq, B, C), attn_save: (B, K, M))."""
    Nq, K, B, C = xq.shape
    M = xk.shape[1]
    out_dtype = xq.dtype

    G = _default_num_splits(B) if num_splits is None else int(num_splits)
    if G < 1 or B % G != 0:
        G = 1
    Bg = B // G
    Gk = Bg * K
    L = Gk * M

    # Group-major (b, k) layout so each grid step reads one contiguous slab.
    xq_g = jnp.transpose(xq, (2, 1, 0, 3)).reshape(B * K, Nq, C)    # (B*K, Nq, C)
    wqt, wkt, wvt, wpt = wq.T, wk.T, wv.T, wp.T                     # (C_in, C_out)
    bp2 = bp.reshape(1, C)
    # Block-diagonal ones: one MXU matmul = segmented sum over M + broadcast back.
    seg = jnp.kron(jnp.eye(Gk, dtype=jnp.float32), jnp.ones((M, M), jnp.float32))

    # Advisory cost estimate: the kernel is dominated by the Sinkhorn loop,
    # which is invisible from its tiny I/O footprint.
    iters = SINKHORN_MAX_ITERS
    flops = 2 * (B * K * Nq * C * C + 2 * B * M * C * C + B * K * Nq * M * C
                 + iters * B * K * Nq * M * M
                 + B * K * Nq * M * C + B * K * Nq * C * C)
    transcendentals = iters * B * K * 2 * (Nq * M + M)
    bytes_accessed = 4 * (xq.size + xk.size + xv.size + 4 * C * C + C
                          + B * K * Nq * C + B * K * M)
    cost = pl.CostEstimate(flops=int(flops), transcendentals=int(transcendentals),
                           bytes_accessed=int(bytes_accessed))

    x_flat, attn_flat = pl.pallas_call(
        attention_ot_kernel,
        out_shape=(
            jax.ShapeDtypeStruct((G, Gk * Nq, C), out_dtype),
            jax.ShapeDtypeStruct((G, 1, L), out_dtype),
        ),
        grid_spec=pltpu.PrefetchScalarGridSpec(
            num_scalar_prefetch=0,
            grid=(G,),
            in_specs=[
                pl.BlockSpec((Gk, Nq, C), lambda i: (i, 0, 0)),   # xq (group-major)
                pl.BlockSpec((Bg, M, C),  lambda i: (i, 0, 0)),   # xk
                pl.BlockSpec((Bg, M, C),  lambda i: (i, 0, 0)),   # xv
                pl.BlockSpec((C, C),      lambda i: (0, 0)),      # Wq^T
                pl.BlockSpec((C, C),      lambda i: (0, 0)),      # Wk^T
                pl.BlockSpec((C, C),      lambda i: (0, 0)),      # Wv^T
                pl.BlockSpec((C, C),      lambda i: (0, 0)),      # Wproj^T
                pl.BlockSpec((1, C),      lambda i: (0, 0)),      # bproj
                pl.BlockSpec((L, L),      lambda i: (0, 0)),      # segmented-sum ones
            ],
            out_specs=[
                pl.BlockSpec((None, Gk * Nq, C), lambda i: (i, 0, 0)),  # x slab
                pl.BlockSpec((None, 1, L),       lambda i: (i, 0, 0)),  # attn_save row
            ],
        ),
        compiler_params=pltpu.CompilerParams(
            dimension_semantics=("parallel",)),
        cost_estimate=cost,
    )(xq_g, xk, xv, wqt, wkt, wvt, wpt, bp2, seg)

    x = x_flat.reshape(B, K, Nq, C).transpose(1, 2, 0, 3)           # (K, Nq, B, C)
    attn_save = attn_flat.reshape(B, K, M)
    return x, attn_save


def attention_ot_reference(xq, xk, xv, wq, wk, wv, wp, bp,
                           eps=EPS_OT, max_iter=SINKHORN_MAX_ITERS,
                           thresh=SINKHORN_THRESH):
    """Pure-jnp translation of the PyTorch forward (incl. its early-exit)."""
    hp = jax.lax.Precision.HIGHEST
    Nq, K, B, C = xq.shape
    M = xk.shape[1]
    q = jnp.einsum('nkbc,dc->nkbd', xq, wq, precision=hp)
    k = jnp.einsum('bmc,dc->bmd', xk, wk, precision=hp)
    v = jnp.einsum('bmc,dc->bmd', xv, wv, precision=hp)
    q = q / jnp.maximum(jnp.sqrt(jnp.sum(q * q, -1, keepdims=True)), 1e-12)
    k = k / jnp.maximum(jnp.sqrt(jnp.sum(k * k, -1, keepdims=True)), 1e-12)
    sim = jnp.einsum('bmc,nkbc->bnkm', k, q, precision=hp)
    sim = jnp.transpose(sim, (0, 2, 3, 1)).reshape(B * K, M, Nq)
    wdist = 1.0 - sim
    log_mu = jnp.log(jnp.full((B * K, M), 1.0 / M) + 1e-8)
    log_nu = jnp.log(jnp.full((B * K, Nq), 1.0 / Nq) + 1e-8)

    def lse(x, axis):
        mx = jnp.max(x, axis=axis, keepdims=True)
        return jnp.squeeze(
            mx + jnp.log(jnp.sum(jnp.exp(x - mx), axis=axis, keepdims=True)), axis)

    def kern(u, vv):
        return (-wdist + u[:, :, None] + vv[:, None, :]) / eps

    def body(carry):
        i, _, u, vv = carry
        u0 = u
        u = eps * (log_mu - lse(kern(u, vv), 2)) + u
        vv = eps * (log_nu - lse(kern(u, vv), 1)) + vv
        err = jnp.mean(jnp.abs(u - u0))
        return i + 1, err, u, vv

    def cond(carry):
        i, err, _, _ = carry
        return jnp.logical_and(i < max_iter, err >= thresh)

    u0 = jnp.zeros((B * K, M), jnp.float32)
    v0 = jnp.zeros((B * K, Nq), jnp.float32)
    _, _, u, vv = jax.lax.while_loop(
        cond, body, (jnp.int32(0), jnp.float32(jnp.inf), u0, v0))
    T = jnp.exp(kern(u, vv))                                          # (BK, M, Nq)
    attn_save = (M * Nq * sim * T).reshape(B, K, M, Nq).sum(-1)       # (B, K, M)
    attn = jnp.transpose(T.reshape(B, K, M, Nq), (3, 0, 1, 2))        # (Nq, B, K, M)
    x = jnp.einsum('nbkm,bmc->knbc', attn, v, precision=hp)
    x = jnp.einsum('knbc,dc->knbd', x, wp, precision=hp) + bp
    return x, attn_save


if __name__ == "__main__":
    # Small shapes consistent with the forward: xq (Nq, K, B, C), xk/xv (B, M, C)
    Nq, K, B, C, M = 8, 4, 2, 32, 16

    key = jax.random.PRNGKey(0)
    kxq, kxk, kxv, kq, kk_, kv, kp, kb = jax.random.split(key, 8)

    xq = jax.random.normal(kxq, (Nq, K, B, C), jnp.float32)
    xk = jax.random.normal(kxk, (B, M, C), jnp.float32)
    xv = jax.random.normal(kxv, (B, M, C), jnp.float32)

    scale = 1.0 / math.sqrt(C)
    wq = jax.random.normal(kq, (C, C), jnp.float32) * scale
    wk = jax.random.normal(kk_, (C, C), jnp.float32) * scale
    wv = jax.random.normal(kv, (C, C), jnp.float32) * scale
    wp = jax.random.normal(kp, (C, C), jnp.float32) * scale
    bp = jax.random.normal(kb, (C,), jnp.float32) * 0.01

    x_out, attn_save = attention_ot(xq, xk, xv, wq, wk, wv, wp, bp)
    jax.block_until_ready((x_out, attn_save))

    assert x_out.shape == (K, Nq, B, C)
    assert attn_save.shape == (B, K, M)
    assert bool(jnp.all(jnp.isfinite(x_out))) and bool(jnp.all(jnp.isfinite(attn_save)))

    # Cross-check against the pure-jnp reference of the PyTorch forward.
    x_ref, attn_ref = attention_ot_reference(xq, xk, xv, wq, wk, wv, wp, bp)
    assert bool(jnp.allclose(x_out, x_ref, rtol=3e-3, atol=3e-3)), \
        float(jnp.max(jnp.abs(x_out - x_ref)))
    assert bool(jnp.allclose(attn_save, attn_ref, rtol=3e-3, atol=3e-3)), \
        float(jnp.max(jnp.abs(attn_save - attn_ref)))

    print("KERNEL_OK")
</pallas_src>

<mosaic_0001>
module attributes {stable_mosaic.version = 11 : i64} {
  func.func @attention_ot_kernel(%arg0: i32, %arg1: memref<8x8x32xf32, #tpu.memory_space<vmem>>, %arg2: memref<2x16x32xf32, #tpu.memory_space<vmem>>, %arg3: memref<2x16x32xf32, #tpu.memory_space<vmem>>, %arg4: memref<32x32xf32, #tpu.memory_space<vmem>>, %arg5: memref<32x32xf32, #tpu.memory_space<vmem>>, %arg6: memref<32x32xf32, #tpu.memory_space<vmem>>, %arg7: memref<32x32xf32, #tpu.memory_space<vmem>>, %arg8: memref<1x32xf32, #tpu.memory_space<vmem>>, %arg9: memref<128x128xf32, #tpu.memory_space<vmem>>, %arg10: memref<1x64x32xf32, #tpu.memory_space<vmem>>, %arg11: memref<1x1x128xf32, #tpu.memory_space<vmem>>) attributes {dimension_semantics = [#tpu.dimension_semantics<parallel>], iteration_bounds = array<i64: 1>, scalar_prefetch = 0 : i64, scratch_operands = 0 : i64, tpu.core_type = #tpu.core_type<tc>, window_params = [{transform_indices = @transform_0, window_bounds = array<i64: 8, 8, 32>}, {transform_indices = @transform_1, window_bounds = array<i64: 2, 16, 32>}, {transform_indices = @transform_2, window_bounds = array<i64: 2, 16, 32>}, {pipeline_mode = #tpu.pipeline_mode<synchronous>, transform_indices = @transform_3, window_bounds = array<i64: 32, 32>}, {pipeline_mode = #tpu.pipeline_mode<synchronous>, transform_indices = @transform_4, window_bounds = array<i64: 32, 32>}, {pipeline_mode = #tpu.pipeline_mode<synchronous>, transform_indices = @transform_5, window_bounds = array<i64: 32, 32>}, {pipeline_mode = #tpu.pipeline_mode<synchronous>, transform_indices = @transform_6, window_bounds = array<i64: 32, 32>}, {pipeline_mode = #tpu.pipeline_mode<synchronous>, transform_indices = @transform_7, window_bounds = array<i64: 1, 32>}, {pipeline_mode = #tpu.pipeline_mode<synchronous>, transform_indices = @transform_8, window_bounds = array<i64: 128, 128>}, {transform_indices = @transform_9, window_bounds = array<i64: 1, 64, 32>}, {transform_indices = @transform_10, window_bounds = array<i64: 1, 1, 128>}]} {
    %c0 = arith.constant 0 : index
    %c0_0 = arith.constant 0 : index
    %c0_1 = arith.constant 0 : index
    %0 = vector.load %arg1[%c0, %c0_0, %c0_1] : memref<8x8x32xf32, #tpu.memory_space<vmem>>, vector<8x8x32xf32>
    %1 = vector.shape_cast %0 : vector<8x8x32xf32> to vector<64x32xf32>
    %c0_2 = arith.constant 0 : index
    %c0_3 = arith.constant 0 : index
    %2 = vector.load %arg4[%c0_2, %c0_3] : memref<32x32xf32, #tpu.memory_space<vmem>>, vector<32x32xf32>
    %cst = arith.constant dense<0.000000e+00> : vector<64x32xf32>
    %3 = tpu.matmul %1, %2, %cst {dimension_numbers = #tpu.dot_dimension_numbers<[1], [0], [0], [1], [0, 0, 1, 1], [], []>} : vector<64x32xf32>, vector<32x32xf32>, vector<64x32xf32> -> vector<64x32xf32>
    %c0_4 = arith.constant 0 : index
    %c0_5 = arith.constant 0 : index
    %c0_6 = arith.constant 0 : index
    %4 = vector.load %arg2[%c0_4, %c0_5, %c0_6] : memref<2x16x32xf32, #tpu.memory_space<vmem>>, vector<2x16x32xf32>
    %5 = vector.shape_cast %4 : vector<2x16x32xf32> to vector<32x32xf32>
    %c0_7 = arith.constant 0 : index
    %c0_8 = arith.constant 0 : index
    %6 = vector.load %arg5[%c0_7, %c0_8] : memref<32x32xf32, #tpu.memory_space<vmem>>, vector<32x32xf32>
    %cst_9 = arith.constant dense<0.000000e+00> : vector<32x32xf32>
    %7 = tpu.matmul %5, %6, %cst_9 {dimension_numbers = #tpu.dot_dimension_numbers<[1], [0], [0], [1], [0, 0, 1, 1], [], []>} : vector<32x32xf32>, vector<32x32xf32>, vector<32x32xf32> -> vector<32x32xf32>
    %c0_10 = arith.constant 0 : index
    %c0_11 = arith.constant 0 : index
    %c0_12 = arith.constant 0 : index
    %8 = vector.load %arg3[%c0_10, %c0_11, %c0_12] : memref<2x16x32xf32, #tpu.memory_space<vmem>>, vector<2x16x32xf32>
    %9 = vector.shape_cast %8 : vector<2x16x32xf32> to vector<32x32xf32>
    %c0_13 = arith.constant 0 : index
    %c0_14 = arith.constant 0 : index
    %10 = vector.load %arg6[%c0_13, %c0_14] : memref<32x32xf32, #tpu.memory_space<vmem>>, vector<32x32xf32>
    %cst_15 = arith.constant dense<0.000000e+00> : vector<32x32xf32>
    %11 = tpu.matmul %9, %10, %cst_15 {dimension_numbers = #tpu.dot_dimension_numbers<[1], [0], [0], [1], [0, 0, 1, 1], [], []>} : vector<32x32xf32>, vector<32x32xf32>, vector<32x32xf32> -> vector<32x32xf32>
    %12 = arith.mulf %3, %3 : vector<64x32xf32>
    %cst_16 = arith.constant dense<0.000000e+00> : vector<64xf32>
    %13 = vector.multi_reduction <add>, %12, %cst_16 [1] : vector<64x32xf32> to vector<64xf32>
    %14 = vector.shape_cast %13 : vector<64xf32> to vector<64x1xf32>
    %cst_17 = arith.constant 1.000000e-24 : f32
    %15 = vector.broadcast %cst_17 : f32 to vector<64x1xf32>
    %16 = arith.maximumf %14, %15 : vector<64x1xf32>
    %17 = math.rsqrt %16 : vector<64x1xf32>
    %18 = vector.broadcast %17 : vector<64x1xf32> to vector<64x32xf32>
    %19 = arith.mulf %3, %18 : vector<64x32xf32>
    %20 = arith.mulf %7, %7 : vector<32x32xf32>
    %cst_18 = arith.constant dense<0.000000e+00> : vector<32xf32>
    %21 = vector.multi_reduction <add>, %20, %cst_18 [1] : vector<32x32xf32> to vector<32xf32>
    %22 = vector.shape_cast %21 : vector<32xf32> to vector<32x1xf32>
    %cst_19 = arith.constant 1.000000e-24 : f32
    %23 = vector.broadcast %cst_19 : f32 to vector<32x1xf32>
    %24 = arith.maximumf %22, %23 : vector<32x1xf32>
    %25 = math.rsqrt %24 : vector<32x1xf32>
    %26 = vector.broadcast %25 : vector<32x1xf32> to vector<32x32xf32>
    %27 = arith.mulf %7, %26 : vector<32x32xf32>
    %28 = vector.extract_strided_slice %27 {offsets = [0, 0], sizes = [16, 32], strides = [1, 1]} : vector<32x32xf32> to vector<16x32xf32>
    %29 = vector.extract_strided_slice %19 {offsets = [0, 0], sizes = [8, 32], strides = [1, 1]} : vector<64x32xf32> to vector<8x32xf32>
    %cst_20 = arith.constant dense<0.000000e+00> : vector<8x16xf32>
    %30 = tpu.matmul %29, %28, %cst_20 {dimension_numbers = #tpu.dot_dimension_numbers<[1], [1], [0], [0], [0, 0, 1, 0], [], []>} : vector<8x32xf32>, vector<16x32xf32>, vector<8x16xf32> -> vector<8x16xf32>
    %31 = vector.extract_strided_slice %19 {offsets = [8, 0], sizes = [8, 32], strides = [1, 1]} : vector<64x32xf32> to vector<8x32xf32>
    %cst_21 = arith.constant dense<0.000000e+00> : vector<8x16xf32>
    %32 = tpu.matmul %31, %28, %cst_21 {dimension_numbers = #tpu.dot_dimension_numbers<[1], [1], [0], [0], [0, 0, 1, 0], [], []>} : vector<8x32xf32>, vector<16x32xf32>, vector<8x16xf32> -> vector<8x16xf32>
    %33 = vector.extract_strided_slice %19 {offsets = [16, 0], sizes = [8, 32], strides = [1, 1]} : vector<64x32xf32> to vector<8x32xf32>
    %cst_22 = arith.constant dense<0.000000e+00> : vector<8x16xf32>
    %34 = tpu.matmul %33, %28, %cst_22 {dimension_numbers = #tpu.dot_dimension_numbers<[1], [1], [0], [0], [0, 0, 1, 0], [], []>} : vector<8x32xf32>, vector<16x32xf32>, vector<8x16xf32> -> vector<8x16xf32>
    %35 = vector.extract_strided_slice %19 {offsets = [24, 0], sizes = [8, 32], strides = [1, 1]} : vector<64x32xf32> to vector<8x32xf32>
    %cst_23 = arith.constant dense<0.000000e+00> : vector<8x16xf32>
    %36 = tpu.matmul %35, %28, %cst_23 {dimension_numbers = #tpu.dot_dimension_numbers<[1], [1], [0], [0], [0, 0, 1, 0], [], []>} : vector<8x32xf32>, vector<16x32xf32>, vector<8x16xf32> -> vector<8x16xf32>
    %37 = vector.extract_strided_slice %27 {offsets = [16, 0], sizes = [16, 32], strides = [1, 1]} : vector<32x32xf32> to vector<16x32xf32>
    %38 = vector.extract_strided_slice %19 {offsets = [32, 0], sizes = [8, 32], strides = [1, 1]} : vector<64x32xf32> to vector<8x32xf32>
    %cst_24 = arith.constant dense<0.000000e+00> : vector<8x16xf32>
    %39 = tpu.matmul %38, %37, %cst_24 {dimension_numbers = #tpu.dot_dimension_numbers<[1], [1], [0], [0], [0, 0, 1, 0], [], []>} : vector<8x32xf32>, vector<16x32xf32>, vector<8x16xf32> -> vector<8x16xf32>
    %40 = vector.extract_strided_slice %19 {offsets = [40, 0], sizes = [8, 32], strides = [1, 1]} : vector<64x32xf32> to vector<8x32xf32>
    %cst_25 = arith.constant dense<0.000000e+00> : vector<8x16xf32>
    %41 = tpu.matmul %40, %37, %cst_25 {dimension_numbers = #tpu.dot_dimension_numbers<[1], [1], [0], [0], [0, 0, 1, 0], [], []>} : vector<8x32xf32>, vector<16x32xf32>, vector<8x16xf32> -> vector<8x16xf32>
    %42 = vector.extract_strided_slice %19 {offsets = [48, 0], sizes = [8, 32], strides = [1, 1]} : vector<64x32xf32> to vector<8x32xf32>
    %cst_26 = arith.constant dense<0.000000e+00> : vector<8x16xf32>
    %43 = tpu.matmul %42, %37, %cst_26 {dimension_numbers = #tpu.dot_dimension_numbers<[1], [1], [0], [0], [0, 0, 1, 0], [], []>} : vector<8x32xf32>, vector<16x32xf32>, vector<8x16xf32> -> vector<8x16xf32>
    %44 = vector.extract_strided_slice %19 {offsets = [56, 0], sizes = [8, 32], strides = [1, 1]} : vector<64x32xf32> to vector<8x32xf32>
    %cst_27 = arith.constant dense<0.000000e+00> : vector<8x16xf32>
    %45 = tpu.matmul %44, %37, %cst_27 {dimension_numbers = #tpu.dot_dimension_numbers<[1], [1], [0], [0], [0, 0, 1, 0], [], []>} : vector<8x32xf32>, vector<16x32xf32>, vector<8x16xf32> -> vector<8x16xf32>
    %46 = tpu.concatenate %30, %32, %34, %36, %39, %41, %43, %45 in 1 : vector<8x16xf32>, vector<8x16xf32>, vector<8x16xf32>, vector<8x16xf32>, vector<8x16xf32>, vector<8x16xf32>, vector<8x16xf32>, vector<8x16xf32> -> vector<8x128xf32>
    %c0_28 = arith.constant 0 : index
    %c0_29 = arith.constant 0 : index
    %47 = vector.load %arg9[%c0_28, %c0_29] : memref<128x128xf32, #tpu.memory_space<vmem>>, vector<128x128xf32>
    %cst_30 = arith.constant 1.000000e+00 : f32
    %48 = vector.broadcast %cst_30 : f32 to vector<8x128xf32>
    %49 = arith.subf %46, %48 : vector<8x128xf32>
    %cst_31 = arith.constant 2.000000e+01 : f32
    %50 = vector.broadcast %cst_31 : f32 to vector<8x128xf32>
    %51 = arith.mulf %49, %50 : vector<8x128xf32>
    %c0_i32 = arith.constant 0 : i32
    %cst_32 = arith.constant 0x7F800000 : f32
    %52:3 = scf.while (%arg12 = %c0_i32, %arg13 = %cst_32, %arg14 = %51) : (i32, f32, vector<8x128xf32>) -> (i32, f32, vector<8x128xf32>) {
      %c10_i32 = arith.constant 10 : i32
      %89 = arith.cmpi slt, %arg12, %c10_i32 : i32
      %cst_54 = arith.constant 9.99999997E-7 : f32
      %90 = arith.cmpf oge, %arg13, %cst_54 : f32
      %91 = arith.andi %89, %90 : i1
      scf.condition(%91) %arg12, %arg13, %arg14 : i32, f32, vector<8x128xf32>
    } do {
    ^bb0(%arg12: i32, %arg13: f32, %arg14: vector<8x128xf32>):
      %89 = math.exp %arg14 : vector<8x128xf32>
      %cst_54 = arith.constant dense<0.000000e+00> : vector<128xf32>
      %90 = vector.multi_reduction <add>, %89, %cst_54 [0] : vector<8x128xf32> to vector<128xf32>
      %91 = vector.shape_cast %90 : vector<128xf32> to vector<1x128xf32>
      %92 = math.log %91 : vector<1x128xf32>
      %cst_55 = arith.constant -2.77258849 : f32
      %93 = vector.broadcast %cst_55 : f32 to vector<1x128xf32>
      %94 = arith.subf %93, %92 : vector<1x128xf32>
      %95 = vector.broadcast %94 : vector<1x128xf32> to vector<8x128xf32>
      %96 = arith.addf %arg14, %95 : vector<8x128xf32>
      %97 = math.exp %96 : vector<8x128xf32>
      %cst_56 = arith.constant dense<0.000000e+00> : vector<8x128xf32>
      %98 = tpu.matmul %97, %47, %cst_56 {dimension_numbers = #tpu.dot_dimension_numbers<[1], [0], [0], [1], [0, 0, 1, 1], [], []>} : vector<8x128xf32>, vector<128x128xf32>, vector<8x128xf32> -> vector<8x128xf32>
      %99 = math.log %98 : vector<8x128xf32>
      %cst_57 = arith.constant -2.07944155 : f32
      %100 = vector.broadcast %cst_57 : f32 to vector<8x128xf32>
      %101 = arith.subf %100, %99 : vector<8x128xf32>
      %102 = arith.addf %96, %101 : vector<8x128xf32>
      %103 = math.exp %102 : vector<8x128xf32>
      %cst_58 = arith.constant dense<0.000000e+00> : vector<128xf32>
      %104 = vector.multi_reduction <add>, %103, %cst_58 [0] : vector<8x128xf32> to vector<128xf32>
      %105 = vector.shape_cast %104 : vector<128xf32> to vector<1x128xf32>
      %106 = math.log %105 : vector<1x128xf32>
      %cst_59 = arith.constant -2.77258849 : f32
      %107 = vector.broadcast %cst_59 : f32 to vector<1x128xf32>
      %108 = arith.subf %107, %106 : vector<1x128xf32>
      %109 = vector.broadcast %108 : vector<1x128xf32> to vector<8x128xf32>
      %110 = arith.addf %102, %109 : vector<8x128xf32>
      %111 = math.exp %110 : vector<8x128xf32>
      %cst_60 = arith.constant dense<0.000000e+00> : vector<8x128xf32>
      %112 = tpu.matmul %111, %47, %cst_60 {dimension_numbers = #tpu.dot_dimension_numbers<[1], [0], [0], [1], [0, 0, 1, 1], [], []>} : vector<8x128xf32>, vector<128x128xf32>, vector<8x128xf32> -> vector<8x128xf32>
      %113 = math.log %112 : vector<8x128xf32>
      %cst_61 = arith.constant -2.07944155 : f32
      %114 = vector.broadcast %cst_61 : f32 to vector<8x128xf32>
      %115 = arith.subf %114, %113 : vector<8x128xf32>
      %116 = arith.addf %110, %115 : vector<8x128xf32>
      %117 = math.exp %116 : vector<8x128xf32>
      %cst_62 = arith.constant dense<0.000000e+00> : vector<128xf32>
      %118 = vector.multi_reduction <add>, %117, %cst_62 [0] : vector<8x128xf32> to vector<128xf32>
      %119 = vector.shape_cast %118 : vector<128xf32> to vector<1x128xf32>
      %120 = math.log %119 : vector<1x128xf32>
      %cst_63 = arith.constant -2.77258849 : f32
      %121 = vector.broadcast %cst_63 : f32 to vector<1x128xf32>
      %122 = arith.subf %121, %120 : vector<1x128xf32>
      %123 = vector.broadcast %122 : vector<1x128xf32> to vector<8x128xf32>
      %124 = arith.addf %116, %123 : vector<8x128xf32>
      %125 = math.exp %124 : vector<8x128xf32>
      %cst_64 = arith.constant dense<0.000000e+00> : vector<8x128xf32>
      %126 = tpu.matmul %125, %47, %cst_64 {dimension_numbers = #tpu.dot_dimension_numbers<[1], [0], [0], [1], [0, 0, 1, 1], [], []>} : vector<8x128xf32>, vector<128x128xf32>, vector<8x128xf32> -> vector<8x128xf32>
      %127 = math.log %126 : vector<8x128xf32>
      %cst_65 = arith.constant -2.07944155 : f32
      %128 = vector.broadcast %cst_65 : f32 to vector<8x128xf32>
      %129 = arith.subf %128, %127 : vector<8x128xf32>
      %130 = arith.addf %124, %129 : vector<8x128xf32>
      %131 = math.exp %130 : vector<8x128xf32>
      %cst_66 = arith.constant dense<0.000000e+00> : vector<128xf32>
      %132 = vector.multi_reduction <add>, %131, %cst_66 [0] : vector<8x128xf32> to vector<128xf32>
      %133 = vector.shape_cast %132 : vector<128xf32> to vector<1x128xf32>
      %134 = math.log %133 : vector<1x128xf32>
      %cst_67 = arith.constant -2.77258849 : f32
      %135 = vector.broadcast %cst_67 : f32 to vector<1x128xf32>
      %136 = arith.subf %135, %134 : vector<1x128xf32>
      %137 = vector.broadcast %136 : vector<1x128xf32> to vector<8x128xf32>
      %138 = arith.addf %130, %137 : vector<8x128xf32>
      %139 = math.exp %138 : vector<8x128xf32>
      %cst_68 = arith.constant dense<0.000000e+00> : vector<8x128xf32>
      %140 = tpu.matmul %139, %47, %cst_68 {dimension_numbers = #tpu.dot_dimension_numbers<[1], [0], [0], [1], [0, 0, 1, 1], [], []>} : vector<8x128xf32>, vector<128x128xf32>, vector<8x128xf32> -> vector<8x128xf32>
      %141 = math.log %140 : vector<8x128xf32>
      %cst_69 = arith.constant -2.07944155 : f32
      %142 = vector.broadcast %cst_69 : f32 to vector<8x128xf32>
      %143 = arith.subf %142, %141 : vector<8x128xf32>
      %144 = arith.addf %138, %143 : vector<8x128xf32>
      %145 = math.exp %144 : vector<8x128xf32>
      %cst_70 = arith.constant dense<0.000000e+00> : vector<128xf32>
      %146 = vector.multi_reduction <add>, %145, %cst_70 [0] : vector<8x128xf32> to vector<128xf32>
      %147 = vector.shape_cast %146 : vector<128xf32> to vector<1x128xf32>
      %148 = math.log %147 : vector<1x128xf32>
      %cst_71 = arith.constant -2.77258849 : f32
      %149 = vector.broadcast %cst_71 : f32 to vector<1x128xf32>
      %150 = arith.subf %149, %148 : vector<1x128xf32>
      %151 = vector.broadcast %150 : vector<1x128xf32> to vector<8x128xf32>
      %152 = arith.addf %144, %151 : vector<8x128xf32>
      %153 = math.exp %152 : vector<8x128xf32>
      %cst_72 = arith.constant dense<0.000000e+00> : vector<8x128xf32>
      %154 = tpu.matmul %153, %47, %cst_72 {dimension_numbers = #tpu.dot_dimension_numbers<[1], [0], [0], [1], [0, 0, 1, 1], [], []>} : vector<8x128xf32>, vector<128x128xf32>, vector<8x128xf32> -> vector<8x128xf32>
      %155 = math.log %154 : vector<8x128xf32>
      %cst_73 = arith.constant -2.07944155 : f32
      %156 = vector.broadcast %cst_73 : f32 to vector<8x128xf32>
      %157 = arith.subf %156, %155 : vector<8x128xf32>
      %158 = arith.addf %152, %157 : vector<8x128xf32>
      %159 = math.exp %158 : vector<8x128xf32>
      %cst_74 = arith.constant dense<0.000000e+00> : vector<128xf32>
      %160 = vector.multi_reduction <add>, %159, %cst_74 [0] : vector<8x128xf32> to vector<128xf32>
      %161 = vector.shape_cast %160 : vector<128xf32> to vector<1x128xf32>
      %162 = math.log %161 : vector<1x128xf32>
      %cst_75 = arith.constant -2.77258849 : f32
      %163 = vector.broadcast %cst_75 : f32 to vector<1x128xf32>
      %164 = arith.subf %163, %162 : vector<1x128xf32>
      %165 = vector.broadcast %164 : vector<1x128xf32> to vector<8x128xf32>
      %166 = arith.addf %158, %165 : vector<8x128xf32>
      %167 = math.exp %166 : vector<8x128xf32>
      %cst_76 = arith.constant dense<0.000000e+00> : vector<8x128xf32>
      %168 = tpu.matmul %167, %47, %cst_76 {dimension_numbers = #tpu.dot_dimension_numbers<[1], [0], [0], [1], [0, 0, 1, 1], [], []>} : vector<8x128xf32>, vector<128x128xf32>, vector<8x128xf32> -> vector<8x128xf32>
      %169 = math.log %168 : vector<8x128xf32>
      %cst_77 = arith.constant -2.07944155 : f32
      %170 = vector.broadcast %cst_77 : f32 to vector<8x128xf32>
      %171 = arith.subf %170, %169 : vector<8x128xf32>
      %172 = arith.addf %166, %171 : vector<8x128xf32>
      %173 = math.exp %172 : vector<8x128xf32>
      %cst_78 = arith.constant dense<0.000000e+00> : vector<128xf32>
      %174 = vector.multi_reduction <add>, %173, %cst_78 [0] : vector<8x128xf32> to vector<128xf32>
      %175 = vector.shape_cast %174 : vector<128xf32> to vector<1x128xf32>
      %176 = math.log %175 : vector<1x128xf32>
      %cst_79 = arith.constant -2.77258849 : f32
      %177 = vector.broadcast %cst_79 : f32 to vector<1x128xf32>
      %178 = arith.subf %177, %176 : vector<1x128xf32>
      %179 = vector.broadcast %178 : vector<1x128xf32> to vector<8x128xf32>
      %180 = arith.addf %172, %179 : vector<8x128xf32>
      %181 = math.exp %180 : vector<8x128xf32>
      %cst_80 = arith.constant dense<0.000000e+00> : vector<8x128xf32>
      %182 = tpu.matmul %181, %47, %cst_80 {dimension_numbers = #tpu.dot_dimension_numbers<[1], [0], [0], [1], [0, 0, 1, 1], [], []>} : vector<8x128xf32>, vector<128x128xf32>, vector<8x128xf32> -> vector<8x128xf32>
      %183 = math.log %182 : vector<8x128xf32>
      %cst_81 = arith.constant -2.07944155 : f32
      %184 = vector.broadcast %cst_81 : f32 to vector<8x128xf32>
      %185 = arith.subf %184, %183 : vector<8x128xf32>
      %186 = arith.addf %180, %185 : vector<8x128xf32>
      %187 = math.exp %186 : vector<8x128xf32>
      %cst_82 = arith.constant dense<0.000000e+00> : vector<128xf32>
      %188 = vector.multi_reduction <add>, %187, %cst_82 [0] : vector<8x128xf32> to vector<128xf32>
      %189 = vector.shape_cast %188 : vector<128xf32> to vector<1x128xf32>
      %190 = math.log %189 : vector<1x128xf32>
      %cst_83 = arith.constant -2.77258849 : f32
      %191 = vector.broadcast %cst_83 : f32 to vector<1x128xf32>
      %192 = arith.subf %191, %190 : vector<1x128xf32>
      %193 = vector.broadcast %192 : vector<1x128xf32> to vector<8x128xf32>
      %194 = arith.addf %186, %193 : vector<8x128xf32>
      %195 = math.exp %194 : vector<8x128xf32>
      %cst_84 = arith.constant dense<0.000000e+00> : vector<8x128xf32>
      %196 = tpu.matmul %195, %47, %cst_84 {dimension_numbers = #tpu.dot_dimension_numbers<[1], [0], [0], [1], [0, 0, 1, 1], [], []>} : vector<8x128xf32>, vector<128x128xf32>, vector<8x128xf32> -> vector<8x128xf32>
      %197 = math.log %196 : vector<8x128xf32>
      %cst_85 = arith.constant -2.07944155 : f32
      %198 = vector.broadcast %cst_85 : f32 to vector<8x128xf32>
      %199 = arith.subf %198, %197 : vector<8x128xf32>
      %200 = arith.addf %194, %199 : vector<8x128xf32>
      %201 = math.exp %200 : vector<8x128xf32>
      %cst_86 = arith.constant dense<0.000000e+00> : vector<128xf32>
      %202 = vector.multi_reduction <add>, %201, %cst_86 [0] : vector<8x128xf32> to vector<128xf32>
      %203 = vector.shape_cast %202 : vector<128xf32> to vector<1x128xf32>
      %204 = math.log %203 : vector<1x128xf32>
      %cst_87 = arith.constant -2.77258849 : f32
      %205 = vector.broadcast %cst_87 : f32 to vector<1x128xf32>
      %206 = arith.subf %205, %204 : vector<1x128xf32>
      %207 = vector.broadcast %206 : vector<1x128xf32> to vector<8x128xf32>
      %208 = arith.addf %200, %207 : vector<8x128xf32>
      %209 = math.exp %208 : vector<8x128xf32>
      %cst_88 = arith.constant dense<0.000000e+00> : vector<8x128xf32>
      %210 = tpu.matmul %209, %47, %cst_88 {dimension_numbers = #tpu.dot_dimension_numbers<[1], [0], [0], [1], [0, 0, 1, 1], [], []>} : vector<8x128xf32>, vector<128x128xf32>, vector<8x128xf32> -> vector<8x128xf32>
      %211 = math.log %210 : vector<8x128xf32>
      %cst_89 = arith.constant -2.07944155 : f32
      %212 = vector.broadcast %cst_89 : f32 to vector<8x128xf32>
      %213 = arith.subf %212, %211 : vector<8x128xf32>
      %214 = arith.addf %208, %213 : vector<8x128xf32>
      %215 = math.exp %214 : vector<8x128xf32>
      %cst_90 = arith.constant dense<0.000000e+00> : vector<128xf32>
      %216 = vector.multi_reduction <add>, %215, %cst_90 [0] : vector<8x128xf32> to vector<128xf32>
      %217 = vector.shape_cast %216 : vector<128xf32> to vector<1x128xf32>
      %218 = math.log %217 : vector<1x128xf32>
      %cst_91 = arith.constant -2.77258849 : f32
      %219 = vector.broadcast %cst_91 : f32 to vector<1x128xf32>
      %220 = arith.subf %219, %218 : vector<1x128xf32>
      %221 = vector.broadcast %220 : vector<1x128xf32> to vector<8x128xf32>
      %222 = arith.addf %214, %221 : vector<8x128xf32>
      %223 = math.exp %222 : vector<8x128xf32>
      %cst_92 = arith.constant dense<0.000000e+00> : vector<8x128xf32>
      %224 = tpu.matmul %223, %47, %cst_92 {dimension_numbers = #tpu.dot_dimension_numbers<[1], [0], [0], [1], [0, 0, 1, 1], [], []>} : vector<8x128xf32>, vector<128x128xf32>, vector<8x128xf32> -> vector<8x128xf32>
      %225 = math.log %224 : vector<8x128xf32>
      %cst_93 = arith.constant -2.07944155 : f32
      %226 = vector.broadcast %cst_93 : f32 to vector<8x128xf32>
      %227 = arith.subf %226, %225 : vector<8x128xf32>
      %228 = arith.addf %222, %227 : vector<8x128xf32>
      %229 = math.absf %220 : vector<1x128xf32>
      %230 = vector.shape_cast %229 : vector<1x128xf32> to vector<1x1x128xf32>
      %cst_94 = arith.constant dense<0.000000e+00> : vector<1xf32>
      %231 = vector.multi_reduction <add>, %230, %cst_94 [1, 2] : vector<1x1x128xf32> to vector<1xf32>
      %232 = vector.shape_cast %231 : vector<1xf32> to vector<1x1x1xf32>
      %233 = vector.extract %232[0, 0, 0] : f32 from vector<1x1x1xf32>
      %cst_95 = arith.constant 1.280000e+02 : f32
      %234 = arith.divf %233, %cst_95 : f32
      %cst_96 = arith.constant 5.000000e-02 : f32
      %235 = arith.mulf %cst_96, %234 : f32
      %c1_i32 = arith.constant 1 : i32
      %236 = arith.addi %arg12, %c1_i32 : i32
      scf.yield %236, %235, %228 : i32, f32, vector<8x128xf32>
    }
    %53 = math.exp %52#2 : vector<8x128xf32>
    %cst_33 = arith.constant 1.280000e+02 : f32
    %54 = vector.broadcast %cst_33 : f32 to vector<8x128xf32>
    %55 = arith.mulf %54, %46 : vector<8x128xf32>
    %56 = arith.mulf %55, %53 : vector<8x128xf32>
    %cst_34 = arith.constant dense<0.000000e+00> : vector<128xf32>
    %57 = vector.multi_reduction <add>, %56, %cst_34 [0] : vector<8x128xf32> to vector<128xf32>
    %58 = vector.shape_cast %57 : vector<128xf32> to vector<1x128xf32>
    %c0_35 = arith.constant 0 : index
    %c0_36 = arith.constant 0 : index
    %c0_37 = arith.constant 0 : index
    %59 = vector.load %arg11[%c0_35, %c0_36, %c0_37] : memref<1x1x128xf32, #tpu.memory_space<vmem>>, vector<1x1x128xf32>
    %60 = vector.shape_cast %59 : vector<1x1x128xf32> to vector<1x128xf32>
    %61 = vector.shape_cast %58 : vector<1x128xf32> to vector<1x1x128xf32>
    tpu.vector_store %arg11[%c0_35, %c0_36, %c0_37], %61 {strides = array<i32>} : memref<1x1x128xf32, #tpu.memory_space<vmem>>, vector<1x1x128xf32>,
    %62 = vector.extract_strided_slice %11 {offsets = [0, 0], sizes = [16, 32], strides = [1, 1]} : vector<32x32xf32> to vector<16x32xf32>
    %63 = vector.extract_strided_slice %53 {offsets = [0, 0], sizes = [8, 16], strides = [1, 1]} : vector<8x128xf32> to vector<8x16xf32>
    %cst_38 = arith.constant dense<0.000000e+00> : vector<8x32xf32>
    %64 = tpu.matmul %63, %62, %cst_38 {dimension_numbers = #tpu.dot_dimension_numbers<[1], [0], [0], [1], [0, 0, 1, 1], [], []>} : vector<8x16xf32>, vector<16x32xf32>, vector<8x32xf32> -> vector<8x32xf32>
    %65 = vector.extract_strided_slice %53 {offsets = [0, 16], sizes = [8, 16], strides = [1, 1]} : vector<8x128xf32> to vector<8x16xf32>
    %cst_39 = arith.constant dense<0.000000e+00> : vector<8x32xf32>
    %66 = tpu.matmul %65, %62, %cst_39 {dimension_numbers = #tpu.dot_dimension_numbers<[1], [0], [0], [1], [0, 0, 1, 1], [], []>} : vector<8x16xf32>, vector<16x32xf32>, vector<8x32xf32> -> vector<8x32xf32>
    %67 = vector.extract_strided_slice %53 {offsets = [0, 32], sizes = [8, 16], strides = [1, 1]} : vector<8x128xf32> to vector<8x16xf32>
    %cst_40 = arith.constant dense<0.000000e+00> : vector<8x32xf32>
    %68 = tpu.matmul %67, %62, %cst_40 {dimension_numbers = #tpu.dot_dimension_numbers<[1], [0], [0], [1], [0, 0, 1, 1], [], []>} : vector<8x16xf32>, vector<16x32xf32>, vector<8x32xf32> -> vector<8x32xf32>
    %69 = vector.extract_strided_slice %53 {offsets = [0, 48], sizes = [8, 16], strides = [1, 1]} : vector<8x128xf32> to vector<8x16xf32>
    %cst_41 = arith.constant dense<0.000000e+00> : vector<8x32xf32>
    %70 = tpu.matmul %69, %62, %cst_41 {dimension_numbers = #tpu.dot_dimension_numbers<[1], [0], [0], [1], [0, 0, 1, 1], [], []>} : vector<8x16xf32>, vector<16x32xf32>, vector<8x32xf32> -> vector<8x32xf32>
    %71 = vector.extract_strided_slice %11 {offsets = [16, 0], sizes = [16, 32], strides = [1, 1]} : vector<32x32xf32> to vector<16x32xf32>
    %72 = vector.extract_strided_slice %53 {offsets = [0, 64], sizes = [8, 16], strides = [1, 1]} : vector<8x128xf32> to vector<8x16xf32>
    %cst_42 = arith.constant dense<0.000000e+00> : vector<8x32xf32>
    %73 = tpu.matmul %72, %71, %cst_42 {dimension_numbers = #tpu.dot_dimension_numbers<[1], [0], [0], [1], [0, 0, 1, 1], [], []>} : vector<8x16xf32>, vector<16x32xf32>, vector<8x32xf32> -> vector<8x32xf32>
    %74 = vector.extract_strided_slice %53 {offsets = [0, 80], sizes = [8, 16], strides = [1, 1]} : vector<8x128xf32> to vector<8x16xf32>
    %cst_43 = arith.constant dense<0.000000e+00> : vector<8x32xf32>
    %75 = tpu.matmul %74, %71, %cst_43 {dimension_numbers = #tpu.dot_dimension_numbers<[1], [0], [0], [1], [0, 0, 1, 1], [], []>} : vector<8x16xf32>, vector<16x32xf32>, vector<8x32xf32> -> vector<8x32xf32>
    %76 = vector.extract_strided_slice %53 {offsets = [0, 96], sizes = [8, 16], strides = [1, 1]} : vector<8x128xf32> to vector<8x16xf32>
    %cst_44 = arith.constant dense<0.000000e+00> : vector<8x32xf32>
    %77 = tpu.matmul %76, %71, %cst_44 {dimension_numbers = #tpu.dot_dimension_numbers<[1], [0], [0], [1], [0, 0, 1, 1], [], []>} : vector<8x16xf32>, vector<16x32xf32>, vector<8x32xf32> -> vector<8x32xf32>
    %78 = vector.extract_strided_slice %53 {offsets = [0, 112], sizes = [8, 16], strides = [1, 1]} : vector<8x128xf32> to vector<8x16xf32>
    %cst_45 = arith.constant dense<0.000000e+00> : vector<8x32xf32>
    %79 = tpu.matmul %78, %71, %cst_45 {dimension_numbers = #tpu.dot_dimension_numbers<[1], [0], [0], [1], [0, 0, 1, 1], [], []>} : vector<8x16xf32>, vector<16x32xf32>, vector<8x32xf32> -> vector<8x32xf32>
    %80 = tpu.concatenate %64, %66, %68, %70, %73, %75, %77, %79 in 0 : vector<8x32xf32>, vector<8x32xf32>, vector<8x32xf32>, vector<8x32xf32>, vector<8x32xf32>, vector<8x32xf32>, vector<8x32xf32>, vector<8x32xf32> -> vector<64x32xf32>
    %c0_46 = arith.constant 0 : index
    %c0_47 = arith.constant 0 : index
    %81 = vector.load %arg7[%c0_46, %c0_47] : memref<32x32xf32, #tpu.memory_space<vmem>>, vector<32x32xf32>
    %cst_48 = arith.constant dense<0.000000e+00> : vector<64x32xf32>
    %82 = tpu.matmul %80, %81, %cst_48 {dimension_numbers = #tpu.dot_dimension_numbers<[1], [0], [0], [1], [0, 0, 1, 1], [], []>} : vector<64x32xf32>, vector<32x32xf32>, vector<64x32xf32> -> vector<64x32xf32>
    %c0_49 = arith.constant 0 : index
    %c0_50 = arith.constant 0 : index
    %83 = vector.load %arg8[%c0_49, %c0_50] : memref<1x32xf32, #tpu.memory_space<vmem>>, vector<1x32xf32>
    %84 = vector.broadcast %83 : vector<1x32xf32> to vector<64x32xf32>
    %85 = arith.addf %82, %84 : vector<64x32xf32>
    %c0_51 = arith.constant 0 : index
    %c0_52 = arith.constant 0 : index
    %c0_53 = arith.constant 0 : index
    %86 = vector.load %arg10[%c0_51, %c0_52, %c0_53] : memref<1x64x32xf32, #tpu.memory_space<vmem>>, vector<1x64x32xf32>
    %87 = vector.shape_cast %86 : vector<1x64x32xf32> to vector<64x32xf32>
    %88 = vector.shape_cast %85 : vector<64x32xf32> to vector<1x64x32xf32>
    tpu.vector_store %arg10[%c0_51, %c0_52, %c0_53], %88 {strides = array<i32>} : memref<1x64x32xf32, #tpu.memory_space<vmem>>, vector<1x64x32xf32>,
    return
  }
  func.func @transform_0(%arg0: i32) -> (i32, i32, i32) {
    %c0_i32 = arith.constant 0 : i32
    %c0_i32_0 = arith.constant 0 : i32
    %c0_i32_1 = arith.constant 0 : i32
    return %arg0, %c0_i32, %c0_i32_0 : i32, i32, i32
  }
  func.func @transform_1(%arg0: i32) -> (i32, i32, i32) {
    %c0_i32 = arith.constant 0 : i32
    %c0_i32_0 = arith.constant 0 : i32
    %c0_i32_1 = arith.constant 0 : i32
    return %arg0, %c0_i32, %c0_i32_0 : i32, i32, i32
  }
  func.func @transform_2(%arg0: i32) -> (i32, i32, i32) {
    %c0_i32 = arith.constant 0 : i32
    %c0_i32_0 = arith.constant 0 : i32
    %c0_i32_1 = arith.constant 0 : i32
    return %arg0, %c0_i32, %c0_i32_0 : i32, i32, i32
  }
  func.func @transform_3(%arg0: i32) -> (i32, i32) {
    %c0_i32 = arith.constant 0 : i32
    %c0_i32_0 = arith.constant 0 : i32
    %c0_i32_1 = arith.constant 0 : i32
    return %c0_i32, %c0_i32_0 : i32, i32
  }
  func.func @transform_4(%arg0: i32) -> (i32, i32) {
    %c0_i32 = arith.constant 0 : i32
    %c0_i32_0 = arith.constant 0 : i32
    %c0_i32_1 = arith.constant 0 : i32
    return %c0_i32, %c0_i32_0 : i32, i32
  }
  func.func @transform_5(%arg0: i32) -> (i32, i32) {
    %c0_i32 = arith.constant 0 : i32
    %c0_i32_0 = arith.constant 0 : i32
    %c0_i32_1 = arith.constant 0 : i32
    return %c0_i32, %c0_i32_0 : i32, i32
  }
  func.func @transform_6(%arg0: i32) -> (i32, i32) {
    %c0_i32 = arith.constant 0 : i32
    %c0_i32_0 = arith.constant 0 : i32
    %c0_i32_1 = arith.constant 0 : i32
    return %c0_i32, %c0_i32_0 : i32, i32
  }
  func.func @transform_7(%arg0: i32) -> (i32, i32) {
    %c0_i32 = arith.constant 0 : i32
    %c0_i32_0 = arith.constant 0 : i32
    %c0_i32_1 = arith.constant 0 : i32
    return %c0_i32, %c0_i32_0 : i32, i32
  }
  func.func @transform_8(%arg0: i32) -> (i32, i32) {
    %c0_i32 = arith.constant 0 : i32
    %c0_i32_0 = arith.constant 0 : i32
    %c0_i32_1 = arith.constant 0 : i32
    return %c0_i32, %c0_i32_0 : i32, i32
  }
  func.func @transform_9(%arg0: i32) -> (i32, i32, i32) {
    %c0_i32 = arith.constant 0 : i32
    %c0_i32_0 = arith.constant 0 : i32
    %c0_i32_1 = arith.constant 0 : i32
    return %arg0, %c0_i32, %c0_i32_0 : i32, i32, i32
  }
  func.func @transform_10(%arg0: i32) -> (i32, i32, i32) {
    %c0_i32 = arith.constant 0 : i32
    %c0_i32_0 = arith.constant 0 : i32
    %c0_i32_1 = arith.constant 0 : i32
    return %arg0, %c0_i32, %c0_i32_0 : i32, i32, i32
  }
}

</mosaic_0001>

<llo_original>
// kernel: tpu_custom_call.1
$region0: #{tpu_custom_call.1}
  #allocation0 [shape = 'u32[]', space=smem, size = 0x4, offset = 0x4, fixed_abs, tag = 'smem constant byte address 0x4 - core index']
  #allocation1 [shape = 'u32[144,128]{1,0:T(1,128)}', space=vmem, size = 0x12000, scoped, tag = 'internal scratch']
  %s0 = inlined_call_operand.hbm [shape: f32[8,8,32], index: 0, kind: input, shape index: {}]
  %s1 = inlined_call_operand.hbm [shape: f32[2,16,32], index: 1, kind: input, shape index: {}]
  %s2 = inlined_call_operand.hbm [shape: f32[2,16,32], index: 2, kind: input, shape index: {}]
  %s3 = inlined_call_operand.hbm [shape: f32[32,32], index: 3, kind: input, shape index: {}]
  %s4 = inlined_call_operand.hbm [shape: f32[32,32], index: 4, kind: input, shape index: {}]
  %s5 = inlined_call_operand.hbm [shape: f32[32,32], index: 5, kind: input, shape index: {}]
  %s6 = inlined_call_operand.hbm [shape: f32[32,32], index: 6, kind: input, shape index: {}]
  %s7 = inlined_call_operand.vmem [shape: f32[1,32], index: 7, kind: input, shape index: {}]
  %s8 = inlined_call_operand.hbm [shape: f32[128,128], index: 8, kind: input, shape index: {}]
  %s9 = inlined_call_operand.vmem [shape: f32[1,64,32], index: 9, kind: output, shape index: {0}]
  %s10 = inlined_call_operand.hbm [shape: f32[1,1,128], index: 10, kind: output, shape index: {1}]
  %11 = xla_tuple %s9, %s10
  %s12 = sld [smem:[#allocation0]]
  $region93: #{tpu_custom_call.1} parent=0
    _
  %s14 = ssub.s32 1, %s12
  %s15 = scalar_select 0, %s14, %s12
  $region1: #{tpu_custom_call.1} parent=0
    #allocation2 [shape = 'u8[32768]{0}', space=vmem, size = 0x8000, scoped, tag = 'input window, operand 0, single buffered']
    #allocation3 [shape = 's32[1]{0}', space=sflag, size = 0x4, scoped, tag = 'scoped memory for tpu_custom_call.1']
    #allocation4 [shape = 's32[1]{0}', space=sflag, size = 0x4, scoped, tag = 'scoped memory for tpu_custom_call.1']
    #allocation5 [shape = 'u8[16384]{0}', space=vmem, size = 0x4000, scoped, tag = 'input window, operand 1, single buffered']
    #allocation6 [shape = 's32[1]{0}', space=sflag, size = 0x4, scoped, tag = 'scoped memory for tpu_custom_call.1']
    #allocation7 [shape = 'u8[16384]{0}', space=vmem, size = 0x4000, scoped, tag = 'input window, operand 2, single buffered']
    #allocation8 [shape = 'u8[16384]{0}', space=vmem, size = 0x4000, scoped, tag = 'input window, operand 3, single buffered']
    #allocation9 [shape = 's32[1]{0}', space=sflag, size = 0x4, scoped, tag = 'scoped memory for tpu_custom_call.1']
    #allocation10 [shape = 'u8[16384]{0}', space=vmem, size = 0x4000, scoped, tag = 'input window, operand 4, single buffered']
    #allocation11 [shape = 'u8[16384]{0}', space=vmem, size = 0x4000, scoped, tag = 'input window, operand 5, single buffered']
    #allocation12 [shape = 's32[1]{0}', space=sflag, size = 0x4, scoped, tag = 'scoped memory for tpu_custom_call.1']
    #allocation13 [shape = 'u8[16384]{0}', space=vmem, size = 0x4000, scoped, tag = 'input window, operand 6, single buffered']
    #allocation14 [shape = 'u8[65536]{0}', space=vmem, size = 0x10000, scoped, tag = 'input window, operand 8, single buffered']
    #allocation15 [shape = 's32[1]{0}', space=sflag, size = 0x4, scoped, tag = 'scoped memory for tpu_custom_call.1']
    #allocation16 [shape = 'u8[512]{0}', space=vmem, size = 0x400, scoped, tag = 'output window, operand 1, single buffered']
    %16 = vsyncpa [#allocation3], 0
    %17 = vsyncpa [#allocation6], 0
    %18 = vsyncpa [#allocation9], 0
    %19 = vsyncpa [#allocation12], 0
    %20 = vsyncpa [#allocation15], 0
    %21 = vsyncpa [#allocation4], 0
    // Predicated region
    $region2: #{tpu_custom_call.1} parent=1 // pred_check
      _
    $region3: #{tpu_custom_call.1} parent=1 // pred_check_branch
      %23 = sbr.rel (0) target = $region5
    $region4: #{tpu_custom_call.1} parent=1 // pred_region
      %s25 = ssub.s32 1024, 1024
      %26 = vsyncadd [#allocation3], %s25
      %s27 = sshll.u32 [#allocation2], 4
      %s28 = int_to_ptr.vmem [resolvable:$true] %s27
      %33 = dma.hbm_to_vmem [thread:$0]  %s0, 1024, %s28, [#allocation3], 128, 128, 8
    $region5: #{tpu_custom_call.1} parent=1 // pred_fallthru
      _
    // Predicated region
    $region6: #{tpu_custom_call.1} parent=1 // pred_check
      _
    $region7: #{tpu_custom_call.1} parent=1 // pred_check_branch
      %35 = sbr.rel (0) target = $region9
    $region8: #{tpu_custom_call.1} parent=1 // pred_region
      %s37 = ssub.s32 512, 512
      %38 = vsyncadd [#allocation6], %s37
      %s39 = sshll.u32 [#allocation5], 4
      %s40 = int_to_ptr.vmem [resolvable:$true] %s39
      %45 = dma.hbm_to_vmem [thread:$0]  %s1, 512, %s40, [#allocation6], 128, 128, 8
    $region9: #{tpu_custom_call.1} parent=1 // pred_fallthru
      _
    // Predicated region
    $region10: #{tpu_custom_call.1} parent=1 // pred_check
      _
    $region11: #{tpu_custom_call.1} parent=1 // pred_check_branch
      %47 = sbr.rel (0) target = $region13
    $region12: #{tpu_custom_call.1} parent=1 // pred_region
      %s49 = ssub.s32 512, 512
      %50 = vsyncadd [#allocation6], %s49
      %s51 = sshll.u32 [#allocation7], 4
      %s52 = int_to_ptr.vmem [resolvable:$true] %s51
      %57 = dma.hbm_to_vmem [thread:$0]  %s2, 512, %s52, [#allocation6], 128, 128, 8
    $region13: #{tpu_custom_call.1} parent=1 // pred_fallthru
      _
    // Predicated region
    $region14: #{tpu_custom_call.1} parent=1 // pred_check
      _
    $region15: #{tpu_custom_call.1} parent=1 // pred_check_branch
      %59 = sbr.rel (0) target = $region17
    $region16: #{tpu_custom_call.1} parent=1 // pred_region
      %s61 = ssub.s32 512, 512
      %62 = vsyncadd [#allocation9], %s61
      %s63 = sshll.u32 [#allocation8], 4
      %s64 = int_to_ptr.vmem [resolvable:$true] %s63
      %69 = dma.hbm_to_vmem [thread:$0]  %s3, 512, %s64, [#allocation9], 128, 128, 8
    $region17: #{tpu_custom_call.1} parent=1 // pred_fallthru
      _
    // Predicated region
    $region18: #{tpu_custom_call.1} parent=1 // pred_check
      _
    $region19: #{tpu_custom_call.1} parent=1 // pred_check_branch
      %71 = sbr.rel (0) target = $region21
    $region20: #{tpu_custom_call.1} parent=1 // pred_region
      %s73 = ssub.s32 512, 512
      %74 = vsyncadd [#allocation9], %s73
      %s75 = sshll.u32 [#allocation10], 4
      %s76 = int_to_ptr.vmem [resolvable:$true] %s75
      %81 = dma.hbm_to_vmem [thread:$0]  %s4, 512, %s76, [#allocation9], 128, 128, 8
    $region21: #{tpu_custom_call.1} parent=1 // pred_fallthru
      _
    // Predicated region
    $region22: #{tpu_custom_call.1} parent=1 // pred_check
      _
    $region23: #{tpu_custom_call.1} parent=1 // pred_check_branch
      %83 = sbr.rel (0) target = $region25
    $region24: #{tpu_custom_call.1} parent=1 // pred_region
      %s85 = ssub.s32 512, 512
      %86 = vsyncadd [#allocation12], %s85
      %s87 = sshll.u32 [#allocation11], 4
      %s88 = int_to_ptr.vmem [resolvable:$true] %s87
      %93 = dma.hbm_to_vmem [thread:$0]  %s5, 512, %s88, [#allocation12], 128, 128, 8
    $region25: #{tpu_custom_call.1} parent=1 // pred_fallthru
      _
    // Predicated region
    $region26: #{tpu_custom_call.1} parent=1 // pred_check
      _
    $region27: #{tpu_custom_call.1} parent=1 // pred_check_branch
      %95 = sbr.rel (0) target = $region29
    $region28: #{tpu_custom_call.1} parent=1 // pred_region
      %s97 = ssub.s32 512, 512
      %98 = vsyncadd [#allocation12], %s97
      %s99 = sshll.u32 [#allocation13], 4
      %s100 = int_to_ptr.vmem [resolvable:$true] %s99
      %105 = dma.hbm_to_vmem [thread:$0]  %s6, 512, %s100, [#allocation12], 128, 128, 8
    $region29: #{tpu_custom_call.1} parent=1 // pred_fallthru
      _
    // Predicated region
    $region30: #{tpu_custom_call.1} parent=1 // pred_check
      _
    $region31: #{tpu_custom_call.1} parent=1 // pred_check_branch
      %107 = sbr.rel (0) target = $region33
    $region32: #{tpu_custom_call.1} parent=1 // pred_region
      _
    $region33: #{tpu_custom_call.1} parent=1 // pred_fallthru
      _
    // Predicated region
    $region34: #{tpu_custom_call.1} parent=1 // pred_check
      _
    $region35: #{tpu_custom_call.1} parent=1 // pred_check_branch
      %109 = sbr.rel (0) target = $region37
    $region36: #{tpu_custom_call.1} parent=1 // pred_region
      %s111 = ssub.s32 2048, 2048
      %112 = vsyncadd [#allocation15], %s111
      %s113 = sshll.u32 [#allocation14], 4
      %s114 = int_to_ptr.vmem [resolvable:$true] %s113
      %119 = dma.hbm_to_vmem [thread:$0]  %s8, 2048, %s114, [#allocation15], 128, 128, 8
    $region37: #{tpu_custom_call.1} parent=1 // pred_fallthru
      _
    // Predicated region
    $region38: #{tpu_custom_call.1} parent=1 // pred_check
      _
    $region39: #{tpu_custom_call.1} parent=1 // pred_check_branch
      %121 = sbr.rel (0) target = $region41
    $region40: #{tpu_custom_call.1} parent=1 // pred_region
      %122 = dma.done [#allocation3], 1024
    $region41: #{tpu_custom_call.1} parent=1 // pred_fallthru
      _
    // Predicated region
    $region42: #{tpu_custom_call.1} parent=1 // pred_check
      _
    $region43: #{tpu_custom_call.1} parent=1 // pred_check_branch
      %124 = sbr.rel (0) target = $region45
    $region44: #{tpu_custom_call.1} parent=1 // pred_region
      %125 = dma.done [#allocation6], 512
    $region45: #{tpu_custom_call.1} parent=1 // pred_fallthru
      _
    // Predicated region
    $region46: #{tpu_custom_call.1} parent=1 // pred_check
      _
    $region47: #{tpu_custom_call.1} parent=1 // pred_check_branch
      %127 = sbr.rel (0) target = $region49
    $region48: #{tpu_custom_call.1} parent=1 // pred_region
      %128 = dma.done [#allocation6], 512
    $region49: #{tpu_custom_call.1} parent=1 // pred_fallthru
      _
    // Predicated region
    $region50: #{tpu_custom_call.1} parent=1 // pred_check
      _
    $region51: #{tpu_custom_call.1} parent=1 // pred_check_branch
      %130 = sbr.rel (0) target = $region53
    $region52: #{tpu_custom_call.1} parent=1 // pred_region
      %131 = dma.done [#allocation9], 512
    $region53: #{tpu_custom_call.1} parent=1 // pred_fallthru
      _
    // Predicated region
    $region54: #{tpu_custom_call.1} parent=1 // pred_check
      _
    $region55: #{tpu_custom_call.1} parent=1 // pred_check_branch
      %133 = sbr.rel (0) target = $region57
    $region56: #{tpu_custom_call.1} parent=1 // pred_region
      %134 = dma.done [#allocation9], 512
    $region57: #{tpu_custom_call.1} parent=1 // pred_fallthru
      _
    // Predicated region
    $region58: #{tpu_custom_call.1} parent=1 // pred_check
      _
    $region59: #{tpu_custom_call.1} parent=1 // pred_check_branch
      %136 = sbr.rel (0) target = $region61
    $region60: #{tpu_custom_call.1} parent=1 // pred_region
      %137 = dma.done [#allocation12], 512
    $region61: #{tpu_custom_call.1} parent=1 // pred_fallthru
      _
    // Predicated region
    $region62: #{tpu_custom_call.1} parent=1 // pred_check
      _
    $region63: #{tpu_custom_call.1} parent=1 // pred_check_branch
      %139 = sbr.rel (0) target = $region65
    $region64: #{tpu_custom_call.1} parent=1 // pred_region
      %140 = dma.done [#allocation12], 512
    $region65: #{tpu_custom_call.1} parent=1 // pred_fallthru
      _
    // Predicated region
    $region66: #{tpu_custom_call.1} parent=1 // pred_check
      _
    $region67: #{tpu_custom_call.1} parent=1 // pred_check_branch
      %142 = sbr.rel (0) target = $region69
    $region68: #{tpu_custom_call.1} parent=1 // pred_region
      %143 = dma.done [#allocation15], 2048
    $region69: #{tpu_custom_call.1} parent=1 // pred_fallthru
      _
    %v144 = vld [vmem:[#allocation2] sm:$0xff]
    %v145 = vld [vmem:[#allocation2 + $0x8] sm:$0xff]
    %v146 = vld [vmem:[#allocation2 + $0x10] sm:$0xff]
    %v147 = vld [vmem:[#allocation2 + $0x18] sm:$0xff]
    %v148 = vld [vmem:[#allocation2 + $0x20] sm:$0xff]
    %v149 = vld [vmem:[#allocation2 + $0x28] sm:$0xff]
    %v150 = vld [vmem:[#allocation2 + $0x30] sm:$0xff]
    %v151 = vld [vmem:[#allocation2 + $0x38] sm:$0xff]
    %v152 = vld [vmem:[#allocation8] sm:$0xff]
    %v153 = vld [vmem:[#allocation8 + $0x8] sm:$0xff]
    %v154 = vld [vmem:[#allocation8 + $0x10] sm:$0xff]
    %v155 = vld [vmem:[#allocation8 + $0x18] sm:$0xff]
    %vm156 = vcmask 261120
    %v158 = vsel %vm156, %v144, 0
    %v161 = vsel %vm156, %v145, 0
    %v164 = vsel %vm156, %v146, 0
    %v167 = vsel %vm156, %v147, 0
    %v170 = vsel %vm156, %v148, 0
    %v173 = vsel %vm156, %v149, 0
    %v176 = vsel %vm156, %v150, 0
    %v179 = vsel %vm156, %v151, 0
    %181 = vmatprep.subr.mxu0 0.0
    %182 = vmatpush1.msra.mxu0 %v152
    %183 = vmatprep.subr.mxu0 0.0
    %184 = vmatpush1.msra.mxu0 %v153
    %185 = vmatprep.subr.mxu0 0.0
    %186 = vmatpush1.msra.mxu0 %v154
    %187 = vmatprep.subr.mxu0 0.0
    %188 = vmatpush1.msra.mxu0 %v155
    %189 = vmatprep.subr.mxu0 0.0
    %190 = vmatpush1.msra.mxu0 0.0
    %191 = vmatprep.subr.mxu0 0.0
    %192 = vmatpush1.msra.mxu0 0.0
    %193 = vmatprep.subr.mxu0 0.0
    %194 = vmatpush1.msra.mxu0 0.0
    %195 = vmatprep.subr.mxu0 0.0
    %196 = vmatpush1.msra.mxu0 0.0
    %197 = vmatprep.subr.mxu0 0.0
    %198 = vmatpush1.msra.mxu0 0.0
    %199 = vmatprep.subr.mxu0 0.0
    %200 = vmatpush1.msra.mxu0 0.0
    %201 = vmatprep.subr.mxu0 0.0
    %202 = vmatpush1.msra.mxu0 0.0
    %203 = vmatprep.subr.mxu0 0.0
    %204 = vmatpush1.msra.mxu0 0.0
    %205 = vmatprep.subr.mxu0 0.0
    %206 = vmatpush1.msra.mxu0 0.0
    %207 = vmatprep.subr.mxu0 0.0
    %208 = vmatpush1.msra.mxu0 0.0
    %209 = vmatprep.subr.mxu0 0.0
    %210 = vmatpush1.msra.mxu0 0.0
    %211 = vmatprep.subr.mxu0 0.0
    %212 = vmatpush1.msra.mxu0 0.0
    %213 = vmatprep.subr.mxu0 0.0
    %214 = vmatpush1.msra.mxu0 0.0
    %215 = vmatprep.subr.mxu0 0.0
    %216 = vmatpush1.msra.mxu0 0.0
    %217 = vmatprep.subr.mxu0 0.0
    %218 = vmatpush1.msra.mxu0 0.0
    %219 = vmatprep.subr.mxu0 0.0
    %220 = vmatpush1.msra.mxu0 0.0
    %221 = vmatprep.subr.mxu0 0.0
    %222 = vmatpush1.msra.mxu0 0.0
    %223 = vmatprep.subr.mxu0 0.0
    %224 = vmatpush1.msra.mxu0 0.0
    %225 = vmatprep.subr.mxu0 0.0
    %226 = vmatpush1.msra.mxu0 0.0
    %227 = vmatprep.subr.mxu0 0.0
    %228 = vmatpush1.msra.mxu0 0.0
    %229 = vmatprep.subr.mxu0 0.0
    %230 = vmatpush1.msra.mxu0 0.0
    %231 = vmatprep.subr.mxu0 0.0
    %232 = vmatpush1.msra.mxu0 0.0
    %233 = vmatprep.subr.mxu0 0.0
    %234 = vmatpush1.msra.mxu0 0.0
    %235 = vmatprep.subr.mxu0 0.0
    %236 = vmatpush1.msra.mxu0 0.0
    %237 = vmatprep.subr.mxu0 0.0
    %238 = vmatpush1.msra.mxu0 0.0
    %239 = vmatprep.subr.mxu0 0.0
    %240 = vmatpush1.msra.mxu0 0.0
    %241 = vmatprep.subr.mxu0 0.0
    %242 = vmatpush1.msra.mxu0 0.0
    %243 = vmatprep.subr.mxu0 0.0
    %244 = vmatpush1.msra.mxu0 0.0
    %245 = vmatprep.mubr.f32.mxu0 0.0
    %246 = vmatmul.mubr.f32.gmra.mrb[0].mxu0 %v158
    %v247 = vpop.f32.mrb[0].mxu0
    %v248 = vadd.f32 0.0, %v247
    %v249 = vpop.f32.mrb[0].mxu0
    %250 = vmatprep.mubr.f32.mxu0 0.0
    %251 = vmatmul.mubr.f32.gmra.mrb[0].mxu0 %v161
    %v252 = vpop.f32.mrb[0].mxu0
    %v253 = vadd.f32 0.0, %v252
    %v254 = vpop.f32.mrb[0].mxu0
    %255 = vmatprep.mubr.f32.mxu0 0.0
    %256 = vmatmul.mubr.f32.gmra.mrb[0].mxu0 %v164
    %v257 = vpop.f32.mrb[0].mxu0
    %v258 = vadd.f32 0.0, %v257
    %v259 = vpop.f32.mrb[0].mxu0
    %260 = vmatprep.mubr.f32.mxu0 0.0
    %261 = vmatmul.mubr.f32.gmra.mrb[0].mxu0 %v167
    %v262 = vpop.f32.mrb[0].mxu0
    %v263 = vadd.f32 0.0, %v262
    %v264 = vpop.f32.mrb[0].mxu0
    %265 = vmatprep.mubr.f32.mxu0 0.0
    %266 = vmatmul.mubr.f32.gmra.mrb[0].mxu0 %v170
    %v267 = vpop.f32.mrb[0].mxu0
    %v268 = vadd.f32 0.0, %v267
    %v269 = vpop.f32.mrb[0].mxu0
    %270 = vmatprep.mubr.f32.mxu0 0.0
    %271 = vmatmul.mubr.f32.gmra.mrb[0].mxu0 %v173
    %v272 = vpop.f32.mrb[0].mxu0
    %v273 = vadd.f32 0.0, %v272
    %v274 = vpop.f32.mrb[0].mxu0
    %275 = vmatprep.mubr.f32.mxu0 0.0
    %276 = vmatmul.mubr.f32.gmra.mrb[0].mxu0 %v176
    %v277 = vpop.f32.mrb[0].mxu0
    %v278 = vadd.f32 0.0, %v277
    %v279 = vpop.f32.mrb[0].mxu0
    %280 = vmatprep.mubr.f32.mxu0 0.0
    %281 = vmatmul.mubr.f32.gmra.mrb[0].mxu0 %v179
    %v282 = vpop.f32.mrb[0].mxu0
    %v283 = vadd.f32 0.0, %v282
    %v284 = vpop.f32.mrb[0].mxu0
    %285 = vdwg.mxu0
    %v286 = vld [vmem:[#allocation5] sm:$0xff]
    %v287 = vld [vmem:[#allocation5 + $0x8] sm:$0xff]
    %v288 = vld [vmem:[#allocation5 + $0x10] sm:$0xff]
    %v289 = vld [vmem:[#allocation5 + $0x18] sm:$0xff]
    %v290 = vld [vmem:[#allocation10] sm:$0xff]
    %v291 = vld [vmem:[#allocation10 + $0x8] sm:$0xff]
    %v292 = vld [vmem:[#allocation10 + $0x10] sm:$0xff]
    %v293 = vld [vmem:[#allocation10 + $0x18] sm:$0xff]
    %v295 = vsel %vm156, %v286, 0
    %v298 = vsel %vm156, %v287, 0
    %v301 = vsel %vm156, %v288, 0
    %v304 = vsel %vm156, %v289, 0
    %306 = vmatprep.subr.mxu0 0.0
    %307 = vmatpush1.msra.mxu0 %v290
    %308 = vmatprep.subr.mxu0 0.0
    %309 = vmatpush1.msra.mxu0 %v291
    %310 = vmatprep.subr.mxu0 0.0
    %311 = vmatpush1.msra.mxu0 %v292
    %312 = vmatprep.subr.mxu0 0.0
    %313 = vmatpush1.msra.mxu0 %v293
    %314 = vmatprep.subr.mxu0 0.0
    %315 = vmatpush1.msra.mxu0 0.0
    %316 = vmatprep.subr.mxu0 0.0
    %317 = vmatpush1.msra.mxu0 0.0
    %318 = vmatprep.subr.mxu0 0.0
    %319 = vmatpush1.msra.mxu0 0.0
    %320 = vmatprep.subr.mxu0 0.0
    %321 = vmatpush1.msra.mxu0 0.0
    %322 = vmatprep.subr.mxu0 0.0
    %323 = vmatpush1.msra.mxu0 0.0
    %324 = vmatprep.subr.mxu0 0.0
    %325 = vmatpush1.msra.mxu0 0.0
    %326 = vmatprep.subr.mxu0 0.0
    %327 = vmatpush1.msra.mxu0 0.0
    %328 = vmatprep.subr.mxu0 0.0
    %329 = vmatpush1.msra.mxu0 0.0
    %330 = vmatprep.subr.mxu0 0.0
    %331 = vmatpush1.msra.mxu0 0.0
    %332 = vmatprep.subr.mxu0 0.0
    %333 = vmatpush1.msra.mxu0 0.0
    %334 = vmatprep.subr.mxu0 0.0
    %335 = vmatpush1.msra.mxu0 0.0
    %336 = vmatprep.subr.mxu0 0.0
    %337 = vmatpush1.msra.mxu0 0.0
    %338 = vmatprep.subr.mxu0 0.0
    %339 = vmatpush1.msra.mxu0 0.0
    %340 = vmatprep.subr.mxu0 0.0
    %341 = vmatpush1.msra.mxu0 0.0
    %342 = vmatprep.subr.mxu0 0.0
    %343 = vmatpush1.msra.mxu0 0.0
    %344 = vmatprep.subr.mxu0 0.0
    %345 = vmatpush1.msra.mxu0 0.0
    %346 = vmatprep.subr.mxu0 0.0
    %347 = vmatpush1.msra.mxu0 0.0
    %348 = vmatprep.subr.mxu0 0.0
    %349 = vmatpush1.msra.mxu0 0.0
    %350 = vmatprep.subr.mxu0 0.0
    %351 = vmatpush1.msra.mxu0 0.0
    %352 = vmatprep.subr.mxu0 0.0
    %353 = vmatpush1.msra.mxu0 0.0
    %354 = vmatprep.subr.mxu0 0.0
    %355 = vmatpush1.msra.mxu0 0.0
    %356 = vmatprep.subr.mxu0 0.0
    %357 = vmatpush1.msra.mxu0 0.0
    %358 = vmatprep.subr.mxu0 0.0
    %359 = vmatpush1.msra.mxu0 0.0
    %360 = vmatprep.subr.mxu0 0.0
    %361 = vmatpush1.msra.mxu0 0.0
    %362 = vmatprep.subr.mxu0 0.0
    %363 = vmatpush1.msra.mxu0 0.0
    %364 = vmatprep.subr.mxu0 0.0
    %365 = vmatpush1.msra.mxu0 0.0
    %366 = vmatprep.subr.mxu0 0.0
    %367 = vmatpush1.msra.mxu0 0.0
    %368 = vmatprep.subr.mxu0 0.0
    %369 = vmatpush1.msra.mxu0 0.0
    %370 = vmatprep.mubr.f32.mxu0 0.0
    %371 = vmatmul.mubr.f32.gmra.mrb[0].mxu0 %v295
    %v372 = vpop.f32.mrb[0].mxu0
    %v373 = vadd.f32 0.0, %v372
    %v374 = vpop.f32.mrb[0].mxu0
    %375 = vmatprep.mubr.f32.mxu0 0.0
    %376 = vmatmul.mubr.f32.gmra.mrb[0].mxu0 %v298
    %v377 = vpop.f32.mrb[0].mxu0
    %v378 = vadd.f32 0.0, %v377
    %v379 = vpop.f32.mrb[0].mxu0
    %380 = vmatprep.mubr.f32.mxu0 0.0
    %381 = vmatmul.mubr.f32.gmra.mrb[0].mxu0 %v301
    %v382 = vpop.f32.mrb[0].mxu0
    %v383 = vadd.f32 0.0, %v382
    %v384 = vpop.f32.mrb[0].mxu0
    %385 = vmatprep.mubr.f32.mxu0 0.0
    %386 = vmatmul.mubr.f32.gmra.mrb[0].mxu0 %v304
    %v387 = vpop.f32.mrb[0].mxu0
    %v388 = vadd.f32 0.0, %v387
    %v389 = vpop.f32.mrb[0].mxu0
    %390 = vdwg.mxu0
    %v391 = vld [vmem:[#allocation7] sm:$0xff]
    %v392 = vld [vmem:[#allocation7 + $0x8] sm:$0xff]
    %v393 = vld [vmem:[#allocation7 + $0x10] sm:$0xff]
    %v394 = vld [vmem:[#allocation7 + $0x18] sm:$0xff]
    %v395 = vld [vmem:[#allocation11] sm:$0xff]
    %v396 = vld [vmem:[#allocation11 + $0x8] sm:$0xff]
    %v397 = vld [vmem:[#allocation11 + $0x10] sm:$0xff]
    %v398 = vld [vmem:[#allocation11 + $0x18] sm:$0xff]
    %v400 = vsel %vm156, %v391, 0
    %v403 = vsel %vm156, %v392, 0
    %v406 = vsel %vm156, %v393, 0
    %v409 = vsel %vm156, %v394, 0
    %411 = vmatprep.subr.mxu0 0.0
    %412 = vmatpush1.msra.mxu0 %v395
    %413 = vmatprep.subr.mxu0 0.0
    %414 = vmatpush1.msra.mxu0 %v396
    %415 = vmatprep.subr.mxu0 0.0
    %416 = vmatpush1.msra.mxu0 %v397
    %417 = vmatprep.subr.mxu0 0.0
    %418 = vmatpush1.msra.mxu0 %v398
    %419 = vmatprep.subr.mxu0 0.0
    %420 = vmatpush1.msra.mxu0 0.0
    %421 = vmatprep.subr.mxu0 0.0
    %422 = vmatpush1.msra.mxu0 0.0
    %423 = vmatprep.subr.mxu0 0.0
    %424 = vmatpush1.msra.mxu0 0.0
    %425 = vmatprep.subr.mxu0 0.0
    %426 = vmatpush1.msra.mxu0 0.0
    %427 = vmatprep.subr.mxu0 0.0
    %428 = vmatpush1.msra.mxu0 0.0
    %429 = vmatprep.subr.mxu0 0.0
    %430 = vmatpush1.msra.mxu0 0.0
    %431 = vmatprep.subr.mxu0 0.0
    %432 = vmatpush1.msra.mxu0 0.0
    %433 = vmatprep.subr.mxu0 0.0
    %434 = vmatpush1.msra.mxu0 0.0
    %435 = vmatprep.subr.mxu0 0.0
    %436 = vmatpush1.msra.mxu0 0.0
    %437 = vmatprep.subr.mxu0 0.0
    %438 = vmatpush1.msra.mxu0 0.0
    %439 = vmatprep.subr.mxu0 0.0
    %440 = vmatpush1.msra.mxu0 0.0
    %441 = vmatprep.subr.mxu0 0.0
    %442 = vmatpush1.msra.mxu0 0.0
    %443 = vmatprep.subr.mxu0 0.0
    %444 = vmatpush1.msra.mxu0 0.0
    %445 = vmatprep.subr.mxu0 0.0
    %446 = vmatpush1.msra.mxu0 0.0
    %447 = vmatprep.subr.mxu0 0.0
    %448 = vmatpush1.msra.mxu0 0.0
    %449 = vmatprep.subr.mxu0 0.0
    %450 = vmatpush1.msra.mxu0 0.0
    %451 = vmatprep.subr.mxu0 0.0
    %452 = vmatpush1.msra.mxu0 0.0
    %453 = vmatprep.subr.mxu0 0.0
    %454 = vmatpush1.msra.mxu0 0.0
    %455 = vmatprep.subr.mxu0 0.0
    %456 = vmatpush1.msra.mxu0 0.0
    %457 = vmatprep.subr.mxu0 0.0
    %458 = vmatpush1.msra.mxu0 0.0
    %459 = vmatprep.subr.mxu0 0.0
    %460 = vmatpush1.msra.mxu0 0.0
    %461 = vmatprep.subr.mxu0 0.0
    %462 = vmatpush1.msra.mxu0 0.0
    %463 = vmatprep.subr.mxu0 0.0
    %464 = vmatpush1.msra.mxu0 0.0
    %465 = vmatprep.subr.mxu0 0.0
    %466 = vmatpush1.msra.mxu0 0.0
    %467 = vmatprep.subr.mxu0 0.0
    %468 = vmatpush1.msra.mxu0 0.0
    %469 = vmatprep.subr.mxu0 0.0
    %470 = vmatpush1.msra.mxu0 0.0
    %471 = vmatprep.subr.mxu0 0.0
    %472 = vmatpush1.msra.mxu0 0.0
    %473 = vmatprep.subr.mxu0 0.0
    %474 = vmatpush1.msra.mxu0 0.0
    %475 = vmatprep.mubr.f32.mxu0 0.0
    %476 = vmatmul.mubr.f32.gmra.mrb[0].mxu0 %v400
    %v477 = vpop.f32.mrb[0].mxu0
    %v478 = vadd.f32 0.0, %v477
    %v479 = vpop.f32.mrb[0].mxu0
    %480 = vmatprep.mubr.f32.mxu0 0.0
    %481 = vmatmul.mubr.f32.gmra.mrb[0].mxu0 %v403
    %v482 = vpop.f32.mrb[0].mxu0
    %v483 = vadd.f32 0.0, %v482
    %v484 = vpop.f32.mrb[0].mxu0
    %485 = vmatprep.mubr.f32.mxu0 0.0
    %486 = vmatmul.mubr.f32.gmra.mrb[0].mxu0 %v406
    %v487 = vpop.f32.mrb[0].mxu0
    %v488 = vadd.f32 0.0, %v487
    %v489 = vpop.f32.mrb[0].mxu0
    %490 = vmatprep.mubr.f32.mxu0 0.0
    %491 = vmatmul.mubr.f32.gmra.mrb[0].mxu0 %v409
    %v492 = vpop.f32.mrb[0].mxu0
    %v493 = vadd.f32 0.0, %v492
    %v494 = vpop.f32.mrb[0].mxu0
    %495 = vdwg.mxu0
    %v496 = vmul.f32 %v248, %v248
    %v497 = vmul.f32 %v253, %v253
    %v498 = vmul.f32 %v258, %v258
    %v499 = vmul.f32 %v263, %v263
    %v500 = vmul.f32 %v268, %v268
    %v501 = vmul.f32 %v273, %v273
    %v502 = vmul.f32 %v278, %v278
    %v503 = vmul.f32 %v283, %v283
    %v504 = vsel %vm156, %v496, 0.0
    %505 = vadd.xlane.f32.xlu0 %v504
    %v506 = vpop.xlane.xlu0 %505
    %v507 = vsel %vm156, %v497, 0.0
    %508 = vadd.xlane.f32.xlu0 %v507
    %v509 = vpop.xlane.xlu0 %508
    %v510 = vsel %vm156, %v498, 0.0
    %511 = vadd.xlane.f32.xlu0 %v510
    %v512 = vpop.xlane.xlu0 %511
    %v513 = vsel %vm156, %v499, 0.0
    %514 = vadd.xlane.f32.xlu0 %v513
    %v515 = vpop.xlane.xlu0 %514
    %v516 = vsel %vm156, %v500, 0.0
    %517 = vadd.xlane.f32.xlu0 %v516
    %v518 = vpop.xlane.xlu0 %517
    %v519 = vsel %vm156, %v501, 0.0
    %520 = vadd.xlane.f32.xlu0 %v519
    %v521 = vpop.xlane.xlu0 %520
    %v522 = vsel %vm156, %v502, 0.0
    %523 = vadd.xlane.f32.xlu0 %v522
    %v524 = vpop.xlane.xlu0 %523
    %v525 = vsel %vm156, %v503, 0.0
    %526 = vadd.xlane.f32.xlu0 %v525
    %v527 = vpop.xlane.xlu0 %526
    %v528 = vmax.f32 %v506, 1e-24
    %v529 = vmax.f32 %v509, 1e-24
    %v530 = vmax.f32 %v512, 1e-24
    %v531 = vmax.f32 %v515, 1e-24
    %v532 = vmax.f32 %v518, 1e-24
    %v533 = vmax.f32 %v521, 1e-24
    %v534 = vmax.f32 %v524, 1e-24
    %v535 = vmax.f32 %v527, 1e-24
    %v536 = vrsqrt.pop %v528
    %v537 = vrsqrt.pop %v529
    %v538 = vrsqrt.pop %v530
    %v539 = vrsqrt.pop %v531
    %v540 = vrsqrt.pop %v532
    %v541 = vrsqrt.pop %v533
    %v542 = vrsqrt.pop %v534
    %v543 = vrsqrt.pop %v535
    %v544 = vmul.f32 %v248, %v536
    %v545 = vmul.f32 %v253, %v537
    %v546 = vmul.f32 %v258, %v538
    %v547 = vmul.f32 %v263, %v539
    %v548 = vmul.f32 %v268, %v540
    %v549 = vmul.f32 %v273, %v541
    %v550 = vmul.f32 %v278, %v542
    %v551 = vmul.f32 %v283, %v543
    %v552 = vmul.f32 %v373, %v373
    %v553 = vmul.f32 %v378, %v378
    %v554 = vmul.f32 %v383, %v383
    %v555 = vmul.f32 %v388, %v388
    %v556 = vsel %vm156, %v552, 0.0
    %557 = vadd.xlane.f32.xlu0 %v556
    %v558 = vpop.xlane.xlu0 %557
    %v559 = vsel %vm156, %v553, 0.0
    %560 = vadd.xlane.f32.xlu0 %v559
    %v561 = vpop.xlane.xlu0 %560
    %v562 = vsel %vm156, %v554, 0.0
    %563 = vadd.xlane.f32.xlu0 %v562
    %v564 = vpop.xlane.xlu0 %563
    %v565 = vsel %vm156, %v555, 0.0
    %566 = vadd.xlane.f32.xlu0 %v565
    %v567 = vpop.xlane.xlu0 %566
    %v568 = vmax.f32 %v558, 1e-24
    %v569 = vmax.f32 %v561, 1e-24
    %v570 = vmax.f32 %v564, 1e-24
    %v571 = vmax.f32 %v567, 1e-24
    %v572 = vrsqrt.pop %v568
    %v573 = vrsqrt.pop %v569
    %v574 = vrsqrt.pop %v570
    %v575 = vrsqrt.pop %v571
    %v576 = vmul.f32 %v373, %v572
    %v577 = vmul.f32 %v378, %v573
    %v578 = vmul.f32 %v383, %v574
    %v579 = vmul.f32 %v388, %v575
    %v581 = vsel %vm156, %v544, 0
    %v584 = vsel %vm156, %v576, 0
    %v587 = vsel %vm156, %v577, 0
    %589 = vmatprep.subr.mxu0 0.0
    %590 = vmatpush1.xpose.msra.mxu0 %v584
    %591 = vmatprep.subr.mxu0 0.0
    %592 = vmatpush1.xpose.msra.mxu0 %v587
    %593 = vmatprep.subr.mxu0 0.0
    %594 = vmatpush1.xpose.msra.mxu0 0.0
    %595 = vmatprep.subr.mxu0 0.0
    %596 = vmatpush1.xpose.msra.mxu0 0.0
    %597 = vmatprep.subr.mxu0 0.0
    %598 = vmatpush1.xpose.msra.mxu0 0.0
    %599 = vmatprep.subr.mxu0 0.0
    %600 = vmatpush1.xpose.msra.mxu0 0.0
    %601 = vmatprep.subr.mxu0 0.0
    %602 = vmatpush1.xpose.msra.mxu0 0.0
    %603 = vmatprep.subr.mxu0 0.0
    %604 = vmatpush1.xpose.msra.mxu0 0.0
    %605 = vmatprep.subr.mxu0 0.0
    %606 = vmatpush1.xpose.msra.mxu0 0.0
    %607 = vmatprep.subr.mxu0 0.0
    %608 = vmatpush1.xpose.msra.mxu0 0.0
    %609 = vmatprep.subr.mxu0 0.0
    %610 = vmatpush1.xpose.msra.mxu0 0.0
    %611 = vmatprep.subr.mxu0 0.0
    %612 = vmatpush1.xpose.msra.mxu0 0.0
    %613 = vmatprep.subr.mxu0 0.0
    %614 = vmatpush1.xpose.msra.mxu0 0.0
    %615 = vmatprep.subr.mxu0 0.0
    %616 = vmatpush1.xpose.msra.mxu0 0.0
    %617 = vmatprep.subr.mxu0 0.0
    %618 = vmatpush1.xpose.msra.mxu0 0.0
    %619 = vmatprep.subr.mxu0 0.0
    %620 = vmatpush1.xpose.msra.mxu0 0.0
    %621 = vmatprep.subr.mxu0 0.0
    %622 = vmatpush1.xpose.msra.mxu0 0.0
    %623 = vmatprep.subr.mxu0 0.0
    %624 = vmatpush1.xpose.msra.mxu0 0.0
    %625 = vmatprep.subr.mxu0 0.0
    %626 = vmatpush1.xpose.msra.mxu0 0.0
    %627 = vmatprep.subr.mxu0 0.0
    %628 = vmatpush1.xpose.msra.mxu0 0.0
    %629 = vmatprep.subr.mxu0 0.0
    %630 = vmatpush1.xpose.msra.mxu0 0.0
    %631 = vmatprep.subr.mxu0 0.0
    %632 = vmatpush1.xpose.msra.mxu0 0.0
    %633 = vmatprep.subr.mxu0 0.0
    %634 = vmatpush1.xpose.msra.mxu0 0.0
    %635 = vmatprep.subr.mxu0 0.0
    %636 = vmatpush1.xpose.msra.mxu0 0.0
    %637 = vmatprep.subr.mxu0 0.0
    %638 = vmatpush1.xpose.msra.mxu0 0.0
    %639 = vmatprep.subr.mxu0 0.0
    %640 = vmatpush1.xpose.msra.mxu0 0.0
    %641 = vmatprep.subr.mxu0 0.0
    %642 = vmatpush1.xpose.msra.mxu0 0.0
    %643 = vmatprep.subr.mxu0 0.0
    %644 = vmatpush1.xpose.msra.mxu0 0.0
    %645 = vmatprep.subr.mxu0 0.0
    %646 = vmatpush1.xpose.msra.mxu0 0.0
    %647 = vmatprep.subr.mxu0 0.0
    %648 = vmatpush1.xpose.msra.mxu0 0.0
    %649 = vmatprep.subr.mxu0 0.0
    %650 = vmatpush1.xpose.msra.mxu0 0.0
    %651 = vmatprep.subr.mxu0 0.0
    %652 = vmatpush1.xpose.msra.mxu0 0.0
    %653 = vmatprep.mubr.f32.mxu0 0.0
    %654 = vmatmul.mubr.f32.gmra.mrb[0].mxu0 %v581
    %v655 = vpop.f32.mrb[0].mxu0
    %v656 = vadd.f32 0.0, %v655
    %v657 = vpop.f32.mrb[0].mxu0
    %658 = vdwg.mxu0
    %v660 = vsel %vm156, %v545, 0
    %662 = vmatprep.subr.mxu0 0.0
    %663 = vmatpush1.xpose.msra.mxu0 %v584
    %664 = vmatprep.subr.mxu0 0.0
    %665 = vmatpush1.xpose.msra.mxu0 %v587
    %666 = vmatprep.subr.mxu0 0.0
    %667 = vmatpush1.xpose.msra.mxu0 0.0
    %668 = vmatprep.subr.mxu0 0.0
    %669 = vmatpush1.xpose.msra.mxu0 0.0
    %670 = vmatprep.subr.mxu0 0.0
    %671 = vmatpush1.xpose.msra.mxu0 0.0
    %672 = vmatprep.subr.mxu0 0.0
    %673 = vmatpush1.xpose.msra.mxu0 0.0
    %674 = vmatprep.subr.mxu0 0.0
    %675 = vmatpush1.xpose.msra.mxu0 0.0
    %676 = vmatprep.subr.mxu0 0.0
    %677 = vmatpush1.xpose.msra.mxu0 0.0
    %678 = vmatprep.subr.mxu0 0.0
    %679 = vmatpush1.xpose.msra.mxu0 0.0
    %680 = vmatprep.subr.mxu0 0.0
    %681 = vmatpush1.xpose.msra.mxu0 0.0
    %682 = vmatprep.subr.mxu0 0.0
    %683 = vmatpush1.xpose.msra.mxu0 0.0
    %684 = vmatprep.subr.mxu0 0.0
    %685 = vmatpush1.xpose.msra.mxu0 0.0
    %686 = vmatprep.subr.mxu0 0.0
    %687 = vmatpush1.xpose.msra.mxu0 0.0
    %688 = vmatprep.subr.mxu0 0.0
    %689 = vmatpush1.xpose.msra.mxu0 0.0
    %690 = vmatprep.subr.mxu0 0.0
    %691 = vmatpush1.xpose.msra.mxu0 0.0
    %692 = vmatprep.subr.mxu0 0.0
    %693 = vmatpush1.xpose.msra.mxu0 0.0
    %694 = vmatprep.subr.mxu0 0.0
    %695 = vmatpush1.xpose.msra.mxu0 0.0
    %696 = vmatprep.subr.mxu0 0.0
    %697 = vmatpush1.xpose.msra.mxu0 0.0
    %698 = vmatprep.subr.mxu0 0.0
    %699 = vmatpush1.xpose.msra.mxu0 0.0
    %700 = vmatprep.subr.mxu0 0.0
    %701 = vmatpush1.xpose.msra.mxu0 0.0
    %702 = vmatprep.subr.mxu0 0.0
    %703 = vmatpush1.xpose.msra.mxu0 0.0
    %704 = vmatprep.subr.mxu0 0.0
    %705 = vmatpush1.xpose.msra.mxu0 0.0
    %706 = vmatprep.subr.mxu0 0.0
    %707 = vmatpush1.xpose.msra.mxu0 0.0
    %708 = vmatprep.subr.mxu0 0.0
    %709 = vmatpush1.xpose.msra.mxu0 0.0
    %710 = vmatprep.subr.mxu0 0.0
    %711 = vmatpush1.xpose.msra.mxu0 0.0
    %712 = vmatprep.subr.mxu0 0.0
    %713 = vmatpush1.xpose.msra.mxu0 0.0
    %714 = vmatprep.subr.mxu0 0.0
    %715 = vmatpush1.xpose.msra.mxu0 0.0
    %716 = vmatprep.subr.mxu0 0.0
    %717 = vmatpush1.xpose.msra.mxu0 0.0
    %718 = vmatprep.subr.mxu0 0.0
    %719 = vmatpush1.xpose.msra.mxu0 0.0
    %720 = vmatprep.subr.mxu0 0.0
    %721 = vmatpush1.xpose.msra.mxu0 0.0
    %722 = vmatprep.subr.mxu0 0.0
    %723 = vmatpush1.xpose.msra.mxu0 0.0
    %724 = vmatprep.subr.mxu0 0.0
    %725 = vmatpush1.xpose.msra.mxu0 0.0
    %726 = vmatprep.mubr.f32.mxu0 0.0
    %727 = vmatmul.mubr.f32.gmra.mrb[0].mxu0 %v660
    %v728 = vpop.f32.mrb[0].mxu0
    %v729 = vadd.f32 0.0, %v728
    %v730 = vpop.f32.mrb[0].mxu0
    %731 = vdwg.mxu0
    %v733 = vsel %vm156, %v546, 0
    %735 = vmatprep.subr.mxu0 0.0
    %736 = vmatpush1.xpose.msra.mxu0 %v584
    %737 = vmatprep.subr.mxu0 0.0
    %738 = vmatpush1.xpose.msra.mxu0 %v587
    %739 = vmatprep.subr.mxu0 0.0
    %740 = vmatpush1.xpose.msra.mxu0 0.0
    %741 = vmatprep.subr.mxu0 0.0
    %742 = vmatpush1.xpose.msra.mxu0 0.0
    %743 = vmatprep.subr.mxu0 0.0
    %744 = vmatpush1.xpose.msra.mxu0 0.0
    %745 = vmatprep.subr.mxu0 0.0
    %746 = vmatpush1.xpose.msra.mxu0 0.0
    %747 = vmatprep.subr.mxu0 0.0
    %748 = vmatpush1.xpose.msra.mxu0 0.0
    %749 = vmatprep.subr.mxu0 0.0
    %750 = vmatpush1.xpose.msra.mxu0 0.0
    %751 = vmatprep.subr.mxu0 0.0
    %752 = vmatpush1.xpose.msra.mxu0 0.0
    %753 = vmatprep.subr.mxu0 0.0
    %754 = vmatpush1.xpose.msra.mxu0 0.0
    %755 = vmatprep.subr.mxu0 0.0
    %756 = vmatpush1.xpose.msra.mxu0 0.0
    %757 = vmatprep.subr.mxu0 0.0
    %758 = vmatpush1.xpose.msra.mxu0 0.0
    %759 = vmatprep.subr.mxu0 0.0
    %760 = vmatpush1.xpose.msra.mxu0 0.0
    %761 = vmatprep.subr.mxu0 0.0
    %762 = vmatpush1.xpose.msra.mxu0 0.0
    %763 = vmatprep.subr.mxu0 0.0
    %764 = vmatpush1.xpose.msra.mxu0 0.0
    %765 = vmatprep.subr.mxu0 0.0
    %766 = vmatpush1.xpose.msra.mxu0 0.0
    %767 = vmatprep.subr.mxu0 0.0
    %768 = vmatpush1.xpose.msra.mxu0 0.0
    %769 = vmatprep.subr.mxu0 0.0
    %770 = vmatpush1.xpose.msra.mxu0 0.0
    %771 = vmatprep.subr.mxu0 0.0
    %772 = vmatpush1.xpose.msra.mxu0 0.0
    %773 = vmatprep.subr.mxu0 0.0
    %774 = vmatpush1.xpose.msra.mxu0 0.0
    %775 = vmatprep.subr.mxu0 0.0
    %776 = vmatpush1.xpose.msra.mxu0 0.0
    %777 = vmatprep.subr.mxu0 0.0
    %778 = vmatpush1.xpose.msra.mxu0 0.0
    %779 = vmatprep.subr.mxu0 0.0
    %780 = vmatpush1.xpose.msra.mxu0 0.0
    %781 = vmatprep.subr.mxu0 0.0
    %782 = vmatpush1.xpose.msra.mxu0 0.0
    %783 = vmatprep.subr.mxu0 0.0
    %784 = vmatpush1.xpose.msra.mxu0 0.0
    %785 = vmatprep.subr.mxu0 0.0
    %786 = vmatpush1.xpose.msra.mxu0 0.0
    %787 = vmatprep.subr.mxu0 0.0
    %788 = vmatpush1.xpose.msra.mxu0 0.0
    %789 = vmatprep.subr.mxu0 0.0
    %790 = vmatpush1.xpose.msra.mxu0 0.0
    %791 = vmatprep.subr.mxu0 0.0
    %792 = vmatpush1.xpose.msra.mxu0 0.0
    %793 = vmatprep.subr.mxu0 0.0
    %794 = vmatpush1.xpose.msra.mxu0 0.0
    %795 = vmatprep.subr.mxu0 0.0
    %796 = vmatpush1.xpose.msra.mxu0 0.0
    %797 = vmatprep.subr.mxu0 0.0
    %798 = vmatpush1.xpose.msra.mxu0 0.0
    %799 = vmatprep.mubr.f32.mxu0 0.0
    %800 = vmatmul.mubr.f32.gmra.mrb[0].mxu0 %v733
    %v801 = vpop.f32.mrb[0].mxu0
    %v802 = vadd.f32 0.0, %v801
    %v803 = vpop.f32.mrb[0].mxu0
    %804 = vdwg.mxu0
    %v806 = vsel %vm156, %v547, 0
    %808 = vmatprep.subr.mxu0 0.0
    %809 = vmatpush1.xpose.msra.mxu0 %v584
    %810 = vmatprep.subr.mxu0 0.0
    %811 = vmatpush1.xpose.msra.mxu0 %v587
    %812 = vmatprep.subr.mxu0 0.0
    %813 = vmatpush1.xpose.msra.mxu0 0.0
    %814 = vmatprep.subr.mxu0 0.0
    %815 = vmatpush1.xpose.msra.mxu0 0.0
    %816 = vmatprep.subr.mxu0 0.0
    %817 = vmatpush1.xpose.msra.mxu0 0.0
    %818 = vmatprep.subr.mxu0 0.0
    %819 = vmatpush1.xpose.msra.mxu0 0.0
    %820 = vmatprep.subr.mxu0 0.0
    %821 = vmatpush1.xpose.msra.mxu0 0.0
    %822 = vmatprep.subr.mxu0 0.0
    %823 = vmatpush1.xpose.msra.mxu0 0.0
    %824 = vmatprep.subr.mxu0 0.0
    %825 = vmatpush1.xpose.msra.mxu0 0.0
    %826 = vmatprep.subr.mxu0 0.0
    %827 = vmatpush1.xpose.msra.mxu0 0.0
    %828 = vmatprep.subr.mxu0 0.0
    %829 = vmatpush1.xpose.msra.mxu0 0.0
    %830 = vmatprep.subr.mxu0 0.0
    %831 = vmatpush1.xpose.msra.mxu0 0.0
    %832 = vmatprep.subr.mxu0 0.0
    %833 = vmatpush1.xpose.msra.mxu0 0.0
    %834 = vmatprep.subr.mxu0 0.0
    %835 = vmatpush1.xpose.msra.mxu0 0.0
    %836 = vmatprep.subr.mxu0 0.0
    %837 = vmatpush1.xpose.msra.mxu0 0.0
    %838 = vmatprep.subr.mxu0 0.0
    %839 = vmatpush1.xpose.msra.mxu0 0.0
    %840 = vmatprep.subr.mxu0 0.0
    %841 = vmatpush1.xpose.msra.mxu0 0.0
    %842 = vmatprep.subr.mxu0 0.0
    %843 = vmatpush1.xpose.msra.mxu0 0.0
    %844 = vmatprep.subr.mxu0 0.0
    %845 = vmatpush1.xpose.msra.mxu0 0.0
    %846 = vmatprep.subr.mxu0 0.0
    %847 = vmatpush1.xpose.msra.mxu0 0.0
    %848 = vmatprep.subr.mxu0 0.0
    %849 = vmatpush1.xpose.msra.mxu0 0.0
    %850 = vmatprep.subr.mxu0 0.0
    %851 = vmatpush1.xpose.msra.mxu0 0.0
    %852 = vmatprep.subr.mxu0 0.0
    %853 = vmatpush1.xpose.msra.mxu0 0.0
    %854 = vmatprep.subr.mxu0 0.0
    %855 = vmatpush1.xpose.msra.mxu0 0.0
    %856 = vmatprep.subr.mxu0 0.0
    %857 = vmatpush1.xpose.msra.mxu0 0.0
    %858 = vmatprep.subr.mxu0 0.0
    %859 = vmatpush1.xpose.msra.mxu0 0.0
    %860 = vmatprep.subr.mxu0 0.0
    %861 = vmatpush1.xpose.msra.mxu0 0.0
    %862 = vmatprep.subr.mxu0 0.0
    %863 = vmatpush1.xpose.msra.mxu0 0.0
    %864 = vmatprep.subr.mxu0 0.0
    %865 = vmatpush1.xpose.msra.mxu0 0.0
    %866 = vmatprep.subr.mxu0 0.0
    %867 = vmatpush1.xpose.msra.mxu0 0.0
    %868 = vmatprep.subr.mxu0 0.0
    %869 = vmatpush1.xpose.msra.mxu0 0.0
    %870 = vmatprep.subr.mxu0 0.0
    %871 = vmatpush1.xpose.msra.mxu0 0.0
    %872 = vmatprep.mubr.f32.mxu0 0.0
    %873 = vmatmul.mubr.f32.gmra.mrb[0].mxu0 %v806
    %v874 = vpop.f32.mrb[0].mxu0
    %v875 = vadd.f32 0.0, %v874
    %v876 = vpop.f32.mrb[0].mxu0
    %877 = vdwg.mxu0
    %v879 = vsel %vm156, %v548, 0
    %v882 = vsel %vm156, %v578, 0
    %v885 = vsel %vm156, %v579, 0
    %887 = vmatprep.subr.mxu0 0.0
    %888 = vmatpush1.xpose.msra.mxu0 %v882
    %889 = vmatprep.subr.mxu0 0.0
    %890 = vmatpush1.xpose.msra.mxu0 %v885
    %891 = vmatprep.subr.mxu0 0.0
    %892 = vmatpush1.xpose.msra.mxu0 0.0
    %893 = vmatprep.subr.mxu0 0.0
    %894 = vmatpush1.xpose.msra.mxu0 0.0
    %895 = vmatprep.subr.mxu0 0.0
    %896 = vmatpush1.xpose.msra.mxu0 0.0
    %897 = vmatprep.subr.mxu0 0.0
    %898 = vmatpush1.xpose.msra.mxu0 0.0
    %899 = vmatprep.subr.mxu0 0.0
    %900 = vmatpush1.xpose.msra.mxu0 0.0
    %901 = vmatprep.subr.mxu0 0.0
    %902 = vmatpush1.xpose.msra.mxu0 0.0
    %903 = vmatprep.subr.mxu0 0.0
    %904 = vmatpush1.xpose.msra.mxu0 0.0
    %905 = vmatprep.subr.mxu0 0.0
    %906 = vmatpush1.xpose.msra.mxu0 0.0
    %907 = vmatprep.subr.mxu0 0.0
    %908 = vmatpush1.xpose.msra.mxu0 0.0
    %909 = vmatprep.subr.mxu0 0.0
    %910 = vmatpush1.xpose.msra.mxu0 0.0
    %911 = vmatprep.subr.mxu0 0.0
    %912 = vmatpush1.xpose.msra.mxu0 0.0
    %913 = vmatprep.subr.mxu0 0.0
    %914 = vmatpush1.xpose.msra.mxu0 0.0
    %915 = vmatprep.subr.mxu0 0.0
    %916 = vmatpush1.xpose.msra.mxu0 0.0
    %917 = vmatprep.subr.mxu0 0.0
    %918 = vmatpush1.xpose.msra.mxu0 0.0
    %919 = vmatprep.subr.mxu0 0.0
    %920 = vmatpush1.xpose.msra.mxu0 0.0
    %921 = vmatprep.subr.mxu0 0.0
    %922 = vmatpush1.xpose.msra.mxu0 0.0
    %923 = vmatprep.subr.mxu0 0.0
    %924 = vmatpush1.xpose.msra.mxu0 0.0
    %925 = vmatprep.subr.mxu0 0.0
    %926 = vmatpush1.xpose.msra.mxu0 0.0
    %927 = vmatprep.subr.mxu0 0.0
    %928 = vmatpush1.xpose.msra.mxu0 0.0
    %929 = vmatprep.subr.mxu0 0.0
    %930 = vmatpush1.xpose.msra.mxu0 0.0
    %931 = vmatprep.subr.mxu0 0.0
    %932 = vmatpush1.xpose.msra.mxu0 0.0
    %933 = vmatprep.subr.mxu0 0.0
    %934 = vmatpush1.xpose.msra.mxu0 0.0
    %935 = vmatprep.subr.mxu0 0.0
    %936 = vmatpush1.xpose.msra.mxu0 0.0
    %937 = vmatprep.subr.mxu0 0.0
    %938 = vmatpush1.xpose.msra.mxu0 0.0
    %939 = vmatprep.subr.mxu0 0.0
    %940 = vmatpush1.xpose.msra.mxu0 0.0
    %941 = vmatprep.subr.mxu0 0.0
    %942 = vmatpush1.xpose.msra.mxu0 0.0
    %943 = vmatprep.subr.mxu0 0.0
    %944 = vmatpush1.xpose.msra.mxu0 0.0
    %945 = vmatprep.subr.mxu0 0.0
    %946 = vmatpush1.xpose.msra.mxu0 0.0
    %947 = vmatprep.subr.mxu0 0.0
    %948 = vmatpush1.xpose.msra.mxu0 0.0
    %949 = vmatprep.subr.mxu0 0.0
    %950 = vmatpush1.xpose.msra.mxu0 0.0
    %951 = vmatprep.mubr.f32.mxu0 0.0
    %952 = vmatmul.mubr.f32.gmra.mrb[0].mxu0 %v879
    %v953 = vpop.f32.mrb[0].mxu0
    %v954 = vadd.f32 0.0, %v953
    %v955 = vpop.f32.mrb[0].mxu0
    %956 = vdwg.mxu0
    %v958 = vsel %vm156, %v549, 0
    %960 = vmatprep.subr.mxu0 0.0
    %961 = vmatpush1.xpose.msra.mxu0 %v882
    %962 = vmatprep.subr.mxu0 0.0
    %963 = vmatpush1.xpose.msra.mxu0 %v885
    %964 = vmatprep.subr.mxu0 0.0
    %965 = vmatpush1.xpose.msra.mxu0 0.0
    %966 = vmatprep.subr.mxu0 0.0
    %967 = vmatpush1.xpose.msra.mxu0 0.0
    %968 = vmatprep.subr.mxu0 0.0
    %969 = vmatpush1.xpose.msra.mxu0 0.0
    %970 = vmatprep.subr.mxu0 0.0
    %971 = vmatpush1.xpose.msra.mxu0 0.0
    %972 = vmatprep.subr.mxu0 0.0
    %973 = vmatpush1.xpose.msra.mxu0 0.0
    %974 = vmatprep.subr.mxu0 0.0
    %975 = vmatpush1.xpose.msra.mxu0 0.0
    %976 = vmatprep.subr.mxu0 0.0
    %977 = vmatpush1.xpose.msra.mxu0 0.0
    %978 = vmatprep.subr.mxu0 0.0
    %979 = vmatpush1.xpose.msra.mxu0 0.0
    %980 = vmatprep.subr.mxu0 0.0
    %981 = vmatpush1.xpose.msra.mxu0 0.0
    %982 = vmatprep.subr.mxu0 0.0
    %983 = vmatpush1.xpose.msra.mxu0 0.0
    %984 = vmatprep.subr.mxu0 0.0
    %985 = vmatpush1.xpose.msra.mxu0 0.0
    %986 = vmatprep.subr.mxu0 0.0
    %987 = vmatpush1.xpose.msra.mxu0 0.0
    %988 = vmatprep.subr.mxu0 0.0
    %989 = vmatpush1.xpose.msra.mxu0 0.0
    %990 = vmatprep.subr.mxu0 0.0
    %991 = vmatpush1.xpose.msra.mxu0 0.0
    %992 = vmatprep.subr.mxu0 0.0
    %993 = vmatpush1.xpose.msra.mxu0 0.0
    %994 = vmatprep.subr.mxu0 0.0
    %995 = vmatpush1.xpose.msra.mxu0 0.0
    %996 = vmatprep.subr.mxu0 0.0
    %997 = vmatpush1.xpose.msra.mxu0 0.0
    %998 = vmatprep.subr.mxu0 0.0
    %999 = vmatpush1.xpose.msra.mxu0 0.0
    %1000 = vmatprep.subr.mxu0 0.0
    %1001 = vmatpush1.xpose.msra.mxu0 0.0
    %1002 = vmatprep.subr.mxu0 0.0
    %1003 = vmatpush1.xpose.msra.mxu0 0.0
    %1004 = vmatprep.subr.mxu0 0.0
    %1005 = vmatpush1.xpose.msra.mxu0 0.0
    %1006 = vmatprep.subr.mxu0 0.0
    %1007 = vmatpush1.xpose.msra.mxu0 0.0
    %1008 = vmatprep.subr.mxu0 0.0
    %1009 = vmatpush1.xpose.msra.mxu0 0.0
    %1010 = vmatprep.subr.mxu0 0.0
    %1011 = vmatpush1.xpose.msra.mxu0 0.0
    %1012 = vmatprep.subr.mxu0 0.0
    %1013 = vmatpush1.xpose.msra.mxu0 0.0
    %1014 = vmatprep.subr.mxu0 0.0
    %1015 = vmatpush1.xpose.msra.mxu0 0.0
    %1016 = vmatprep.subr.mxu0 0.0
    %1017 = vmatpush1.xpose.msra.mxu0 0.0
    %1018 = vmatprep.subr.mxu0 0.0
    %1019 = vmatpush1.xpose.msra.mxu0 0.0
    %1020 = vmatprep.subr.mxu0 0.0
    %1021 = vmatpush1.xpose.msra.mxu0 0.0
    %1022 = vmatprep.subr.mxu0 0.0
    %1023 = vmatpush1.xpose.msra.mxu0 0.0
    %1024 = vmatprep.mubr.f32.mxu0 0.0
    %1025 = vmatmul.mubr.f32.gmra.mrb[0].mxu0 %v958
    %v1026 = vpop.f32.mrb[0].mxu0
    %v1027 = vadd.f32 0.0, %v1026
    %v1028 = vpop.f32.mrb[0].mxu0
    %1029 = vdwg.mxu0
    %v1031 = vsel %vm156, %v550, 0
    %1033 = vmatprep.subr.mxu0 0.0
    %1034 = vmatpush1.xpose.msra.mxu0 %v882
    %1035 = vmatprep.subr.mxu0 0.0
    %1036 = vmatpush1.xpose.msra.mxu0 %v885
    %1037 = vmatprep.subr.mxu0 0.0
    %1038 = vmatpush1.xpose.msra.mxu0 0.0
    %1039 = vmatprep.subr.mxu0 0.0
    %1040 = vmatpush1.xpose.msra.mxu0 0.0
    %1041 = vmatprep.subr.mxu0 0.0
    %1042 = vmatpush1.xpose.msra.mxu0 0.0
    %1043 = vmatprep.subr.mxu0 0.0
    %1044 = vmatpush1.xpose.msra.mxu0 0.0
    %1045 = vmatprep.subr.mxu0 0.0
    %1046 = vmatpush1.xpose.msra.mxu0 0.0
    %1047 = vmatprep.subr.mxu0 0.0
    %1048 = vmatpush1.xpose.msra.mxu0 0.0
    %1049 = vmatprep.subr.mxu0 0.0
    %1050 = vmatpush1.xpose.msra.mxu0 0.0
    %1051 = vmatprep.subr.mxu0 0.0
    %1052 = vmatpush1.xpose.msra.mxu0 0.0
    %1053 = vmatprep.subr.mxu0 0.0
    %1054 = vmatpush1.xpose.msra.mxu0 0.0
    %1055 = vmatprep.subr.mxu0 0.0
    %1056 = vmatpush1.xpose.msra.mxu0 0.0
    %1057 = vmatprep.subr.mxu0 0.0
    %1058 = vmatpush1.xpose.msra.mxu0 0.0
    %1059 = vmatprep.subr.mxu0 0.0
    %1060 = vmatpush1.xpose.msra.mxu0 0.0
    %1061 = vmatprep.subr.mxu0 0.0
    %1062 = vmatpush1.xpose.msra.mxu0 0.0
    %1063 = vmatprep.subr.mxu0 0.0
    %1064 = vmatpush1.xpose.msra.mxu0 0.0
    %1065 = vmatprep.subr.mxu0 0.0
    %1066 = vmatpush1.xpose.msra.mxu0 0.0
    %1067 = vmatprep.subr.mxu0 0.0
    %1068 = vmatpush1.xpose.msra.mxu0 0.0
    %1069 = vmatprep.subr.mxu0 0.0
    %1070 = vmatpush1.xpose.msra.mxu0 0.0
    %1071 = vmatprep.subr.mxu0 0.0
    %1072 = vmatpush1.xpose.msra.mxu0 0.0
    %1073 = vmatprep.subr.mxu0 0.0
    %1074 = vmatpush1.xpose.msra.mxu0 0.0
    %1075 = vmatprep.subr.mxu0 0.0
    %1076 = vmatpush1.xpose.msra.mxu0 0.0
    %1077 = vmatprep.subr.mxu0 0.0
    %1078 = vmatpush1.xpose.msra.mxu0 0.0
    %1079 = vmatprep.subr.mxu0 0.0
    %1080 = vmatpush1.xpose.msra.mxu0 0.0
    %1081 = vmatprep.subr.mxu0 0.0
    %1082 = vmatpush1.xpose.msra.mxu0 0.0
    %1083 = vmatprep.subr.mxu0 0.0
    %1084 = vmatpush1.xpose.msra.mxu0 0.0
    %1085 = vmatprep.subr.mxu0 0.0
    %1086 = vmatpush1.xpose.msra.mxu0 0.0
    %1087 = vmatprep.subr.mxu0 0.0
    %1088 = vmatpush1.xpose.msra.mxu0 0.0
    %1089 = vmatprep.subr.mxu0 0.0
    %1090 = vmatpush1.xpose.msra.mxu0 0.0
    %1091 = vmatprep.subr.mxu0 0.0
    %1092 = vmatpush1.xpose.msra.mxu0 0.0
    %1093 = vmatprep.subr.mxu0 0.0
    %1094 = vmatpush1.xpose.msra.mxu0 0.0
    %1095 = vmatprep.subr.mxu0 0.0
    %1096 = vmatpush1.xpose.msra.mxu0 0.0
    %1097 = vmatprep.mubr.f32.mxu0 0.0
    %1098 = vmatmul.mubr.f32.gmra.mrb[0].mxu0 %v1031
    %v1099 = vpop.f32.mrb[0].mxu0
    %v1100 = vadd.f32 0.0, %v1099
    %v1101 = vpop.f32.mrb[0].mxu0
    %1102 = vdwg.mxu0
    %v1104 = vsel %vm156, %v551, 0
    %1106 = vmatprep.subr.mxu0 0.0
    %1107 = vmatpush1.xpose.msra.mxu0 %v882
    %1108 = vmatprep.subr.mxu0 0.0
    %1109 = vmatpush1.xpose.msra.mxu0 %v885
    %1110 = vmatprep.subr.mxu0 0.0
    %1111 = vmatpush1.xpose.msra.mxu0 0.0
    %1112 = vmatprep.subr.mxu0 0.0
    %1113 = vmatpush1.xpose.msra.mxu0 0.0
    %1114 = vmatprep.subr.mxu0 0.0
    %1115 = vmatpush1.xpose.msra.mxu0 0.0
    %1116 = vmatprep.subr.mxu0 0.0
    %1117 = vmatpush1.xpose.msra.mxu0 0.0
    %1118 = vmatprep.subr.mxu0 0.0
    %1119 = vmatpush1.xpose.msra.mxu0 0.0
    %1120 = vmatprep.subr.mxu0 0.0
    %1121 = vmatpush1.xpose.msra.mxu0 0.0
    %1122 = vmatprep.subr.mxu0 0.0
    %1123 = vmatpush1.xpose.msra.mxu0 0.0
    %1124 = vmatprep.subr.mxu0 0.0
    %1125 = vmatpush1.xpose.msra.mxu0 0.0
    %1126 = vmatprep.subr.mxu0 0.0
    %1127 = vmatpush1.xpose.msra.mxu0 0.0
    %1128 = vmatprep.subr.mxu0 0.0
    %1129 = vmatpush1.xpose.msra.mxu0 0.0
    %1130 = vmatprep.subr.mxu0 0.0
    %1131 = vmatpush1.xpose.msra.mxu0 0.0
    %1132 = vmatprep.subr.mxu0 0.0
    %1133 = vmatpush1.xpose.msra.mxu0 0.0
    %1134 = vmatprep.subr.mxu0 0.0
    %1135 = vmatpush1.xpose.msra.mxu0 0.0
    %1136 = vmatprep.subr.mxu0 0.0
    %1137 = vmatpush1.xpose.msra.mxu0 0.0
    %1138 = vmatprep.subr.mxu0 0.0
    %1139 = vmatpush1.xpose.msra.mxu0 0.0
    %1140 = vmatprep.subr.mxu0 0.0
    %1141 = vmatpush1.xpose.msra.mxu0 0.0
    %1142 = vmatprep.subr.mxu0 0.0
    %1143 = vmatpush1.xpose.msra.mxu0 0.0
    %1144 = vmatprep.subr.mxu0 0.0
    %1145 = vmatpush1.xpose.msra.mxu0 0.0
    %1146 = vmatprep.subr.mxu0 0.0
    %1147 = vmatpush1.xpose.msra.mxu0 0.0
    %1148 = vmatprep.subr.mxu0 0.0
    %1149 = vmatpush1.xpose.msra.mxu0 0.0
    %1150 = vmatprep.subr.mxu0 0.0
    %1151 = vmatpush1.xpose.msra.mxu0 0.0
    %1152 = vmatprep.subr.mxu0 0.0
    %1153 = vmatpush1.xpose.msra.mxu0 0.0
    %1154 = vmatprep.subr.mxu0 0.0
    %1155 = vmatpush1.xpose.msra.mxu0 0.0
    %1156 = vmatprep.subr.mxu0 0.0
    %1157 = vmatpush1.xpose.msra.mxu0 0.0
    %1158 = vmatprep.subr.mxu0 0.0
    %1159 = vmatpush1.xpose.msra.mxu0 0.0
    %1160 = vmatprep.subr.mxu0 0.0
    %1161 = vmatpush1.xpose.msra.mxu0 0.0
    %1162 = vmatprep.subr.mxu0 0.0
    %1163 = vmatpush1.xpose.msra.mxu0 0.0
    %1164 = vmatprep.subr.mxu0 0.0
    %1165 = vmatpush1.xpose.msra.mxu0 0.0
    %1166 = vmatprep.subr.mxu0 0.0
    %1167 = vmatpush1.xpose.msra.mxu0 0.0
    %1168 = vmatprep.subr.mxu0 0.0
    %1169 = vmatpush1.xpose.msra.mxu0 0.0
    %1170 = vmatprep.mubr.f32.mxu0 0.0
    %1171 = vmatmul.mubr.f32.gmra.mrb[0].mxu0 %v1104
    %v1172 = vpop.f32.mrb[0].mxu0
    %v1173 = vadd.f32 0.0, %v1172
    %v1174 = vpop.f32.mrb[0].mxu0
    %1175 = vdwg.mxu0
    %1177 = vrot.lane.b32.xlu0 %v729, 16
    %v1178 = vpop.permute.xlu0 %1177
    %1181 = vrot.lane.b32.xlu0 %v802, 32
    %v1182 = vpop.permute.xlu0 %1181
    %1185 = vrot.lane.b32.xlu0 %v875, 48
    %v1186 = vpop.permute.xlu0 %1185
    %1189 = vrot.lane.b32.xlu0 %v954, 64
    %v1190 = vpop.permute.xlu0 %1189
    %1193 = vrot.lane.b32.xlu0 %v1027, 80
    %v1194 = vpop.permute.xlu0 %1193
    %1197 = vrot.lane.b32.xlu0 %v1100, 96
    %v1198 = vpop.permute.xlu0 %1197
    %1201 = vrot.lane.b32.xlu0 %v1173, 112
    %v1202 = vpop.permute.xlu0 %1201
    %vm1204 = vcmask 130048
    %v1205 = vsel %vm1204, %v656, %v1178
    %v1206 = vsel %vm156, %v1205, %v1182
    %vm1207 = vcmask 392192
    %v1208 = vsel %vm1207, %v1206, %v1186
    %vm1209 = vcmask 523264
    %v1210 = vsel %vm1209, %v1208, %v1190
    %vm1211 = vcmask 654336
    %v1212 = vsel %vm1211, %v1210, %v1194
    %vm1213 = vcmask 785408
    %v1214 = vsel %vm1213, %v1212, %v1198
    %vm1215 = vcmask 916480
    %v1216 = vsel %vm1215, %v1214, %v1202
    %v1217 = vld [vmem:[#allocation14] sm:$0xff]
    %v1218 = vld [vmem:[#allocation14 + $0x8] sm:$0xff]
    %v1219 = vld [vmem:[#allocation14 + $0x10] sm:$0xff]
    %v1220 = vld [vmem:[#allocation14 + $0x18] sm:$0xff]
    %v1221 = vld [vmem:[#allocation14 + $0x20] sm:$0xff]
    %v1222 = vld [vmem:[#allocation14 + $0x28] sm:$0xff]
    %v1223 = vld [vmem:[#allocation14 + $0x30] sm:$0xff]
    %v1224 = vld [vmem:[#allocation14 + $0x38] sm:$0xff]
    %v1225 = vld [vmem:[#allocation14 + $0x40] sm:$0xff]
    %v1226 = vld [vmem:[#allocation14 + $0x48] sm:$0xff]
    %v1227 = vld [vmem:[#allocation14 + $0x50] sm:$0xff]
    %v1228 = vld [vmem:[#allocation14 + $0x58] sm:$0xff]
    %v1229 = vld [vmem:[#allocation14 + $0x60] sm:$0xff]
    %v1230 = vld [vmem:[#allocation14 + $0x68] sm:$0xff]
    %v1231 = vld [vmem:[#allocation14 + $0x70] sm:$0xff]
    %v1232 = vld [vmem:[#allocation14 + $0x78] sm:$0xff]
    %v1233 = vsub.f32 %v1216, 1.0
    %v1234 = vmul.f32 %v1233, 20.0
    // While loop
    $region70: #{tpu_custom_call.1} parent=1 // loop_pre_header
      _
    $region71: #{tpu_custom_call.1} parent=1 // loop_header
      %s1236 = sphi 0, %s2141
      %s1237 = sphi inf, %s2140
      %v1238 = vphi %v1234, %v2124
      %p1239 = scmp.lt.s32.totalorder %s1236, 10
      %p1240 = scmp.ge.f32.partialorder %s1237, 1e-06
      %p1241 = pnand %p1239, %p1240
      %p1242 = pneg %p1241
    $region72: #{tpu_custom_call.1} parent=1 // loop_header_branch
      %1244 = sbr.rel (%p1241) target = $region76
    $region73: #{tpu_custom_call.1} parent=1 // loop_body
      %v1245 = vmul.f32 %v1238, 1.442695
      %v1246 = vpow.pop %v1245
      %v1247 = vrot.slane %v1246, 4
      %v1248 = vadd.f32 %v1246, %v1247
      %v1249 = vrot.slane %v1248, 2
      %v1250 = vadd.f32 %v1248, %v1249
      %v1251 = vrot.slane %v1250, 1
      %v1252 = vadd.f32 %v1250, %v1251
      %v1253 = vlog2.pop %v1252
      %v1254 = vmul.f32 %v1253, 0.6931472
      %v1255 = vsub.f32 -2.7725885, %v1254
      %v1256 = vadd.f32 %v1238, %v1255
      %v1257 = vmul.f32 %v1256, 1.442695
      %v1258 = vpow.pop %v1257
      %1259 = vmatprep.subr.mxu0 0.0
      %1260 = vmatpush1.msra.mxu0 %v1217
      %1261 = vmatprep.subr.mxu0 0.0
      %1262 = vmatpush1.msra.mxu0 %v1218
      %1263 = vmatprep.subr.mxu0 0.0
      %1264 = vmatpush1.msra.mxu0 %v1219
      %1265 = vmatprep.subr.mxu0 0.0
      %1266 = vmatpush1.msra.mxu0 %v1220
      %1267 = vmatprep.subr.mxu0 0.0
      %1268 = vmatpush1.msra.mxu0 %v1221
      %1269 = vmatprep.subr.mxu0 0.0
      %1270 = vmatpush1.msra.mxu0 %v1222
      %1271 = vmatprep.subr.mxu0 0.0
      %1272 = vmatpush1.msra.mxu0 %v1223
      %1273 = vmatprep.subr.mxu0 0.0
      %1274 = vmatpush1.msra.mxu0 %v1224
      %1275 = vmatprep.subr.mxu0 0.0
      %1276 = vmatpush1.msra.mxu0 %v1225
      %1277 = vmatprep.subr.mxu0 0.0
      %1278 = vmatpush1.msra.mxu0 %v1226
      %1279 = vmatprep.subr.mxu0 0.0
      %1280 = vmatpush1.msra.mxu0 %v1227
      %1281 = vmatprep.subr.mxu0 0.0
      %1282 = vmatpush1.msra.mxu0 %v1228
      %1283 = vmatprep.subr.mxu0 0.0
      %1284 = vmatpush1.msra.mxu0 %v1229
      %1285 = vmatprep.subr.mxu0 0.0
      %1286 = vmatpush1.msra.mxu0 %v1230
      %1287 = vmatprep.subr.mxu0 0.0
      %1288 = vmatpush1.msra.mxu0 %v1231
      %1289 = vmatprep.subr.mxu0 0.0
      %1290 = vmatpush1.msra.mxu0 %v1232
      %1291 = vmatprep.subr.mxu0 0.0
      %1292 = vmatpush1.msra.mxu0 0.0
      %1293 = vmatprep.subr.mxu0 0.0
      %1294 = vmatpush1.msra.mxu0 0.0
      %1295 = vmatprep.subr.mxu0 0.0
      %1296 = vmatpush1.msra.mxu0 0.0
      %1297 = vmatprep.subr.mxu0 0.0
      %1298 = vmatpush1.msra.mxu0 0.0
      %1299 = vmatprep.subr.mxu0 0.0
      %1300 = vmatpush1.msra.mxu0 0.0
      %1301 = vmatprep.subr.mxu0 0.0
      %1302 = vmatpush1.msra.mxu0 0.0
      %1303 = vmatprep.subr.mxu0 0.0
      %1304 = vmatpush1.msra.mxu0 0.0
      %1305 = vmatprep.subr.mxu0 0.0
      %1306 = vmatpush1.msra.mxu0 0.0
      %1307 = vmatprep.subr.mxu0 0.0
      %1308 = vmatpush1.msra.mxu0 0.0
      %1309 = vmatprep.subr.mxu0 0.0
      %1310 = vmatpush1.msra.mxu0 0.0
      %1311 = vmatprep.subr.mxu0 0.0
      %1312 = vmatpush1.msra.mxu0 0.0
      %1313 = vmatprep.subr.mxu0 0.0
      %1314 = vmatpush1.msra.mxu0 0.0
      %1315 = vmatprep.subr.mxu0 0.0
      %1316 = vmatpush1.msra.mxu0 0.0
      %1317 = vmatprep.subr.mxu0 0.0
      %1318 = vmatpush1.msra.mxu0 0.0
      %1319 = vmatprep.subr.mxu0 0.0
      %1320 = vmatpush1.msra.mxu0 0.0
      %1321 = vmatprep.subr.mxu0 0.0
      %1322 = vmatpush1.msra.mxu0 0.0
      %1323 = vmatprep.mubr.f32.mxu0 0.0
      %1324 = vmatmul.mubr.f32.gmra.mrb[0].mxu0 %v1258
      %v1325 = vpop.f32.mrb[0].mxu0
      %v1326 = vadd.f32 0.0, %v1325
      %v1327 = vpop.f32.mrb[0].mxu0
      %1328 = vdwg.mxu0
      %v1329 = vlog2.pop %v1326
      %v1330 = vmul.f32 %v1329, 0.6931472
      %v1331 = vsub.f32 -2.0794415, %v1330
      %v1332 = vadd.f32 %v1256, %v1331
      %v1333 = vmul.f32 %v1332, 1.442695
      %v1334 = vpow.pop %v1333
      %v1335 = vrot.slane %v1334, 4
      %v1336 = vadd.f32 %v1334, %v1335
      %v1337 = vrot.slane %v1336, 2
      %v1338 = vadd.f32 %v1336, %v1337
      %v1339 = vrot.slane %v1338, 1
      %v1340 = vadd.f32 %v1338, %v1339
      %v1341 = vlog2.pop %v1340
      %v1342 = vmul.f32 %v1341, 0.6931472
      %v1343 = vsub.f32 -2.7725885, %v1342
      %v1344 = vadd.f32 %v1332, %v1343
      %v1345 = vmul.f32 %v1344, 1.442695
      %v1346 = vpow.pop %v1345
      %1347 = vmatprep.subr.mxu0 0.0
      %1348 = vmatpush1.msra.mxu0 %v1217
      %1349 = vmatprep.subr.mxu0 0.0
      %1350 = vmatpush1.msra.mxu0 %v1218
      %1351 = vmatprep.subr.mxu0 0.0
      %1352 = vmatpush1.msra.mxu0 %v1219
      %1353 = vmatprep.subr.mxu0 0.0
      %1354 = vmatpush1.msra.mxu0 %v1220
      %1355 = vmatprep.subr.mxu0 0.0
      %1356 = vmatpush1.msra.mxu0 %v1221
      %1357 = vmatprep.subr.mxu0 0.0
      %1358 = vmatpush1.msra.mxu0 %v1222
      %1359 = vmatprep.subr.mxu0 0.0
      %1360 = vmatpush1.msra.mxu0 %v1223
      %1361 = vmatprep.subr.mxu0 0.0
      %1362 = vmatpush1.msra.mxu0 %v1224
      %1363 = vmatprep.subr.mxu0 0.0
      %1364 = vmatpush1.msra.mxu0 %v1225
      %1365 = vmatprep.subr.mxu0 0.0
      %1366 = vmatpush1.msra.mxu0 %v1226
      %1367 = vmatprep.subr.mxu0 0.0
      %1368 = vmatpush1.msra.mxu0 %v1227
      %1369 = vmatprep.subr.mxu0 0.0
      %1370 = vmatpush1.msra.mxu0 %v1228
      %1371 = vmatprep.subr.mxu0 0.0
      %1372 = vmatpush1.msra.mxu0 %v1229
      %1373 = vmatprep.subr.mxu0 0.0
      %1374 = vmatpush1.msra.mxu0 %v1230
      %1375 = vmatprep.subr.mxu0 0.0
      %1376 = vmatpush1.msra.mxu0 %v1231
      %1377 = vmatprep.subr.mxu0 0.0
      %1378 = vmatpush1.msra.mxu0 %v1232
      %1379 = vmatprep.subr.mxu0 0.0
      %1380 = vmatpush1.msra.mxu0 0.0
      %1381 = vmatprep.subr.mxu0 0.0
      %1382 = vmatpush1.msra.mxu0 0.0
      %1383 = vmatprep.subr.mxu0 0.0
      %1384 = vmatpush1.msra.mxu0 0.0
      %1385 = vmatprep.subr.mxu0 0.0
      %1386 = vmatpush1.msra.mxu0 0.0
      %1387 = vmatprep.subr.mxu0 0.0
      %1388 = vmatpush1.msra.mxu0 0.0
      %1389 = vmatprep.subr.mxu0 0.0
      %1390 = vmatpush1.msra.mxu0 0.0
      %1391 = vmatprep.subr.mxu0 0.0
      %1392 = vmatpush1.msra.mxu0 0.0
      %1393 = vmatprep.subr.mxu0 0.0
      %1394 = vmatpush1.msra.mxu0 0.0
      %1395 = vmatprep.subr.mxu0 0.0
      %1396 = vmatpush1.msra.mxu0 0.0
      %1397 = vmatprep.subr.mxu0 0.0
      %1398 = vmatpush1.msra.mxu0 0.0
      %1399 = vmatprep.subr.mxu0 0.0
      %1400 = vmatpush1.msra.mxu0 0.0
      %1401 = vmatprep.subr.mxu0 0.0
      %1402 = vmatpush1.msra.mxu0 0.0
      %1403 = vmatprep.subr.mxu0 0.0
      %1404 = vmatpush1.msra.mxu0 0.0
      %1405 = vmatprep.subr.mxu0 0.0
      %1406 = vmatpush1.msra.mxu0 0.0
      %1407 = vmatprep.subr.mxu0 0.0
      %1408 = vmatpush1.msra.mxu0 0.0
      %1409 = vmatprep.subr.mxu0 0.0
      %1410 = vmatpush1.msra.mxu0 0.0
      %1411 = vmatprep.mubr.f32.mxu0 0.0
      %1412 = vmatmul.mubr.f32.gmra.mrb[0].mxu0 %v1346
      %v1413 = vpop.f32.mrb[0].mxu0
      %v1414 = vadd.f32 0.0, %v1413
      %v1415 = vpop.f32.mrb[0].mxu0
      %1416 = vdwg.mxu0
      %v1417 = vlog2.pop %v1414
      %v1418 = vmul.f32 %v1417, 0.6931472
      %v1419 = vsub.f32 -2.0794415, %v1418
      %v1420 = vadd.f32 %v1344, %v1419
      %v1421 = vmul.f32 %v1420, 1.442695
      %v1422 = vpow.pop %v1421
      %v1423 = vrot.slane %v1422, 4
      %v1424 = vadd.f32 %v1422, %v1423
      %v1425 = vrot.slane %v1424, 2
      %v1426 = vadd.f32 %v1424, %v1425
      %v1427 = vrot.slane %v1426, 1
      %v1428 = vadd.f32 %v1426, %v1427
      %v1429 = vlog2.pop %v1428
      %v1430 = vmul.f32 %v1429, 0.6931472
      %v1431 = vsub.f32 -2.7725885, %v1430
      %v1432 = vadd.f32 %v1420, %v1431
      %v1433 = vmul.f32 %v1432, 1.442695
      %v1434 = vpow.pop %v1433
      %1435 = vmatprep.subr.mxu0 0.0
      %1436 = vmatpush1.msra.mxu0 %v1217
      %1437 = vmatprep.subr.mxu0 0.0
      %1438 = vmatpush1.msra.mxu0 %v1218
      %1439 = vmatprep.subr.mxu0 0.0
      %1440 = vmatpush1.msra.mxu0 %v1219
      %1441 = vmatprep.subr.mxu0 0.0
      %1442 = vmatpush1.msra.mxu0 %v1220
      %1443 = vmatprep.subr.mxu0 0.0
      %1444 = vmatpush1.msra.mxu0 %v1221
      %1445 = vmatprep.subr.mxu0 0.0
      %1446 = vmatpush1.msra.mxu0 %v1222
      %1447 = vmatprep.subr.mxu0 0.0
      %1448 = vmatpush1.msra.mxu0 %v1223
      %1449 = vmatprep.subr.mxu0 0.0
      %1450 = vmatpush1.msra.mxu0 %v1224
      %1451 = vmatprep.subr.mxu0 0.0
      %1452 = vmatpush1.msra.mxu0 %v1225
      %1453 = vmatprep.subr.mxu0 0.0
      %1454 = vmatpush1.msra.mxu0 %v1226
      %1455 = vmatprep.subr.mxu0 0.0
      %1456 = vmatpush1.msra.mxu0 %v1227
      %1457 = vmatprep.subr.mxu0 0.0
      %1458 = vmatpush1.msra.mxu0 %v1228
      %1459 = vmatprep.subr.mxu0 0.0
      %1460 = vmatpush1.msra.mxu0 %v1229
      %1461 = vmatprep.subr.mxu0 0.0
      %1462 = vmatpush1.msra.mxu0 %v1230
      %1463 = vmatprep.subr.mxu0 0.0
      %1464 = vmatpush1.msra.mxu0 %v1231
      %1465 = vmatprep.subr.mxu0 0.0
      %1466 = vmatpush1.msra.mxu0 %v1232
      %1467 = vmatprep.subr.mxu0 0.0
      %1468 = vmatpush1.msra.mxu0 0.0
      %1469 = vmatprep.subr.mxu0 0.0
      %1470 = vmatpush1.msra.mxu0 0.0
      %1471 = vmatprep.subr.mxu0 0.0
      %1472 = vmatpush1.msra.mxu0 0.0
      %1473 = vmatprep.subr.mxu0 0.0
      %1474 = vmatpush1.msra.mxu0 0.0
      %1475 = vmatprep.subr.mxu0 0.0
      %1476 = vmatpush1.msra.mxu0 0.0
      %1477 = vmatprep.subr.mxu0 0.0
      %1478 = vmatpush1.msra.mxu0 0.0
      %1479 = vmatprep.subr.mxu0 0.0
      %1480 = vmatpush1.msra.mxu0 0.0
      %1481 = vmatprep.subr.mxu0 0.0
      %1482 = vmatpush1.msra.mxu0 0.0
      %1483 = vmatprep.subr.mxu0 0.0
      %1484 = vmatpush1.msra.mxu0 0.0
      %1485 = vmatprep.subr.mxu0 0.0
      %1486 = vmatpush1.msra.mxu0 0.0
      %1487 = vmatprep.subr.mxu0 0.0
      %1488 = vmatpush1.msra.mxu0 0.0
      %1489 = vmatprep.subr.mxu0 0.0
      %1490 = vmatpush1.msra.mxu0 0.0
      %1491 = vmatprep.subr.mxu0 0.0
      %1492 = vmatpush1.msra.mxu0 0.0
      %1493 = vmatprep.subr.mxu0 0.0
      %1494 = vmatpush1.msra.mxu0 0.0
      %1495 = vmatprep.subr.mxu0 0.0
      %1496 = vmatpush1.msra.mxu0 0.0
      %1497 = vmatprep.subr.mxu0 0.0
      %1498 = vmatpush1.msra.mxu0 0.0
      %1499 = vmatprep.mubr.f32.mxu0 0.0
      %1500 = vmatmul.mubr.f32.gmra.mrb[0].mxu0 %v1434
      %v1501 = vpop.f32.mrb[0].mxu0
      %v1502 = vadd.f32 0.0, %v1501
      %v1503 = vpop.f32.mrb[0].mxu0
      %1504 = vdwg.mxu0
      %v1505 = vlog2.pop %v1502
      %v1506 = vmul.f32 %v1505, 0.6931472
      %v1507 = vsub.f32 -2.0794415, %v1506
      %v1508 = vadd.f32 %v1432, %v1507
      %v1509 = vmul.f32 %v1508, 1.442695
      %v1510 = vpow.pop %v1509
      %v1511 = vrot.slane %v1510, 4
      %v1512 = vadd.f32 %v1510, %v1511
      %v1513 = vrot.slane %v1512, 2
      %v1514 = vadd.f32 %v1512, %v1513
      %v1515 = vrot.slane %v1514, 1
      %v1516 = vadd.f32 %v1514, %v1515
      %v1517 = vlog2.pop %v1516
      %v1518 = vmul.f32 %v1517, 0.6931472
      %v1519 = vsub.f32 -2.7725885, %v1518
      %v1520 = vadd.f32 %v1508, %v1519
      %v1521 = vmul.f32 %v1520, 1.442695
      %v1522 = vpow.pop %v1521
      %1523 = vmatprep.subr.mxu0 0.0
      %1524 = vmatpush1.msra.mxu0 %v1217
      %1525 = vmatprep.subr.mxu0 0.0
      %1526 = vmatpush1.msra.mxu0 %v1218
      %1527 = vmatprep.subr.mxu0 0.0
      %1528 = vmatpush1.msra.mxu0 %v1219
      %1529 = vmatprep.subr.mxu0 0.0
      %1530 = vmatpush1.msra.mxu0 %v1220
      %1531 = vmatprep.subr.mxu0 0.0
      %1532 = vmatpush1.msra.mxu0 %v1221
      %1533 = vmatprep.subr.mxu0 0.0
      %1534 = vmatpush1.msra.mxu0 %v1222
      %1535 = vmatprep.subr.mxu0 0.0
      %1536 = vmatpush1.msra.mxu0 %v1223
      %1537 = vmatprep.subr.mxu0 0.0
      %1538 = vmatpush1.msra.mxu0 %v1224
      %1539 = vmatprep.subr.mxu0 0.0
      %1540 = vmatpush1.msra.mxu0 %v1225
      %1541 = vmatprep.subr.mxu0 0.0
      %1542 = vmatpush1.msra.mxu0 %v1226
      %1543 = vmatprep.subr.mxu0 0.0
      %1544 = vmatpush1.msra.mxu0 %v1227
      %1545 = vmatprep.subr.mxu0 0.0
      %1546 = vmatpush1.msra.mxu0 %v1228
      %1547 = vmatprep.subr.mxu0 0.0
      %1548 = vmatpush1.msra.mxu0 %v1229
      %1549 = vmatprep.subr.mxu0 0.0
      %1550 = vmatpush1.msra.mxu0 %v1230
      %1551 = vmatprep.subr.mxu0 0.0
      %1552 = vmatpush1.msra.mxu0 %v1231
      %1553 = vmatprep.subr.mxu0 0.0
      %1554 = vmatpush1.msra.mxu0 %v1232
      %1555 = vmatprep.subr.mxu0 0.0
      %1556 = vmatpush1.msra.mxu0 0.0
      %1557 = vmatprep.subr.mxu0 0.0
      %1558 = vmatpush1.msra.mxu0 0.0
      %1559 = vmatprep.subr.mxu0 0.0
      %1560 = vmatpush1.msra.mxu0 0.0
      %1561 = vmatprep.subr.mxu0 0.0
      %1562 = vmatpush1.msra.mxu0 0.0
      %1563 = vmatprep.subr.mxu0 0.0
      %1564 = vmatpush1.msra.mxu0 0.0
      %1565 = vmatprep.subr.mxu0 0.0
      %1566 = vmatpush1.msra.mxu0 0.0
      %1567 = vmatprep.subr.mxu0 0.0
      %1568 = vmatpush1.msra.mxu0 0.0
      %1569 = vmatprep.subr.mxu0 0.0
      %1570 = vmatpush1.msra.mxu0 0.0
      %1571 = vmatprep.subr.mxu0 0.0
      %1572 = vmatpush1.msra.mxu0 0.0
      %1573 = vmatprep.subr.mxu0 0.0
      %1574 = vmatpush1.msra.mxu0 0.0
      %1575 = vmatprep.subr.mxu0 0.0
      %1576 = vmatpush1.msra.mxu0 0.0
      %1577 = vmatprep.subr.mxu0 0.0
      %1578 = vmatpush1.msra.mxu0 0.0
      %1579 = vmatprep.subr.mxu0 0.0
      %1580 = vmatpush1.msra.mxu0 0.0
      %1581 = vmatprep.subr.mxu0 0.0
      %1582 = vmatpush1.msra.mxu0 0.0
      %1583 = vmatprep.subr.mxu0 0.0
      %1584 = vmatpush1.msra.mxu0 0.0
      %1585 = vmatprep.subr.mxu0 0.0
      %1586 = vmatpush1.msra.mxu0 0.0
      %1587 = vmatprep.mubr.f32.mxu0 0.0
      %1588 = vmatmul.mubr.f32.gmra.mrb[0].mxu0 %v1522
      %v1589 = vpop.f32.mrb[0].mxu0
      %v1590 = vadd.f32 0.0, %v1589
      %v1591 = vpop.f32.mrb[0].mxu0
      %1592 = vdwg.mxu0
      %v1593 = vlog2.pop %v1590
      %v1594 = vmul.f32 %v1593, 0.6931472
      %v1595 = vsub.f32 -2.0794415, %v1594
      %v1596 = vadd.f32 %v1520, %v1595
      %v1597 = vmul.f32 %v1596, 1.442695
      %v1598 = vpow.pop %v1597
      %v1599 = vrot.slane %v1598, 4
      %v1600 = vadd.f32 %v1598, %v1599
      %v1601 = vrot.slane %v1600, 2
      %v1602 = vadd.f32 %v1600, %v1601
      %v1603 = vrot.slane %v1602, 1
      %v1604 = vadd.f32 %v1602, %v1603
      %v1605 = vlog2.pop %v1604
      %v1606 = vmul.f32 %v1605, 0.6931472
      %v1607 = vsub.f32 -2.7725885, %v1606
      %v1608 = vadd.f32 %v1596, %v1607
      %v1609 = vmul.f32 %v1608, 1.442695
      %v1610 = vpow.pop %v1609
      %1611 = vmatprep.subr.mxu0 0.0
      %1612 = vmatpush1.msra.mxu0 %v1217
      %1613 = vmatprep.subr.mxu0 0.0
      %1614 = vmatpush1.msra.mxu0 %v1218
      %1615 = vmatprep.subr.mxu0 0.0
      %1616 = vmatpush1.msra.mxu0 %v1219
      %1617 = vmatprep.subr.mxu0 0.0
      %1618 = vmatpush1.msra.mxu0 %v1220
      %1619 = vmatprep.subr.mxu0 0.0
      %1620 = vmatpush1.msra.mxu0 %v1221
      %1621 = vmatprep.subr.mxu0 0.0
      %1622 = vmatpush1.msra.mxu0 %v1222
      %1623 = vmatprep.subr.mxu0 0.0
      %1624 = vmatpush1.msra.mxu0 %v1223
      %1625 = vmatprep.subr.mxu0 0.0
      %1626 = vmatpush1.msra.mxu0 %v1224
      %1627 = vmatprep.subr.mxu0 0.0
      %1628 = vmatpush1.msra.mxu0 %v1225
      %1629 = vmatprep.subr.mxu0 0.0
      %1630 = vmatpush1.msra.mxu0 %v1226
      %1631 = vmatprep.subr.mxu0 0.0
      %1632 = vmatpush1.msra.mxu0 %v1227
      %1633 = vmatprep.subr.mxu0 0.0
      %1634 = vmatpush1.msra.mxu0 %v1228
      %1635 = vmatprep.subr.mxu0 0.0
      %1636 = vmatpush1.msra.mxu0 %v1229
      %1637 = vmatprep.subr.mxu0 0.0
      %1638 = vmatpush1.msra.mxu0 %v1230
      %1639 = vmatprep.subr.mxu0 0.0
      %1640 = vmatpush1.msra.mxu0 %v1231
      %1641 = vmatprep.subr.mxu0 0.0
      %1642 = vmatpush1.msra.mxu0 %v1232
      %1643 = vmatprep.subr.mxu0 0.0
      %1644 = vmatpush1.msra.mxu0 0.0
      %1645 = vmatprep.subr.mxu0 0.0
      %1646 = vmatpush1.msra.mxu0 0.0
      %1647 = vmatprep.subr.mxu0 0.0
      %1648 = vmatpush1.msra.mxu0 0.0
      %1649 = vmatprep.subr.mxu0 0.0
      %1650 = vmatpush1.msra.mxu0 0.0
      %1651 = vmatprep.subr.mxu0 0.0
      %1652 = vmatpush1.msra.mxu0 0.0
      %1653 = vmatprep.subr.mxu0 0.0
      %1654 = vmatpush1.msra.mxu0 0.0
      %1655 = vmatprep.subr.mxu0 0.0
      %1656 = vmatpush1.msra.mxu0 0.0
      %1657 = vmatprep.subr.mxu0 0.0
      %1658 = vmatpush1.msra.mxu0 0.0
      %1659 = vmatprep.subr.mxu0 0.0
      %1660 = vmatpush1.msra.mxu0 0.0
      %1661 = vmatprep.subr.mxu0 0.0
      %1662 = vmatpush1.msra.mxu0 0.0
      %1663 = vmatprep.subr.mxu0 0.0
      %1664 = vmatpush1.msra.mxu0 0.0
      %1665 = vmatprep.subr.mxu0 0.0
      %1666 = vmatpush1.msra.mxu0 0.0
      %1667 = vmatprep.subr.mxu0 0.0
      %1668 = vmatpush1.msra.mxu0 0.0
      %1669 = vmatprep.subr.mxu0 0.0
      %1670 = vmatpush1.msra.mxu0 0.0
      %1671 = vmatprep.subr.mxu0 0.0
      %1672 = vmatpush1.msra.mxu0 0.0
      %1673 = vmatprep.subr.mxu0 0.0
      %1674 = vmatpush1.msra.mxu0 0.0
      %1675 = vmatprep.mubr.f32.mxu0 0.0
      %1676 = vmatmul.mubr.f32.gmra.mrb[0].mxu0 %v1610
      %v1677 = vpop.f32.mrb[0].mxu0
      %v1678 = vadd.f32 0.0, %v1677
      %v1679 = vpop.f32.mrb[0].mxu0
      %1680 = vdwg.mxu0
      %v1681 = vlog2.pop %v1678
      %v1682 = vmul.f32 %v1681, 0.6931472
      %v1683 = vsub.f32 -2.0794415, %v1682
      %v1684 = vadd.f32 %v1608, %v1683
      %v1685 = vmul.f32 %v1684, 1.442695
      %v1686 = vpow.pop %v1685
      %v1687 = vrot.slane %v1686, 4
      %v1688 = vadd.f32 %v1686, %v1687
      %v1689 = vrot.slane %v1688, 2
      %v1690 = vadd.f32 %v1688, %v1689
      %v1691 = vrot.slane %v1690, 1
      %v1692 = vadd.f32 %v1690, %v1691
      %v1693 = vlog2.pop %v1692
      %v1694 = vmul.f32 %v1693, 0.6931472
      %v1695 = vsub.f32 -2.7725885, %v1694
      %v1696 = vadd.f32 %v1684, %v1695
      %v1697 = vmul.f32 %v1696, 1.442695
      %v1698 = vpow.pop %v1697
      %1699 = vmatprep.subr.mxu0 0.0
      %1700 = vmatpush1.msra.mxu0 %v1217
      %1701 = vmatprep.subr.mxu0 0.0
      %1702 = vmatpush1.msra.mxu0 %v1218
      %1703 = vmatprep.subr.mxu0 0.0
      %1704 = vmatpush1.msra.mxu0 %v1219
      %1705 = vmatprep.subr.mxu0 0.0
      %1706 = vmatpush1.msra.mxu0 %v1220
      %1707 = vmatprep.subr.mxu0 0.0
      %1708 = vmatpush1.msra.mxu0 %v1221
      %1709 = vmatprep.subr.mxu0 0.0
      %1710 = vmatpush1.msra.mxu0 %v1222
      %1711 = vmatprep.subr.mxu0 0.0
      %1712 = vmatpush1.msra.mxu0 %v1223
      %1713 = vmatprep.subr.mxu0 0.0
      %1714 = vmatpush1.msra.mxu0 %v1224
      %1715 = vmatprep.subr.mxu0 0.0
      %1716 = vmatpush1.msra.mxu0 %v1225
      %1717 = vmatprep.subr.mxu0 0.0
      %1718 = vmatpush1.msra.mxu0 %v1226
      %1719 = vmatprep.subr.mxu0 0.0
      %1720 = vmatpush1.msra.mxu0 %v1227
      %1721 = vmatprep.subr.mxu0 0.0
      %1722 = vmatpush1.msra.mxu0 %v1228
      %1723 = vmatprep.subr.mxu0 0.0
      %1724 = vmatpush1.msra.mxu0 %v1229
      %1725 = vmatprep.subr.mxu0 0.0
      %1726 = vmatpush1.msra.mxu0 %v1230
      %1727 = vmatprep.subr.mxu0 0.0
      %1728 = vmatpush1.msra.mxu0 %v1231
      %1729 = vmatprep.subr.mxu0 0.0
      %1730 = vmatpush1.msra.mxu0 %v1232
      %1731 = vmatprep.subr.mxu0 0.0
      %1732 = vmatpush1.msra.mxu0 0.0
      %1733 = vmatprep.subr.mxu0 0.0
      %1734 = vmatpush1.msra.mxu0 0.0
      %1735 = vmatprep.subr.mxu0 0.0
      %1736 = vmatpush1.msra.mxu0 0.0
      %1737 = vmatprep.subr.mxu0 0.0
      %1738 = vmatpush1.msra.mxu0 0.0
      %1739 = vmatprep.subr.mxu0 0.0
      %1740 = vmatpush1.msra.mxu0 0.0
      %1741 = vmatprep.subr.mxu0 0.0
      %1742 = vmatpush1.msra.mxu0 0.0
      %1743 = vmatprep.subr.mxu0 0.0
      %1744 = vmatpush1.msra.mxu0 0.0
      %1745 = vmatprep.subr.mxu0 0.0
      %1746 = vmatpush1.msra.mxu0 0.0
      %1747 = vmatprep.subr.mxu0 0.0
      %1748 = vmatpush1.msra.mxu0 0.0
      %1749 = vmatprep.subr.mxu0 0.0
      %1750 = vmatpush1.msra.mxu0 0.0
      %1751 = vmatprep.subr.mxu0 0.0
      %1752 = vmatpush1.msra.mxu0 0.0
      %1753 = vmatprep.subr.mxu0 0.0
      %1754 = vmatpush1.msra.mxu0 0.0
      %1755 = vmatprep.subr.mxu0 0.0
      %1756 = vmatpush1.msra.mxu0 0.0
      %1757 = vmatprep.subr.mxu0 0.0
      %1758 = vmatpush1.msra.mxu0 0.0
      %1759 = vmatprep.subr.mxu0 0.0
      %1760 = vmatpush1.msra.mxu0 0.0
      %1761 = vmatprep.subr.mxu0 0.0
      %1762 = vmatpush1.msra.mxu0 0.0
      %1763 = vmatprep.mubr.f32.mxu0 0.0
      %1764 = vmatmul.mubr.f32.gmra.mrb[0].mxu0 %v1698
      %v1765 = vpop.f32.mrb[0].mxu0
      %v1766 = vadd.f32 0.0, %v1765
      %v1767 = vpop.f32.mrb[0].mxu0
      %1768 = vdwg.mxu0
      %v1769 = vlog2.pop %v1766
      %v1770 = vmul.f32 %v1769, 0.6931472
      %v1771 = vsub.f32 -2.0794415, %v1770
      %v1772 = vadd.f32 %v1696, %v1771
      %v1773 = vmul.f32 %v1772, 1.442695
      %v1774 = vpow.pop %v1773
      %v1775 = vrot.slane %v1774, 4
      %v1776 = vadd.f32 %v1774, %v1775
      %v1777 = vrot.slane %v1776, 2
      %v1778 = vadd.f32 %v1776, %v1777
      %v1779 = vrot.slane %v1778, 1
      %v1780 = vadd.f32 %v1778, %v1779
      %v1781 = vlog2.pop %v1780
      %v1782 = vmul.f32 %v1781, 0.6931472
      %v1783 = vsub.f32 -2.7725885, %v1782
      %v1784 = vadd.f32 %v1772, %v1783
      %v1785 = vmul.f32 %v1784, 1.442695
      %v1786 = vpow.pop %v1785
      %1787 = vmatprep.subr.mxu0 0.0
      %1788 = vmatpush1.msra.mxu0 %v1217
      %1789 = vmatprep.subr.mxu0 0.0
      %1790 = vmatpush1.msra.mxu0 %v1218
      %1791 = vmatprep.subr.mxu0 0.0
      %1792 = vmatpush1.msra.mxu0 %v1219
      %1793 = vmatprep.subr.mxu0 0.0
      %1794 = vmatpush1.msra.mxu0 %v1220
      %1795 = vmatprep.subr.mxu0 0.0
      %1796 = vmatpush1.msra.mxu0 %v1221
      %1797 = vmatprep.subr.mxu0 0.0
      %1798 = vmatpush1.msra.mxu0 %v1222
      %1799 = vmatprep.subr.mxu0 0.0
      %1800 = vmatpush1.msra.mxu0 %v1223
      %1801 = vmatprep.subr.mxu0 0.0
      %1802 = vmatpush1.msra.mxu0 %v1224
      %1803 = vmatprep.subr.mxu0 0.0
      %1804 = vmatpush1.msra.mxu0 %v1225
      %1805 = vmatprep.subr.mxu0 0.0
      %1806 = vmatpush1.msra.mxu0 %v1226
      %1807 = vmatprep.subr.mxu0 0.0
      %1808 = vmatpush1.msra.mxu0 %v1227
      %1809 = vmatprep.subr.mxu0 0.0
      %1810 = vmatpush1.msra.mxu0 %v1228
      %1811 = vmatprep.subr.mxu0 0.0
      %1812 = vmatpush1.msra.mxu0 %v1229
      %1813 = vmatprep.subr.mxu0 0.0
      %1814 = vmatpush1.msra.mxu0 %v1230
      %1815 = vmatprep.subr.mxu0 0.0
      %1816 = vmatpush1.msra.mxu0 %v1231
      %1817 = vmatprep.subr.mxu0 0.0
      %1818 = vmatpush1.msra.mxu0 %v1232
      %1819 = vmatprep.subr.mxu0 0.0
      %1820 = vmatpush1.msra.mxu0 0.0
      %1821 = vmatprep.subr.mxu0 0.0
      %1822 = vmatpush1.msra.mxu0 0.0
      %1823 = vmatprep.subr.mxu0 0.0
      %1824 = vmatpush1.msra.mxu0 0.0
      %1825 = vmatprep.subr.mxu0 0.0
      %1826 = vmatpush1.msra.mxu0 0.0
      %1827 = vmatprep.subr.mxu0 0.0
      %1828 = vmatpush1.msra.mxu0 0.0
      %1829 = vmatprep.subr.mxu0 0.0
      %1830 = vmatpush1.msra.mxu0 0.0
      %1831 = vmatprep.subr.mxu0 0.0
      %1832 = vmatpush1.msra.mxu0 0.0
      %1833 = vmatprep.subr.mxu0 0.0
      %1834 = vmatpush1.msra.mxu0 0.0
      %1835 = vmatprep.subr.mxu0 0.0
      %1836 = vmatpush1.msra.mxu0 0.0
      %1837 = vmatprep.subr.mxu0 0.0
      %1838 = vmatpush1.msra.mxu0 0.0
      %1839 = vmatprep.subr.mxu0 0.0
      %1840 = vmatpush1.msra.mxu0 0.0
      %1841 = vmatprep.subr.mxu0 0.0
      %1842 = vmatpush1.msra.mxu0 0.0
      %1843 = vmatprep.subr.mxu0 0.0
      %1844 = vmatpush1.msra.mxu0 0.0
      %1845 = vmatprep.subr.mxu0 0.0
      %1846 = vmatpush1.msra.mxu0 0.0
      %1847 = vmatprep.subr.mxu0 0.0
      %1848 = vmatpush1.msra.mxu0 0.0
      %1849 = vmatprep.subr.mxu0 0.0
      %1850 = vmatpush1.msra.mxu0 0.0
      %1851 = vmatprep.mubr.f32.mxu0 0.0
      %1852 = vmatmul.mubr.f32.gmra.mrb[0].mxu0 %v1786
      %v1853 = vpop.f32.mrb[0].mxu0
      %v1854 = vadd.f32 0.0, %v1853
      %v1855 = vpop.f32.mrb[0].mxu0
      %1856 = vdwg.mxu0
      %v1857 = vlog2.pop %v1854
      %v1858 = vmul.f32 %v1857, 0.6931472
      %v1859 = vsub.f32 -2.0794415, %v1858
      %v1860 = vadd.f32 %v1784, %v1859
      %v1861 = vmul.f32 %v1860, 1.442695
      %v1862 = vpow.pop %v1861
      %v1863 = vrot.slane %v1862, 4
      %v1864 = vadd.f32 %v1862, %v1863
      %v1865 = vrot.slane %v1864, 2
      %v1866 = vadd.f32 %v1864, %v1865
      %v1867 = vrot.slane %v1866, 1
      %v1868 = vadd.f32 %v1866, %v1867
      %v1869 = vlog2.pop %v1868
      %v1870 = vmul.f32 %v1869, 0.6931472
      %v1871 = vsub.f32 -2.7725885, %v1870
      %v1872 = vadd.f32 %v1860, %v1871
      %v1873 = vmul.f32 %v1872, 1.442695
      %v1874 = vpow.pop %v1873
      %1875 = vmatprep.subr.mxu0 0.0
      %1876 = vmatpush1.msra.mxu0 %v1217
      %1877 = vmatprep.subr.mxu0 0.0
      %1878 = vmatpush1.msra.mxu0 %v1218
      %1879 = vmatprep.subr.mxu0 0.0
      %1880 = vmatpush1.msra.mxu0 %v1219
      %1881 = vmatprep.subr.mxu0 0.0
      %1882 = vmatpush1.msra.mxu0 %v1220
      %1883 = vmatprep.subr.mxu0 0.0
      %1884 = vmatpush1.msra.mxu0 %v1221
      %1885 = vmatprep.subr.mxu0 0.0
      %1886 = vmatpush1.msra.mxu0 %v1222
      %1887 = vmatprep.subr.mxu0 0.0
      %1888 = vmatpush1.msra.mxu0 %v1223
      %1889 = vmatprep.subr.mxu0 0.0
      %1890 = vmatpush1.msra.mxu0 %v1224
      %1891 = vmatprep.subr.mxu0 0.0
      %1892 = vmatpush1.msra.mxu0 %v1225
      %1893 = vmatprep.subr.mxu0 0.0
      %1894 = vmatpush1.msra.mxu0 %v1226
      %1895 = vmatprep.subr.mxu0 0.0
      %1896 = vmatpush1.msra.mxu0 %v1227
      %1897 = vmatprep.subr.mxu0 0.0
      %1898 = vmatpush1.msra.mxu0 %v1228
      %1899 = vmatprep.subr.mxu0 0.0
      %1900 = vmatpush1.msra.mxu0 %v1229
      %1901 = vmatprep.subr.mxu0 0.0
      %1902 = vmatpush1.msra.mxu0 %v1230
      %1903 = vmatprep.subr.mxu0 0.0
      %1904 = vmatpush1.msra.mxu0 %v1231
      %1905 = vmatprep.subr.mxu0 0.0
      %1906 = vmatpush1.msra.mxu0 %v1232
      %1907 = vmatprep.subr.mxu0 0.0
      %1908 = vmatpush1.msra.mxu0 0.0
      %1909 = vmatprep.subr.mxu0 0.0
      %1910 = vmatpush1.msra.mxu0 0.0
      %1911 = vmatprep.subr.mxu0 0.0
      %1912 = vmatpush1.msra.mxu0 0.0
      %1913 = vmatprep.subr.mxu0 0.0
      %1914 = vmatpush1.msra.mxu0 0.0
      %1915 = vmatprep.subr.mxu0 0.0
      %1916 = vmatpush1.msra.mxu0 0.0
      %1917 = vmatprep.subr.mxu0 0.0
      %1918 = vmatpush1.msra.mxu0 0.0
      %1919 = vmatprep.subr.mxu0 0.0
      %1920 = vmatpush1.msra.mxu0 0.0
      %1921 = vmatprep.subr.mxu0 0.0
      %1922 = vmatpush1.msra.mxu0 0.0
      %1923 = vmatprep.subr.mxu0 0.0
      %1924 = vmatpush1.msra.mxu0 0.0
      %1925 = vmatprep.subr.mxu0 0.0
      %1926 = vmatpush1.msra.mxu0 0.0
      %1927 = vmatprep.subr.mxu0 0.0
      %1928 = vmatpush1.msra.mxu0 0.0
      %1929 = vmatprep.subr.mxu0 0.0
      %1930 = vmatpush1.msra.mxu0 0.0
      %1931 = vmatprep.subr.mxu0 0.0
      %1932 = vmatpush1.msra.mxu0 0.0
      %1933 = vmatprep.subr.mxu0 0.0
      %1934 = vmatpush1.msra.mxu0 0.0
      %1935 = vmatprep.subr.mxu0 0.0
      %1936 = vmatpush1.msra.mxu0 0.0
      %1937 = vmatprep.subr.mxu0 0.0
      %1938 = vmatpush1.msra.mxu0 0.0
      %1939 = vmatprep.mubr.f32.mxu0 0.0
      %1940 = vmatmul.mubr.f32.gmra.mrb[0].mxu0 %v1874
      %v1941 = vpop.f32.mrb[0].mxu0
      %v1942 = vadd.f32 0.0, %v1941
      %v1943 = vpop.f32.mrb[0].mxu0
      %1944 = vdwg.mxu0
      %v1945 = vlog2.pop %v1942
      %v1946 = vmul.f32 %v1945, 0.6931472
      %v1947 = vsub.f32 -2.0794415, %v1946
      %v1948 = vadd.f32 %v1872, %v1947
      %v1949 = vmul.f32 %v1948, 1.442695
      %v1950 = vpow.pop %v1949
      %v1951 = vrot.slane %v1950, 4
      %v1952 = vadd.f32 %v1950, %v1951
      %v1953 = vrot.slane %v1952, 2
      %v1954 = vadd.f32 %v1952, %v1953
      %v1955 = vrot.slane %v1954, 1
      %v1956 = vadd.f32 %v1954, %v1955
      %v1957 = vlog2.pop %v1956
      %v1958 = vmul.f32 %v1957, 0.6931472
      %v1959 = vsub.f32 -2.7725885, %v1958
      %v1960 = vadd.f32 %v1948, %v1959
      %v1961 = vmul.f32 %v1960, 1.442695
      %v1962 = vpow.pop %v1961
      %1963 = vmatprep.subr.mxu0 0.0
      %1964 = vmatpush1.msra.mxu0 %v1217
      %1965 = vmatprep.subr.mxu0 0.0
      %1966 = vmatpush1.msra.mxu0 %v1218
      %1967 = vmatprep.subr.mxu0 0.0
      %1968 = vmatpush1.msra.mxu0 %v1219
      %1969 = vmatprep.subr.mxu0 0.0
      %1970 = vmatpush1.msra.mxu0 %v1220
      %1971 = vmatprep.subr.mxu0 0.0
      %1972 = vmatpush1.msra.mxu0 %v1221
      %1973 = vmatprep.subr.mxu0 0.0
      %1974 = vmatpush1.msra.mxu0 %v1222
      %1975 = vmatprep.subr.mxu0 0.0
      %1976 = vmatpush1.msra.mxu0 %v1223
      %1977 = vmatprep.subr.mxu0 0.0
      %1978 = vmatpush1.msra.mxu0 %v1224
      %1979 = vmatprep.subr.mxu0 0.0
      %1980 = vmatpush1.msra.mxu0 %v1225
      %1981 = vmatprep.subr.mxu0 0.0
      %1982 = vmatpush1.msra.mxu0 %v1226
      %1983 = vmatprep.subr.mxu0 0.0
      %1984 = vmatpush1.msra.mxu0 %v1227
      %1985 = vmatprep.subr.mxu0 0.0
      %1986 = vmatpush1.msra.mxu0 %v1228
      %1987 = vmatprep.subr.mxu0 0.0
      %1988 = vmatpush1.msra.mxu0 %v1229
      %1989 = vmatprep.subr.mxu0 0.0
      %1990 = vmatpush1.msra.mxu0 %v1230
      %1991 = vmatprep.subr.mxu0 0.0
      %1992 = vmatpush1.msra.mxu0 %v1231
      %1993 = vmatprep.subr.mxu0 0.0
      %1994 = vmatpush1.msra.mxu0 %v1232
      %1995 = vmatprep.subr.mxu0 0.0
      %1996 = vmatpush1.msra.mxu0 0.0
      %1997 = vmatprep.subr.mxu0 0.0
      %1998 = vmatpush1.msra.mxu0 0.0
      %1999 = vmatprep.subr.mxu0 0.0
      %2000 = vmatpush1.msra.mxu0 0.0
      %2001 = vmatprep.subr.mxu0 0.0
      %2002 = vmatpush1.msra.mxu0 0.0
      %2003 = vmatprep.subr.mxu0 0.0
      %2004 = vmatpush1.msra.mxu0 0.0
      %2005 = vmatprep.subr.mxu0 0.0
      %2006 = vmatpush1.msra.mxu0 0.0
      %2007 = vmatprep.subr.mxu0 0.0
      %2008 = vmatpush1.msra.mxu0 0.0
      %2009 = vmatprep.subr.mxu0 0.0
      %2010 = vmatpush1.msra.mxu0 0.0
      %2011 = vmatprep.subr.mxu0 0.0
      %2012 = vmatpush1.msra.mxu0 0.0
      %2013 = vmatprep.subr.mxu0 0.0
      %2014 = vmatpush1.msra.mxu0 0.0
      %2015 = vmatprep.subr.mxu0 0.0
      %2016 = vmatpush1.msra.mxu0 0.0
      %2017 = vmatprep.subr.mxu0 0.0
      %2018 = vmatpush1.msra.mxu0 0.0
      %2019 = vmatprep.subr.mxu0 0.0
      %2020 = vmatpush1.msra.mxu0 0.0
      %2021 = vmatprep.subr.mxu0 0.0
      %2022 = vmatpush1.msra.mxu0 0.0
      %2023 = vmatprep.subr.mxu0 0.0
      %2024 = vmatpush1.msra.mxu0 0.0
      %2025 = vmatprep.subr.mxu0 0.0
      %2026 = vmatpush1.msra.mxu0 0.0
      %2027 = vmatprep.mubr.f32.mxu0 0.0
      %2028 = vmatmul.mubr.f32.gmra.mrb[0].mxu0 %v1962
      %v2029 = vpop.f32.mrb[0].mxu0
      %v2030 = vadd.f32 0.0, %v2029
      %v2031 = vpop.f32.mrb[0].mxu0
      %2032 = vdwg.mxu0
      %v2033 = vlog2.pop %v2030
      %v2034 = vmul.f32 %v2033, 0.6931472
      %v2035 = vsub.f32 -2.0794415, %v2034
      %v2036 = vadd.f32 %v1960, %v2035
      %v2037 = vmul.f32 %v2036, 1.442695
      %v2038 = vpow.pop %v2037
      %v2039 = vrot.slane %v2038, 4
      %v2040 = vadd.f32 %v2038, %v2039
      %v2041 = vrot.slane %v2040, 2
      %v2042 = vadd.f32 %v2040, %v2041
      %v2043 = vrot.slane %v2042, 1
      %v2044 = vadd.f32 %v2042, %v2043
      %v2045 = vlog2.pop %v2044
      %v2046 = vmul.f32 %v2045, 0.6931472
      %v2047 = vsub.f32 -2.7725885, %v2046
      %v2048 = vadd.f32 %v2036, %v2047
      %v2049 = vmul.f32 %v2048, 1.442695
      %v2050 = vpow.pop %v2049
      %2051 = vmatprep.subr.mxu0 0.0
      %2052 = vmatpush1.msra.mxu0 %v1217
      %2053 = vmatprep.subr.mxu0 0.0
      %2054 = vmatpush1.msra.mxu0 %v1218
      %2055 = vmatprep.subr.mxu0 0.0
      %2056 = vmatpush1.msra.mxu0 %v1219
      %2057 = vmatprep.subr.mxu0 0.0
      %2058 = vmatpush1.msra.mxu0 %v1220
      %2059 = vmatprep.subr.mxu0 0.0
      %2060 = vmatpush1.msra.mxu0 %v1221
      %2061 = vmatprep.subr.mxu0 0.0
      %2062 = vmatpush1.msra.mxu0 %v1222
      %2063 = vmatprep.subr.mxu0 0.0
      %2064 = vmatpush1.msra.mxu0 %v1223
      %2065 = vmatprep.subr.mxu0 0.0
      %2066 = vmatpush1.msra.mxu0 %v1224
      %2067 = vmatprep.subr.mxu0 0.0
      %2068 = vmatpush1.msra.mxu0 %v1225
      %2069 = vmatprep.subr.mxu0 0.0
      %2070 = vmatpush1.msra.mxu0 %v1226
      %2071 = vmatprep.subr.mxu0 0.0
      %2072 = vmatpush1.msra.mxu0 %v1227
      %2073 = vmatprep.subr.mxu0 0.0
      %2074 = vmatpush1.msra.mxu0 %v1228
      %2075 = vmatprep.subr.mxu0 0.0
      %2076 = vmatpush1.msra.mxu0 %v1229
      %2077 = vmatprep.subr.mxu0 0.0
      %2078 = vmatpush1.msra.mxu0 %v1230
      %2079 = vmatprep.subr.mxu0 0.0
      %2080 = vmatpush1.msra.mxu0 %v1231
      %2081 = vmatprep.subr.mxu0 0.0
      %2082 = vmatpush1.msra.mxu0 %v1232
      %2083 = vmatprep.subr.mxu0 0.0
      %2084 = vmatpush1.msra.mxu0 0.0
      %2085 = vmatprep.subr.mxu0 0.0
      %2086 = vmatpush1.msra.mxu0 0.0
      %2087 = vmatprep.subr.mxu0 0.0
      %2088 = vmatpush1.msra.mxu0 0.0
      %2089 = vmatprep.subr.mxu0 0.0
      %2090 = vmatpush1.msra.mxu0 0.0
      %2091 = vmatprep.subr.mxu0 0.0
      %2092 = vmatpush1.msra.mxu0 0.0
      %2093 = vmatprep.subr.mxu0 0.0
      %2094 = vmatpush1.msra.mxu0 0.0
      %2095 = vmatprep.subr.mxu0 0.0
      %2096 = vmatpush1.msra.mxu0 0.0
      %2097 = vmatprep.subr.mxu0 0.0
      %2098 = vmatpush1.msra.mxu0 0.0
      %2099 = vmatprep.subr.mxu0 0.0
      %2100 = vmatpush1.msra.mxu0 0.0
      %2101 = vmatprep.subr.mxu0 0.0
      %2102 = vmatpush1.msra.mxu0 0.0
      %2103 = vmatprep.subr.mxu0 0.0
      %2104 = vmatpush1.msra.mxu0 0.0
      %2105 = vmatprep.subr.mxu0 0.0
      %2106 = vmatpush1.msra.mxu0 0.0
      %2107 = vmatprep.subr.mxu0 0.0
      %2108 = vmatpush1.msra.mxu0 0.0
      %2109 = vmatprep.subr.mxu0 0.0
      %2110 = vmatpush1.msra.mxu0 0.0
      %2111 = vmatprep.subr.mxu0 0.0
      %2112 = vmatpush1.msra.mxu0 0.0
      %2113 = vmatprep.subr.mxu0 0.0
      %2114 = vmatpush1.msra.mxu0 0.0
      %2115 = vmatprep.mubr.f32.mxu0 0.0
      %2116 = vmatmul.mubr.f32.gmra.mrb[0].mxu0 %v2050
      %v2117 = vpop.f32.mrb[0].mxu0
      %v2118 = vadd.f32 0.0, %v2117
      %v2119 = vpop.f32.mrb[0].mxu0
      %2120 = vdwg.mxu0
      %v2121 = vlog2.pop %v2118
      %v2122 = vmul.f32 %v2121, 0.6931472
      %v2123 = vsub.f32 -2.0794415, %v2122
      %v2124 = vadd.f32 %v2048, %v2123
      %v2125 = vand.u32 2147483647, %v2047
      %vm2126 = vcmask 1040384
      %v2127 = vsel %vm2126, %v2125, 0.0
      %2128 = vadd.xlane.f32.xlu0 %v2127
      %v2129 = vpop.xlane.xlu0 %2128
      %v2130 = vrot.slane %v2129, 4
      %v2131 = vadd.f32 %v2129, %v2130
      %v2132 = vrot.slane %v2131, 2
      %v2133 = vadd.f32 %v2131, %v2132
      %v2134 = vrot.slane %v2133, 1
      %v2135 = vadd.f32 %v2133, %v2134
      %s2136 = vtos %v2135
      %v2137 = vrcp.pop 128.0
      %s2138 = vtos %v2137
      %s2139 = smul.f32 %s2136, %s2138
      %s2140 = smul.f32 %s2139, 0.05
      %s2141 = sadd.s32 %s1236, 1
    $region74: #{tpu_custom_call.1} parent=1 // loop_footer
      _
    $region75: #{tpu_custom_call.1} parent=1 // loop_footer_branch
      %1235 = sbr.rel target = $region71
    $region76: #{tpu_custom_call.1} parent=1 // loop_exit
      _
    %v2142 = vmul.f32 %v1238, 1.442695
    %v2143 = vpow.pop %v2142
    %v2144 = vmul.f32 %v1216, 128.0
    %v2145 = vmul.f32 %v2144, %v2143
    %v2146 = vrot.slane %v2145, 4
    %v2147 = vadd.f32 %v2145, %v2146
    %v2148 = vrot.slane %v2147, 2
    %v2149 = vadd.f32 %v2147, %v2148
    %v2150 = vrot.slane %v2149, 1
    %v2151 = vadd.f32 %v2149, %v2150
    %2152 = vst [vmem:[#allocation16] sm:$0x1] %v2151
    %v2154 = vsel %vm1204, %v2143, 0
    %2156 = vmatprep.subr.mxu0 0.0
    %2157 = vmatpush1.msra.mxu0 %v478
    %2158 = vmatprep.subr.mxu0 0.0
    %2159 = vmatpush1.msra.mxu0 %v483
    %2160 = vmatprep.subr.mxu0 0.0
    %2161 = vmatpush1.msra.mxu0 0.0
    %2162 = vmatprep.subr.mxu0 0.0
    %2163 = vmatpush1.msra.mxu0 0.0
    %2164 = vmatprep.subr.mxu0 0.0
    %2165 = vmatpush1.msra.mxu0 0.0
    %2166 = vmatprep.subr.mxu0 0.0
    %2167 = vmatpush1.msra.mxu0 0.0
    %2168 = vmatprep.subr.mxu0 0.0
    %2169 = vmatpush1.msra.mxu0 0.0
    %2170 = vmatprep.subr.mxu0 0.0
    %2171 = vmatpush1.msra.mxu0 0.0
    %2172 = vmatprep.subr.mxu0 0.0
    %2173 = vmatpush1.msra.mxu0 0.0
    %2174 = vmatprep.subr.mxu0 0.0
    %2175 = vmatpush1.msra.mxu0 0.0
    %2176 = vmatprep.subr.mxu0 0.0
    %2177 = vmatpush1.msra.mxu0 0.0
    %2178 = vmatprep.subr.mxu0 0.0
    %2179 = vmatpush1.msra.mxu0 0.0
    %2180 = vmatprep.subr.mxu0 0.0
    %2181 = vmatpush1.msra.mxu0 0.0
    %2182 = vmatprep.subr.mxu0 0.0
    %2183 = vmatpush1.msra.mxu0 0.0
    %2184 = vmatprep.subr.mxu0 0.0
    %2185 = vmatpush1.msra.mxu0 0.0
    %2186 = vmatprep.subr.mxu0 0.0
    %2187 = vmatpush1.msra.mxu0 0.0
    %2188 = vmatprep.subr.mxu0 0.0
    %2189 = vmatpush1.msra.mxu0 0.0
    %2190 = vmatprep.subr.mxu0 0.0
    %2191 = vmatpush1.msra.mxu0 0.0
    %2192 = vmatprep.subr.mxu0 0.0
    %2193 = vmatpush1.msra.mxu0 0.0
    %2194 = vmatprep.subr.mxu0 0.0
    %2195 = vmatpush1.msra.mxu0 0.0
    %2196 = vmatprep.subr.mxu0 0.0
    %2197 = vmatpush1.msra.mxu0 0.0
    %2198 = vmatprep.subr.mxu0 0.0
    %2199 = vmatpush1.msra.mxu0 0.0
    %2200 = vmatprep.subr.mxu0 0.0
    %2201 = vmatpush1.msra.mxu0 0.0
    %2202 = vmatprep.subr.mxu0 0.0
    %2203 = vmatpush1.msra.mxu0 0.0
    %2204 = vmatprep.subr.mxu0 0.0
    %2205 = vmatpush1.msra.mxu0 0.0
    %2206 = vmatprep.subr.mxu0 0.0
    %2207 = vmatpush1.msra.mxu0 0.0
    %2208 = vmatprep.subr.mxu0 0.0
    %2209 = vmatpush1.msra.mxu0 0.0
    %2210 = vmatprep.subr.mxu0 0.0
    %2211 = vmatpush1.msra.mxu0 0.0
    %2212 = vmatprep.subr.mxu0 0.0
    %2213 = vmatpush1.msra.mxu0 0.0
    %2214 = vmatprep.subr.mxu0 0.0
    %2215 = vmatpush1.msra.mxu0 0.0
    %2216 = vmatprep.subr.mxu0 0.0
    %2217 = vmatpush1.msra.mxu0 0.0
    %2218 = vmatprep.subr.mxu0 0.0
    %2219 = vmatpush1.msra.mxu0 0.0
    %2220 = vmatprep.mubr.f32.mxu0 0.0
    %2221 = vmatmul.mubr.f32.gmra.mrb[0].mxu0 %v2154
    %v2222 = vpop.f32.mrb[0].mxu0
    %v2223 = vadd.f32 0.0, %v2222
    %v2224 = vpop.f32.mrb[0].mxu0
    %2225 = vdwg.mxu0
    %2226 = vrot.lane.b32.xlu0 %v2143, 112
    %v2227 = vpop.permute.xlu0 %2226
    %v2228 = vsel %vm1204, %v2227, 0
    %2230 = vmatprep.subr.mxu0 0.0
    %2231 = vmatpush1.msra.mxu0 %v478
    %2232 = vmatprep.subr.mxu0 0.0
    %2233 = vmatpush1.msra.mxu0 %v483
    %2234 = vmatprep.subr.mxu0 0.0
    %2235 = vmatpush1.msra.mxu0 0.0
    %2236 = vmatprep.subr.mxu0 0.0
    %2237 = vmatpush1.msra.mxu0 0.0
    %2238 = vmatprep.subr.mxu0 0.0
    %2239 = vmatpush1.msra.mxu0 0.0
    %2240 = vmatprep.subr.mxu0 0.0
    %2241 = vmatpush1.msra.mxu0 0.0
    %2242 = vmatprep.subr.mxu0 0.0
    %2243 = vmatpush1.msra.mxu0 0.0
    %2244 = vmatprep.subr.mxu0 0.0
    %2245 = vmatpush1.msra.mxu0 0.0
    %2246 = vmatprep.subr.mxu0 0.0
    %2247 = vmatpush1.msra.mxu0 0.0
    %2248 = vmatprep.subr.mxu0 0.0
    %2249 = vmatpush1.msra.mxu0 0.0
    %2250 = vmatprep.subr.mxu0 0.0
    %2251 = vmatpush1.msra.mxu0 0.0
    %2252 = vmatprep.subr.mxu0 0.0
    %2253 = vmatpush1.msra.mxu0 0.0
    %2254 = vmatprep.subr.mxu0 0.0
    %2255 = vmatpush1.msra.mxu0 0.0
    %2256 = vmatprep.subr.mxu0 0.0
    %2257 = vmatpush1.msra.mxu0 0.0
    %2258 = vmatprep.subr.mxu0 0.0
    %2259 = vmatpush1.msra.mxu0 0.0
    %2260 = vmatprep.subr.mxu0 0.0
    %2261 = vmatpush1.msra.mxu0 0.0
    %2262 = vmatprep.subr.mxu0 0.0
    %2263 = vmatpush1.msra.mxu0 0.0
    %2264 = vmatprep.subr.mxu0 0.0
    %2265 = vmatpush1.msra.mxu0 0.0
    %2266 = vmatprep.subr.mxu0 0.0
    %2267 = vmatpush1.msra.mxu0 0.0
    %2268 = vmatprep.subr.mxu0 0.0
    %2269 = vmatpush1.msra.mxu0 0.0
    %2270 = vmatprep.subr.mxu0 0.0
    %2271 = vmatpush1.msra.mxu0 0.0
    %2272 = vmatprep.subr.mxu0 0.0
    %2273 = vmatpush1.msra.mxu0 0.0
    %2274 = vmatprep.subr.mxu0 0.0
    %2275 = vmatpush1.msra.mxu0 0.0
    %2276 = vmatprep.subr.mxu0 0.0
    %2277 = vmatpush1.msra.mxu0 0.0
    %2278 = vmatprep.subr.mxu0 0.0
    %2279 = vmatpush1.msra.mxu0 0.0
    %2280 = vmatprep.subr.mxu0 0.0
    %2281 = vmatpush1.msra.mxu0 0.0
    %2282 = vmatprep.subr.mxu0 0.0
    %2283 = vmatpush1.msra.mxu0 0.0
    %2284 = vmatprep.subr.mxu0 0.0
    %2285 = vmatpush1.msra.mxu0 0.0
    %2286 = vmatprep.subr.mxu0 0.0
    %2287 = vmatpush1.msra.mxu0 0.0
    %2288 = vmatprep.subr.mxu0 0.0
    %2289 = vmatpush1.msra.mxu0 0.0
    %2290 = vmatprep.subr.mxu0 0.0
    %2291 = vmatpush1.msra.mxu0 0.0
    %2292 = vmatprep.subr.mxu0 0.0
    %2293 = vmatpush1.msra.mxu0 0.0
    %2294 = vmatprep.mubr.f32.mxu0 0.0
    %2295 = vmatmul.mubr.f32.gmra.mrb[0].mxu0 %v2228
    %v2296 = vpop.f32.mrb[0].mxu0
    %v2297 = vadd.f32 0.0, %v2296
    %v2298 = vpop.f32.mrb[0].mxu0
    %2299 = vdwg.mxu0
    %2300 = vrot.lane.b32.xlu0 %v2143, 96
    %v2301 = vpop.permute.xlu0 %2300
    %v2302 = vsel %vm1204, %v2301, 0
    %2304 = vmatprep.subr.mxu0 0.0
    %2305 = vmatpush1.msra.mxu0 %v478
    %2306 = vmatprep.subr.mxu0 0.0
    %2307 = vmatpush1.msra.mxu0 %v483
    %2308 = vmatprep.subr.mxu0 0.0
    %2309 = vmatpush1.msra.mxu0 0.0
    %2310 = vmatprep.subr.mxu0 0.0
    %2311 = vmatpush1.msra.mxu0 0.0
    %2312 = vmatprep.subr.mxu0 0.0
    %2313 = vmatpush1.msra.mxu0 0.0
    %2314 = vmatprep.subr.mxu0 0.0
    %2315 = vmatpush1.msra.mxu0 0.0
    %2316 = vmatprep.subr.mxu0 0.0
    %2317 = vmatpush1.msra.mxu0 0.0
    %2318 = vmatprep.subr.mxu0 0.0
    %2319 = vmatpush1.msra.mxu0 0.0
    %2320 = vmatprep.subr.mxu0 0.0
    %2321 = vmatpush1.msra.mxu0 0.0
    %2322 = vmatprep.subr.mxu0 0.0
    %2323 = vmatpush1.msra.mxu0 0.0
    %2324 = vmatprep.subr.mxu0 0.0
    %2325 = vmatpush1.msra.mxu0 0.0
    %2326 = vmatprep.subr.mxu0 0.0
    %2327 = vmatpush1.msra.mxu0 0.0
    %2328 = vmatprep.subr.mxu0 0.0
    %2329 = vmatpush1.msra.mxu0 0.0
    %2330 = vmatprep.subr.mxu0 0.0
    %2331 = vmatpush1.msra.mxu0 0.0
    %2332 = vmatprep.subr.mxu0 0.0
    %2333 = vmatpush1.msra.mxu0 0.0
    %2334 = vmatprep.subr.mxu0 0.0
    %2335 = vmatpush1.msra.mxu0 0.0
    %2336 = vmatprep.subr.mxu0 0.0
    %2337 = vmatpush1.msra.mxu0 0.0
    %2338 = vmatprep.subr.mxu0 0.0
    %2339 = vmatpush1.msra.mxu0 0.0
    %2340 = vmatprep.subr.mxu0 0.0
    %2341 = vmatpush1.msra.mxu0 0.0
    %2342 = vmatprep.subr.mxu0 0.0
    %2343 = vmatpush1.msra.mxu0 0.0
    %2344 = vmatprep.subr.mxu0 0.0
    %2345 = vmatpush1.msra.mxu0 0.0
    %2346 = vmatprep.subr.mxu0 0.0
    %2347 = vmatpush1.msra.mxu0 0.0
    %2348 = vmatprep.subr.mxu0 0.0
    %2349 = vmatpush1.msra.mxu0 0.0
    %2350 = vmatprep.subr.mxu0 0.0
    %2351 = vmatpush1.msra.mxu0 0.0
    %2352 = vmatprep.subr.mxu0 0.0
    %2353 = vmatpush1.msra.mxu0 0.0
    %2354 = vmatprep.subr.mxu0 0.0
    %2355 = vmatpush1.msra.mxu0 0.0
    %2356 = vmatprep.subr.mxu0 0.0
    %2357 = vmatpush1.msra.mxu0 0.0
    %2358 = vmatprep.subr.mxu0 0.0
    %2359 = vmatpush1.msra.mxu0 0.0
    %2360 = vmatprep.subr.mxu0 0.0
    %2361 = vmatpush1.msra.mxu0 0.0
    %2362 = vmatprep.subr.mxu0 0.0
    %2363 = vmatpush1.msra.mxu0 0.0
    %2364 = vmatprep.subr.mxu0 0.0
    %2365 = vmatpush1.msra.mxu0 0.0
    %2366 = vmatprep.subr.mxu0 0.0
    %2367 = vmatpush1.msra.mxu0 0.0
    %2368 = vmatprep.mubr.f32.mxu0 0.0
    %2369 = vmatmul.mubr.f32.gmra.mrb[0].mxu0 %v2302
    %v2370 = vpop.f32.mrb[0].mxu0
    %v2371 = vadd.f32 0.0, %v2370
    %v2372 = vpop.f32.mrb[0].mxu0
    %2373 = vdwg.mxu0
    %2374 = vrot.lane.b32.xlu0 %v2143, 80
    %v2375 = vpop.permute.xlu0 %2374
    %v2376 = vsel %vm1204, %v2375, 0
    %2378 = vmatprep.subr.mxu0 0.0
    %2379 = vmatpush1.msra.mxu0 %v478
    %2380 = vmatprep.subr.mxu0 0.0
    %2381 = vmatpush1.msra.mxu0 %v483
    %2382 = vmatprep.subr.mxu0 0.0
    %2383 = vmatpush1.msra.mxu0 0.0
    %2384 = vmatprep.subr.mxu0 0.0
    %2385 = vmatpush1.msra.mxu0 0.0
    %2386 = vmatprep.subr.mxu0 0.0
    %2387 = vmatpush1.msra.mxu0 0.0
    %2388 = vmatprep.subr.mxu0 0.0
    %2389 = vmatpush1.msra.mxu0 0.0
    %2390 = vmatprep.subr.mxu0 0.0
    %2391 = vmatpush1.msra.mxu0 0.0
    %2392 = vmatprep.subr.mxu0 0.0
    %2393 = vmatpush1.msra.mxu0 0.0
    %2394 = vmatprep.subr.mxu0 0.0
    %2395 = vmatpush1.msra.mxu0 0.0
    %2396 = vmatprep.subr.mxu0 0.0
    %2397 = vmatpush1.msra.mxu0 0.0
    %2398 = vmatprep.subr.mxu0 0.0
    %2399 = vmatpush1.msra.mxu0 0.0
    %2400 = vmatprep.subr.mxu0 0.0
    %2401 = vmatpush1.msra.mxu0 0.0
    %2402 = vmatprep.subr.mxu0 0.0
    %2403 = vmatpush1.msra.mxu0 0.0
    %2404 = vmatprep.subr.mxu0 0.0
    %2405 = vmatpush1.msra.mxu0 0.0
    %2406 = vmatprep.subr.mxu0 0.0
    %2407 = vmatpush1.msra.mxu0 0.0
    %2408 = vmatprep.subr.mxu0 0.0
    %2409 = vmatpush1.msra.mxu0 0.0
    %2410 = vmatprep.subr.mxu0 0.0
    %2411 = vmatpush1.msra.mxu0 0.0
    %2412 = vmatprep.subr.mxu0 0.0
    %2413 = vmatpush1.msra.mxu0 0.0
    %2414 = vmatprep.subr.mxu0 0.0
    %2415 = vmatpush1.msra.mxu0 0.0
    %2416 = vmatprep.subr.mxu0 0.0
    %2417 = vmatpush1.msra.mxu0 0.0
    %2418 = vmatprep.subr.mxu0 0.0
    %2419 = vmatpush1.msra.mxu0 0.0
    %2420 = vmatprep.subr.mxu0 0.0
    %2421 = vmatpush1.msra.mxu0 0.0
    %2422 = vmatprep.subr.mxu0 0.0
    %2423 = vmatpush1.msra.mxu0 0.0
    %2424 = vmatprep.subr.mxu0 0.0
    %2425 = vmatpush1.msra.mxu0 0.0
    %2426 = vmatprep.subr.mxu0 0.0
    %2427 = vmatpush1.msra.mxu0 0.0
    %2428 = vmatprep.subr.mxu0 0.0
    %2429 = vmatpush1.msra.mxu0 0.0
    %2430 = vmatprep.subr.mxu0 0.0
    %2431 = vmatpush1.msra.mxu0 0.0
    %2432 = vmatprep.subr.mxu0 0.0
    %2433 = vmatpush1.msra.mxu0 0.0
    %2434 = vmatprep.subr.mxu0 0.0
    %2435 = vmatpush1.msra.mxu0 0.0
    %2436 = vmatprep.subr.mxu0 0.0
    %2437 = vmatpush1.msra.mxu0 0.0
    %2438 = vmatprep.subr.mxu0 0.0
    %2439 = vmatpush1.msra.mxu0 0.0
    %2440 = vmatprep.subr.mxu0 0.0
    %2441 = vmatpush1.msra.mxu0 0.0
    %2442 = vmatprep.mubr.f32.mxu0 0.0
    %2443 = vmatmul.mubr.f32.gmra.mrb[0].mxu0 %v2376
    %v2444 = vpop.f32.mrb[0].mxu0
    %v2445 = vadd.f32 0.0, %v2444
    %v2446 = vpop.f32.mrb[0].mxu0
    %2447 = vdwg.mxu0
    %2448 = vrot.lane.b32.xlu0 %v2143, 64
    %v2449 = vpop.permute.xlu0 %2448
    %v2450 = vsel %vm1204, %v2449, 0
    %2452 = vmatprep.subr.mxu0 0.0
    %2453 = vmatpush1.msra.mxu0 %v488
    %2454 = vmatprep.subr.mxu0 0.0
    %2455 = vmatpush1.msra.mxu0 %v493
    %2456 = vmatprep.subr.mxu0 0.0
    %2457 = vmatpush1.msra.mxu0 0.0
    %2458 = vmatprep.subr.mxu0 0.0
    %2459 = vmatpush1.msra.mxu0 0.0
    %2460 = vmatprep.subr.mxu0 0.0
    %2461 = vmatpush1.msra.mxu0 0.0
    %2462 = vmatprep.subr.mxu0 0.0
    %2463 = vmatpush1.msra.mxu0 0.0
    %2464 = vmatprep.subr.mxu0 0.0
    %2465 = vmatpush1.msra.mxu0 0.0
    %2466 = vmatprep.subr.mxu0 0.0
    %2467 = vmatpush1.msra.mxu0 0.0
    %2468 = vmatprep.subr.mxu0 0.0
    %2469 = vmatpush1.msra.mxu0 0.0
    %2470 = vmatprep.subr.mxu0 0.0
    %2471 = vmatpush1.msra.mxu0 0.0
    %2472 = vmatprep.subr.mxu0 0.0
    %2473 = vmatpush1.msra.mxu0 0.0
    %2474 = vmatprep.subr.mxu0 0.0
    %2475 = vmatpush1.msra.mxu0 0.0
    %2476 = vmatprep.subr.mxu0 0.0
    %2477 = vmatpush1.msra.mxu0 0.0
    %2478 = vmatprep.subr.mxu0 0.0
    %2479 = vmatpush1.msra.mxu0 0.0
    %2480 = vmatprep.subr.mxu0 0.0
    %2481 = vmatpush1.msra.mxu0 0.0
    %2482 = vmatprep.subr.mxu0 0.0
    %2483 = vmatpush1.msra.mxu0 0.0
    %2484 = vmatprep.subr.mxu0 0.0
    %2485 = vmatpush1.msra.mxu0 0.0
    %2486 = vmatprep.subr.mxu0 0.0
    %2487 = vmatpush1.msra.mxu0 0.0
    %2488 = vmatprep.subr.mxu0 0.0
    %2489 = vmatpush1.msra.mxu0 0.0
    %2490 = vmatprep.subr.mxu0 0.0
    %2491 = vmatpush1.msra.mxu0 0.0
    %2492 = vmatprep.subr.mxu0 0.0
    %2493 = vmatpush1.msra.mxu0 0.0
    %2494 = vmatprep.subr.mxu0 0.0
    %2495 = vmatpush1.msra.mxu0 0.0
    %2496 = vmatprep.subr.mxu0 0.0
    %2497 = vmatpush1.msra.mxu0 0.0
    %2498 = vmatprep.subr.mxu0 0.0
    %2499 = vmatpush1.msra.mxu0 0.0
    %2500 = vmatprep.subr.mxu0 0.0
    %2501 = vmatpush1.msra.mxu0 0.0
    %2502 = vmatprep.subr.mxu0 0.0
    %2503 = vmatpush1.msra.mxu0 0.0
    %2504 = vmatprep.subr.mxu0 0.0
    %2505 = vmatpush1.msra.mxu0 0.0
    %2506 = vmatprep.subr.mxu0 0.0
    %2507 = vmatpush1.msra.mxu0 0.0
    %2508 = vmatprep.subr.mxu0 0.0
    %2509 = vmatpush1.msra.mxu0 0.0
    %2510 = vmatprep.subr.mxu0 0.0
    %2511 = vmatpush1.msra.mxu0 0.0
    %2512 = vmatprep.subr.mxu0 0.0
    %2513 = vmatpush1.msra.mxu0 0.0
    %2514 = vmatprep.subr.mxu0 0.0
    %2515 = vmatpush1.msra.mxu0 0.0
    %2516 = vmatprep.mubr.f32.mxu0 0.0
    %2517 = vmatmul.mubr.f32.gmra.mrb[0].mxu0 %v2450
    %v2518 = vpop.f32.mrb[0].mxu0
    %v2519 = vadd.f32 0.0, %v2518
    %v2520 = vpop.f32.mrb[0].mxu0
    %2521 = vdwg.mxu0
    %2522 = vrot.lane.b32.xlu0 %v2143, 48
    %v2523 = vpop.permute.xlu0 %2522
    %v2524 = vsel %vm1204, %v2523, 0
    %2526 = vmatprep.subr.mxu0 0.0
    %2527 = vmatpush1.msra.mxu0 %v488
    %2528 = vmatprep.subr.mxu0 0.0
    %2529 = vmatpush1.msra.mxu0 %v493
    %2530 = vmatprep.subr.mxu0 0.0
    %2531 = vmatpush1.msra.mxu0 0.0
    %2532 = vmatprep.subr.mxu0 0.0
    %2533 = vmatpush1.msra.mxu0 0.0
    %2534 = vmatprep.subr.mxu0 0.0
    %2535 = vmatpush1.msra.mxu0 0.0
    %2536 = vmatprep.subr.mxu0 0.0
    %2537 = vmatpush1.msra.mxu0 0.0
    %2538 = vmatprep.subr.mxu0 0.0
    %2539 = vmatpush1.msra.mxu0 0.0
    %2540 = vmatprep.subr.mxu0 0.0
    %2541 = vmatpush1.msra.mxu0 0.0
    %2542 = vmatprep.subr.mxu0 0.0
    %2543 = vmatpush1.msra.mxu0 0.0
    %2544 = vmatprep.subr.mxu0 0.0
    %2545 = vmatpush1.msra.mxu0 0.0
    %2546 = vmatprep.subr.mxu0 0.0
    %2547 = vmatpush1.msra.mxu0 0.0
    %2548 = vmatprep.subr.mxu0 0.0
    %2549 = vmatpush1.msra.mxu0 0.0
    %2550 = vmatprep.subr.mxu0 0.0
    %2551 = vmatpush1.msra.mxu0 0.0
    %2552 = vmatprep.subr.mxu0 0.0
    %2553 = vmatpush1.msra.mxu0 0.0
    %2554 = vmatprep.subr.mxu0 0.0
    %2555 = vmatpush1.msra.mxu0 0.0
    %2556 = vmatprep.subr.mxu0 0.0
    %2557 = vmatpush1.msra.mxu0 0.0
    %2558 = vmatprep.subr.mxu0 0.0
    %2559 = vmatpush1.msra.mxu0 0.0
    %2560 = vmatprep.subr.mxu0 0.0
    %2561 = vmatpush1.msra.mxu0 0.0
    %2562 = vmatprep.subr.mxu0 0.0
    %2563 = vmatpush1.msra.mxu0 0.0
    %2564 = vmatprep.subr.mxu0 0.0
    %2565 = vmatpush1.msra.mxu0 0.0
    %2566 = vmatprep.subr.mxu0 0.0
    %2567 = vmatpush1.msra.mxu0 0.0
    %2568 = vmatprep.subr.mxu0 0.0
    %2569 = vmatpush1.msra.mxu0 0.0
    %2570 = vmatprep.subr.mxu0 0.0
    %2571 = vmatpush1.msra.mxu0 0.0
    %2572 = vmatprep.subr.mxu0 0.0
    %2573 = vmatpush1.msra.mxu0 0.0
    %2574 = vmatprep.subr.mxu0 0.0
    %2575 = vmatpush1.msra.mxu0 0.0
    %2576 = vmatprep.subr.mxu0 0.0
    %2577 = vmatpush1.msra.mxu0 0.0
    %2578 = vmatprep.subr.mxu0 0.0
    %2579 = vmatpush1.msra.mxu0 0.0
    %2580 = vmatprep.subr.mxu0 0.0
    %2581 = vmatpush1.msra.mxu0 0.0
    %2582 = vmatprep.subr.mxu0 0.0
    %2583 = vmatpush1.msra.mxu0 0.0
    %2584 = vmatprep.subr.mxu0 0.0
    %2585 = vmatpush1.msra.mxu0 0.0
    %2586 = vmatprep.subr.mxu0 0.0
    %2587 = vmatpush1.msra.mxu0 0.0
    %2588 = vmatprep.subr.mxu0 0.0
    %2589 = vmatpush1.msra.mxu0 0.0
    %2590 = vmatprep.mubr.f32.mxu0 0.0
    %2591 = vmatmul.mubr.f32.gmra.mrb[0].mxu0 %v2524
    %v2592 = vpop.f32.mrb[0].mxu0
    %v2593 = vadd.f32 0.0, %v2592
    %v2594 = vpop.f32.mrb[0].mxu0
    %2595 = vdwg.mxu0
    %2596 = vrot.lane.b32.xlu0 %v2143, 32
    %v2597 = vpop.permute.xlu0 %2596
    %v2598 = vsel %vm1204, %v2597, 0
    %2600 = vmatprep.subr.mxu0 0.0
    %2601 = vmatpush1.msra.mxu0 %v488
    %2602 = vmatprep.subr.mxu0 0.0
    %2603 = vmatpush1.msra.mxu0 %v493
    %2604 = vmatprep.subr.mxu0 0.0
    %2605 = vmatpush1.msra.mxu0 0.0
    %2606 = vmatprep.subr.mxu0 0.0
    %2607 = vmatpush1.msra.mxu0 0.0
    %2608 = vmatprep.subr.mxu0 0.0
    %2609 = vmatpush1.msra.mxu0 0.0
    %2610 = vmatprep.subr.mxu0 0.0
    %2611 = vmatpush1.msra.mxu0 0.0
    %2612 = vmatprep.subr.mxu0 0.0
    %2613 = vmatpush1.msra.mxu0 0.0
    %2614 = vmatprep.subr.mxu0 0.0
    %2615 = vmatpush1.msra.mxu0 0.0
    %2616 = vmatprep.subr.mxu0 0.0
    %2617 = vmatpush1.msra.mxu0 0.0
    %2618 = vmatprep.subr.mxu0 0.0
    %2619 = vmatpush1.msra.mxu0 0.0
    %2620 = vmatprep.subr.mxu0 0.0
    %2621 = vmatpush1.msra.mxu0 0.0
    %2622 = vmatprep.subr.mxu0 0.0
    %2623 = vmatpush1.msra.mxu0 0.0
    %2624 = vmatprep.subr.mxu0 0.0
    %2625 = vmatpush1.msra.mxu0 0.0
    %2626 = vmatprep.subr.mxu0 0.0
    %2627 = vmatpush1.msra.mxu0 0.0
    %2628 = vmatprep.subr.mxu0 0.0
    %2629 = vmatpush1.msra.mxu0 0.0
    %2630 = vmatprep.subr.mxu0 0.0
    %2631 = vmatpush1.msra.mxu0 0.0
    %2632 = vmatprep.subr.mxu0 0.0
    %2633 = vmatpush1.msra.mxu0 0.0
    %2634 = vmatprep.subr.mxu0 0.0
    %2635 = vmatpush1.msra.mxu0 0.0
    %2636 = vmatprep.subr.mxu0 0.0
    %2637 = vmatpush1.msra.mxu0 0.0
    %2638 = vmatprep.subr.mxu0 0.0
    %2639 = vmatpush1.msra.mxu0 0.0
    %2640 = vmatprep.subr.mxu0 0.0
    %2641 = vmatpush1.msra.mxu0 0.0
    %2642 = vmatprep.subr.mxu0 0.0
    %2643 = vmatpush1.msra.mxu0 0.0
    %2644 = vmatprep.subr.mxu0 0.0
    %2645 = vmatpush1.msra.mxu0 0.0
    %2646 = vmatprep.subr.mxu0 0.0
    %2647 = vmatpush1.msra.mxu0 0.0
    %2648 = vmatprep.subr.mxu0 0.0
    %2649 = vmatpush1.msra.mxu0 0.0
    %2650 = vmatprep.subr.mxu0 0.0
    %2651 = vmatpush1.msra.mxu0 0.0
    %2652 = vmatprep.subr.mxu0 0.0
    %2653 = vmatpush1.msra.mxu0 0.0
    %2654 = vmatprep.subr.mxu0 0.0
    %2655 = vmatpush1.msra.mxu0 0.0
    %2656 = vmatprep.subr.mxu0 0.0
    %2657 = vmatpush1.msra.mxu0 0.0
    %2658 = vmatprep.subr.mxu0 0.0
    %2659 = vmatpush1.msra.mxu0 0.0
    %2660 = vmatprep.subr.mxu0 0.0
    %2661 = vmatpush1.msra.mxu0 0.0
    %2662 = vmatprep.subr.mxu0 0.0
    %2663 = vmatpush1.msra.mxu0 0.0
    %2664 = vmatprep.mubr.f32.mxu0 0.0
    %2665 = vmatmul.mubr.f32.gmra.mrb[0].mxu0 %v2598
    %v2666 = vpop.f32.mrb[0].mxu0
    %v2667 = vadd.f32 0.0, %v2666
    %v2668 = vpop.f32.mrb[0].mxu0
    %2669 = vdwg.mxu0
    %2670 = vrot.lane.b32.xlu0 %v2143, 16
    %v2671 = vpop.permute.xlu0 %2670
    %v2672 = vsel %vm1204, %v2671, 0
    %2674 = vmatprep.subr.mxu0 0.0
    %2675 = vmatpush1.msra.mxu0 %v488
    %2676 = vmatprep.subr.mxu0 0.0
    %2677 = vmatpush1.msra.mxu0 %v493
    %2678 = vmatprep.subr.mxu0 0.0
    %2679 = vmatpush1.msra.mxu0 0.0
    %2680 = vmatprep.subr.mxu0 0.0
    %2681 = vmatpush1.msra.mxu0 0.0
    %2682 = vmatprep.subr.mxu0 0.0
    %2683 = vmatpush1.msra.mxu0 0.0
    %2684 = vmatprep.subr.mxu0 0.0
    %2685 = vmatpush1.msra.mxu0 0.0
    %2686 = vmatprep.subr.mxu0 0.0
    %2687 = vmatpush1.msra.mxu0 0.0
    %2688 = vmatprep.subr.mxu0 0.0
    %2689 = vmatpush1.msra.mxu0 0.0
    %2690 = vmatprep.subr.mxu0 0.0
    %2691 = vmatpush1.msra.mxu0 0.0
    %2692 = vmatprep.subr.mxu0 0.0
    %2693 = vmatpush1.msra.mxu0 0.0
    %2694 = vmatprep.subr.mxu0 0.0
    %2695 = vmatpush1.msra.mxu0 0.0
    %2696 = vmatprep.subr.mxu0 0.0
    %2697 = vmatpush1.msra.mxu0 0.0
    %2698 = vmatprep.subr.mxu0 0.0
    %2699 = vmatpush1.msra.mxu0 0.0
    %2700 = vmatprep.subr.mxu0 0.0
    %2701 = vmatpush1.msra.mxu0 0.0
    %2702 = vmatprep.subr.mxu0 0.0
    %2703 = vmatpush1.msra.mxu0 0.0
    %2704 = vmatprep.subr.mxu0 0.0
    %2705 = vmatpush1.msra.mxu0 0.0
    %2706 = vmatprep.subr.mxu0 0.0
    %2707 = vmatpush1.msra.mxu0 0.0
    %2708 = vmatprep.subr.mxu0 0.0
    %2709 = vmatpush1.msra.mxu0 0.0
    %2710 = vmatprep.subr.mxu0 0.0
    %2711 = vmatpush1.msra.mxu0 0.0
    %2712 = vmatprep.subr.mxu0 0.0
    %2713 = vmatpush1.msra.mxu0 0.0
    %2714 = vmatprep.subr.mxu0 0.0
    %2715 = vmatpush1.msra.mxu0 0.0
    %2716 = vmatprep.subr.mxu0 0.0
    %2717 = vmatpush1.msra.mxu0 0.0
    %2718 = vmatprep.subr.mxu0 0.0
    %2719 = vmatpush1.msra.mxu0 0.0
    %2720 = vmatprep.subr.mxu0 0.0
    %2721 = vmatpush1.msra.mxu0 0.0
    %2722 = vmatprep.subr.mxu0 0.0
    %2723 = vmatpush1.msra.mxu0 0.0
    %2724 = vmatprep.subr.mxu0 0.0
    %2725 = vmatpush1.msra.mxu0 0.0
    %2726 = vmatprep.subr.mxu0 0.0
    %2727 = vmatpush1.msra.mxu0 0.0
    %2728 = vmatprep.subr.mxu0 0.0
    %2729 = vmatpush1.msra.mxu0 0.0
    %2730 = vmatprep.subr.mxu0 0.0
    %2731 = vmatpush1.msra.mxu0 0.0
    %2732 = vmatprep.subr.mxu0 0.0
    %2733 = vmatpush1.msra.mxu0 0.0
    %2734 = vmatprep.subr.mxu0 0.0
    %2735 = vmatpush1.msra.mxu0 0.0
    %2736 = vmatprep.subr.mxu0 0.0
    %2737 = vmatpush1.msra.mxu0 0.0
    %2738 = vmatprep.mubr.f32.mxu0 0.0
    %2739 = vmatmul.mubr.f32.gmra.mrb[0].mxu0 %v2672
    %v2740 = vpop.f32.mrb[0].mxu0
    %v2741 = vadd.f32 0.0, %v2740
    %v2742 = vpop.f32.mrb[0].mxu0
    %2743 = vdwg.mxu0
    %v2744 = vld [vmem:[#allocation13] sm:$0xff]
    %v2745 = vld [vmem:[#allocation13 + $0x8] sm:$0xff]
    %v2746 = vld [vmem:[#allocation13 + $0x10] sm:$0xff]
    %v2747 = vld [vmem:[#allocation13 + $0x18] sm:$0xff]
    %v2748 = vld [vmem:[%s7] sm:$0x1]
    %v2750 = vlaneseq
    %v2751 = vshrl.u32 %v2750, 7
    %v2752 = vsub.s32 0, %v2751
    %v2753 = vrot.slane %v2748, %v2752
    %v2756 = vsel %vm156, %v2223, 0
    %v2759 = vsel %vm156, %v2297, 0
    %v2762 = vsel %vm156, %v2371, 0
    %v2765 = vsel %vm156, %v2445, 0
    %v2768 = vsel %vm156, %v2519, 0
    %v2771 = vsel %vm156, %v2593, 0
    %v2774 = vsel %vm156, %v2667, 0
    %v2777 = vsel %vm156, %v2741, 0
    %2779 = vmatprep.subr.mxu0 0.0
    %2780 = vmatpush1.msra.mxu0 %v2744
    %2781 = vmatprep.subr.mxu0 0.0
    %2782 = vmatpush1.msra.mxu0 %v2745
    %2783 = vmatprep.subr.mxu0 0.0
    %2784 = vmatpush1.msra.mxu0 %v2746
    %2785 = vmatprep.subr.mxu0 0.0
    %2786 = vmatpush1.msra.mxu0 %v2747
    %2787 = vmatprep.subr.mxu0 0.0
    %2788 = vmatpush1.msra.mxu0 0.0
    %2789 = vmatprep.subr.mxu0 0.0
    %2790 = vmatpush1.msra.mxu0 0.0
    %2791 = vmatprep.subr.mxu0 0.0
    %2792 = vmatpush1.msra.mxu0 0.0
    %2793 = vmatprep.subr.mxu0 0.0
    %2794 = vmatpush1.msra.mxu0 0.0
    %2795 = vmatprep.subr.mxu0 0.0
    %2796 = vmatpush1.msra.mxu0 0.0
    %2797 = vmatprep.subr.mxu0 0.0
    %2798 = vmatpush1.msra.mxu0 0.0
    %2799 = vmatprep.subr.mxu0 0.0
    %2800 = vmatpush1.msra.mxu0 0.0
    %2801 = vmatprep.subr.mxu0 0.0
    %2802 = vmatpush1.msra.mxu0 0.0
    %2803 = vmatprep.subr.mxu0 0.0
    %2804 = vmatpush1.msra.mxu0 0.0
    %2805 = vmatprep.subr.mxu0 0.0
    %2806 = vmatpush1.msra.mxu0 0.0
    %2807 = vmatprep.subr.mxu0 0.0
    %2808 = vmatpush1.msra.mxu0 0.0
    %2809 = vmatprep.subr.mxu0 0.0
    %2810 = vmatpush1.msra.mxu0 0.0
    %2811 = vmatprep.subr.mxu0 0.0
    %2812 = vmatpush1.msra.mxu0 0.0
    %2813 = vmatprep.subr.mxu0 0.0
    %2814 = vmatpush1.msra.mxu0 0.0
    %2815 = vmatprep.subr.mxu0 0.0
    %2816 = vmatpush1.msra.mxu0 0.0
    %2817 = vmatprep.subr.mxu0 0.0
    %2818 = vmatpush1.msra.mxu0 0.0
    %2819 = vmatprep.subr.mxu0 0.0
    %2820 = vmatpush1.msra.mxu0 0.0
    %2821 = vmatprep.subr.mxu0 0.0
    %2822 = vmatpush1.msra.mxu0 0.0
    %2823 = vmatprep.subr.mxu0 0.0
    %2824 = vmatpush1.msra.mxu0 0.0
    %2825 = vmatprep.subr.mxu0 0.0
    %2826 = vmatpush1.msra.mxu0 0.0
    %2827 = vmatprep.subr.mxu0 0.0
    %2828 = vmatpush1.msra.mxu0 0.0
    %2829 = vmatprep.subr.mxu0 0.0
    %2830 = vmatpush1.msra.mxu0 0.0
    %2831 = vmatprep.subr.mxu0 0.0
    %2832 = vmatpush1.msra.mxu0 0.0
    %2833 = vmatprep.subr.mxu0 0.0
    %2834 = vmatpush1.msra.mxu0 0.0
    %2835 = vmatprep.subr.mxu0 0.0
    %2836 = vmatpush1.msra.mxu0 0.0
    %2837 = vmatprep.subr.mxu0 0.0
    %2838 = vmatpush1.msra.mxu0 0.0
    %2839 = vmatprep.subr.mxu0 0.0
    %2840 = vmatpush1.msra.mxu0 0.0
    %2841 = vmatprep.subr.mxu0 0.0
    %2842 = vmatpush1.msra.mxu0 0.0
    %2843 = vmatprep.mubr.f32.mxu0 0.0
    %2844 = vmatmul.mubr.f32.gmra.mrb[0].mxu0 %v2756
    %v2845 = vpop.f32.mrb[0].mxu0
    %v2846 = vadd.f32 %v2753, %v2845
    %v2847 = vpop.f32.mrb[0].mxu0
    %2848 = vmatprep.mubr.f32.mxu0 0.0
    %2849 = vmatmul.mubr.f32.gmra.mrb[0].mxu0 %v2759
    %v2850 = vpop.f32.mrb[0].mxu0
    %v2851 = vadd.f32 %v2753, %v2850
    %v2852 = vpop.f32.mrb[0].mxu0
    %2853 = vmatprep.mubr.f32.mxu0 0.0
    %2854 = vmatmul.mubr.f32.gmra.mrb[0].mxu0 %v2762
    %v2855 = vpop.f32.mrb[0].mxu0
    %v2856 = vadd.f32 %v2753, %v2855
    %v2857 = vpop.f32.mrb[0].mxu0
    %2858 = vmatprep.mubr.f32.mxu0 0.0
    %2859 = vmatmul.mubr.f32.gmra.mrb[0].mxu0 %v2765
    %v2860 = vpop.f32.mrb[0].mxu0
    %v2861 = vadd.f32 %v2753, %v2860
    %v2862 = vpop.f32.mrb[0].mxu0
    %2863 = vmatprep.mubr.f32.mxu0 0.0
    %2864 = vmatmul.mubr.f32.gmra.mrb[0].mxu0 %v2768
    %v2865 = vpop.f32.mrb[0].mxu0
    %v2866 = vadd.f32 %v2753, %v2865
    %v2867 = vpop.f32.mrb[0].mxu0
    %2868 = vmatprep.mubr.f32.mxu0 0.0
    %2869 = vmatmul.mubr.f32.gmra.mrb[0].mxu0 %v2771
    %v2870 = vpop.f32.mrb[0].mxu0
    %v2871 = vadd.f32 %v2753, %v2870
    %v2872 = vpop.f32.mrb[0].mxu0
    %2873 = vmatprep.mubr.f32.mxu0 0.0
    %2874 = vmatmul.mubr.f32.gmra.mrb[0].mxu0 %v2774
    %v2875 = vpop.f32.mrb[0].mxu0
    %v2876 = vadd.f32 %v2753, %v2875
    %v2877 = vpop.f32.mrb[0].mxu0
    %2878 = vmatprep.mubr.f32.mxu0 0.0
    %2879 = vmatmul.mubr.f32.gmra.mrb[0].mxu0 %v2777
    %v2880 = vpop.f32.mrb[0].mxu0
    %v2881 = vadd.f32 %v2753, %v2880
    %v2882 = vpop.f32.mrb[0].mxu0
    %2883 = vdwg.mxu0
    %2884 = vst.msk [vmem:[%s9] sm:$0xff] %vm156, %v2846
    %2885 = vst.msk [vmem:[%s9 + $0x8] sm:$0xff] %vm156, %v2851
    %2886 = vst.msk [vmem:[%s9 + $0x10] sm:$0xff] %vm156, %v2856
    %2887 = vst.msk [vmem:[%s9 + $0x18] sm:$0xff] %vm156, %v2861
    %2888 = vst.msk [vmem:[%s9 + $0x20] sm:$0xff] %vm156, %v2866
    %2889 = vst.msk [vmem:[%s9 + $0x28] sm:$0xff] %vm156, %v2871
    %2890 = vst.msk [vmem:[%s9 + $0x30] sm:$0xff] %vm156, %v2876
    %2891 = vst.msk [vmem:[%s9 + $0x38] sm:$0xff] %vm156, %v2881
    // Predicated region
    $region77: #{tpu_custom_call.1} parent=1 // pred_check
      _
    $region78: #{tpu_custom_call.1} parent=1 // pred_check_branch
      %2893 = sbr.rel (0) target = $region80
    $region79: #{tpu_custom_call.1} parent=1 // pred_region
      _
    $region80: #{tpu_custom_call.1} parent=1 // pred_fallthru
      _
    // Predicated region
    $region81: #{tpu_custom_call.1} parent=1 // pred_check
      _
    $region82: #{tpu_custom_call.1} parent=1 // pred_check_branch
      %2895 = sbr.rel (0) target = $region84
    $region83: #{tpu_custom_call.1} parent=1 // pred_region
      %s2897 = ssub.s32 16, 16
      %2898 = vsyncadd [#allocation4], %s2897
      %s2900 = sshll.u32 [#allocation16], 4
      %s2901 = int_to_ptr.vmem [resolvable:$true] %s2900
      %2903 = dma.vmem_to_hbm [thread:$0]  %s2901, 16, %s10, [#allocation4]
    $region84: #{tpu_custom_call.1} parent=1 // pred_fallthru
      _
    // Predicated region
    $region85: #{tpu_custom_call.1} parent=1 // pred_check
      _
    $region86: #{tpu_custom_call.1} parent=1 // pred_check_branch
      %2905 = sbr.rel (0) target = $region88
    $region87: #{tpu_custom_call.1} parent=1 // pred_region
      _
    $region88: #{tpu_custom_call.1} parent=1 // pred_fallthru
      _
    // Predicated region
    $region89: #{tpu_custom_call.1} parent=1 // pred_check
      _
    $region90: #{tpu_custom_call.1} parent=1 // pred_check_branch
      %2907 = sbr.rel (0) target = $region92
    $region91: #{tpu_custom_call.1} parent=1 // pred_region
      %2908 = dma.done [#allocation4], 16
    $region92: #{tpu_custom_call.1} parent=1 // pred_fallthru
      _
    %2909 = vsyncpa [#allocation3], 1
    %2910 = vsyncpa [#allocation6], 1
    %2911 = vsyncpa [#allocation9], 1
    %2912 = vsyncpa [#allocation12], 1
    %2913 = vsyncpa [#allocation15], 1
    %2914 = vsyncpa [#allocation4], 1

</llo_original>
